<compile_context>
chip_gen: v6e
topology: v6e:2x2x1
jax: 0.10.0
libtpu: 0.0.40
codegen_flags: <defaults>
</compile_context>

<pallas_src>
import functools

import jax
import jax.numpy as jnp
from jax.experimental import pallas as pl
from jax.experimental.pallas import tpu as pltpu

N_DISCRETE = 72        # n_discrete_features (fixed in module __init__)
N_CONTINUOUS = 74      # n_continuous_features (fixed in module __init__)
N_PREV = 3             # prev_prediction channels (C_in = E*72 + 74 + 3)
NUM_EMBEDDINGS = 875
LEAKY_SLOPE = 0.01     # nn.LeakyReLU default


def _round_up(x, m):
    return ((x + m - 1) // m) * m


def _pick_tm(M, tm_max):
    """Row-tile size: multiple of 16 (bf16 sublane packing), <= tm_max, and -- when
    M is large enough -- sized so the grid has >= 2 (preferably even) steps so both
    v7x TensorCores get balanced work under dimension_semantics=('parallel',)."""
    if M <= 16:
        return 16
    n_tiles = max(1, -(-M // tm_max))
    if M > 256:
        n_tiles = max(n_tiles, 2)              # >= 2 grid steps for v7x's 2 TCs
    if n_tiles > 1 and n_tiles % 2:
        n_tiles += 1                           # even grid -> no load-imbalanced tail
    tm_eff = -(-M // n_tiles)
    tm_eff = _round_up(tm_eff, 16 if tm_eff < 256 else 256)
    return min(tm_eff, _round_up(M, 16), _round_up(tm_max, 16))


def _conv1x1_kernel(cp_ref, emb_ref, wcp_ref, wemb_ref, b_ref, o_ref):
    # cp_ref : (tm, 77)    bf16  [continuous(74) | sigmoid(prev)(3)] (sigmoid pre-applied)
    # emb_ref: (tm, E*72)  bf16  embedded features, channel order c*E + e
    # wcp_ref: (77, out) bf16, wemb_ref: (E*72, out) bf16, b_ref: (1, out) f32
    acc = jnp.dot(cp_ref[...], wcp_ref[...], preferred_element_type=jnp.float32)
    acc = acc + jnp.dot(emb_ref[...], wemb_ref[...],
                        preferred_element_type=jnp.float32)
    acc = acc + b_ref[...]                                     # broadcast bias
    # LeakyReLU (negative_slope = 0.01) in f32, store in o_ref's dtype (bf16 default)
    o_ref[...] = jnp.where(acc >= 0, acc, LEAKY_SLOPE * acc).astype(o_ref.dtype)


def _conv1x1_call(cp, emb, w_cp, w_emb, bias, *, out_dim, tm, out_dtype):
    M, c_cp = cp.shape
    c_emb = emb.shape[1]
    grid = (pl.cdiv(M, tm),)   # ragged last block handled by Pallas boundary masking
    return pl.pallas_call(
        _conv1x1_kernel,
        out_shape=jax.ShapeDtypeStruct((M, out_dim), out_dtype),
        grid_spec=pltpu.PrefetchScalarGridSpec(
            num_scalar_prefetch=0,
            grid=grid,
            in_specs=[
                pl.BlockSpec((tm, c_cp), lambda i: (i, 0)),
                pl.BlockSpec((tm, c_emb), lambda i: (i, 0)),
                pl.BlockSpec((c_cp, out_dim), lambda i: (0, 0)),
                pl.BlockSpec((c_emb, out_dim), lambda i: (0, 0)),
                pl.BlockSpec((1, out_dim), lambda i: (0, 0)),
            ],
            out_specs=pl.BlockSpec((tm, out_dim), lambda i: (i, 0)),
        ),
        compiler_params=pltpu.CompilerParams(
            dimension_semantics=("parallel",),   # row axis shards across v7x's 2 TCs
            # 32 MiB: raise over v5e's 16 MiB scoped default (needed once tm>=2048),
            # equal to the v7x scoped default; tm=2048 working set is ~8 MiB.
            vmem_limit_bytes=32 * 1024 * 1024,
        ),
    )(cp, emb, w_cp, w_emb, bias)


def conv_embedding_input_layer(params, continuous, discrete, prev_prediction, *,
                               embedding_dim, out_dim, tm=2048,
                               out_dtype=jnp.bfloat16):
    """Matches ConvEmbeddingInputLayer.forward (n_merge_layers=1). Returns NCHW.

    out_dtype=jnp.bfloat16 halves the store/permute traffic; pass jnp.float32 for
    exact dtype parity with the PyTorch module."""
    B = discrete.shape[0]
    P = discrete.shape[2]
    C_d = discrete.shape[3]
    H, W = discrete.shape[4], discrete.shape[5]
    N = B * P
    M = N * H * W
    c_emb = embedding_dim * C_d

    # ---- embedding gather directly in pixels-major / (c*E + e) channel order ----
    # Only the small int32 index tensor is transposed; the gathered bf16 activation
    # is already in the layout the kernel consumes (no big transpose, no concat).
    idx = jnp.transpose(discrete.reshape(N, C_d, H, W).astype(jnp.int32),
                        (0, 2, 3, 1)).reshape(M, C_d)                # (M, 72) int32
    # TODO(synk): the 875-row table gather stays in XLA; an in-kernel gather would
    # need 72 scalar-addressed loads per row and flip the kernel scalar/ld-bound.
    emb = params["embedding"].astype(jnp.bfloat16)[idx]              # (M, 72, E) bf16
    emb = emb.reshape(M, c_emb)                                      # channel = c*E + e

    # ---- continuous + sigmoid(prev) channels, pixels-major ---------------------
    # sigmoid applied in f32 *before* the single bf16 cast (perf + numerics).
    cont = continuous.reshape(N, N_CONTINUOUS, H, W).astype(jnp.float32)
    prev = jax.nn.sigmoid(
        prev_prediction.reshape(N, N_PREV, H, W).astype(jnp.float32))
    cp = jnp.concatenate([cont, prev], axis=1)                       # (N, 77, H, W)
    cp = jnp.transpose(cp, (0, 2, 3, 1)).reshape(M, N_CONTINUOUS + N_PREV)
    cp = cp.astype(jnp.bfloat16)

    # ---- weights: combined-channel order is [cont(74) | e*C_d + c | prev(3)] ----
    w = params["conv_w"]                        # (out_dim, C_in)
    b = params["conv_b"]                        # (out_dim,)
    w_cont = w[:, :N_CONTINUOUS]
    w_embb = w[:, N_CONTINUOUS:N_CONTINUOUS + c_emb]
    w_prev = w[:, N_CONTINUOUS + c_emb:]
    # reorder the embedded weight block from (e*C_d + c) to (c*E + e): permute the
    # small weight instead of the large activation.
    w_embb = jnp.transpose(w_embb.reshape(out_dim, embedding_dim, C_d),
                           (0, 2, 1)).reshape(out_dim, c_emb)
    w_emb_k = jnp.transpose(w_embb).astype(jnp.bfloat16)             # (E*72, out)
    w_cp_k = jnp.transpose(jnp.concatenate([w_cont, w_prev], axis=1)
                           ).astype(jnp.bfloat16)                    # (77, out)
    b_k = b.reshape(1, out_dim).astype(jnp.float32)

    # ---- hot path: two matmuls + bias + LeakyReLU, cdiv grid, no padding copies --
    tm_eff = _pick_tm(M, tm)
    out_flat = _conv1x1_call(cp, emb, w_cp_k, w_emb_k, b_k,
                             out_dim=out_dim, tm=tm_eff,
                             out_dtype=out_dtype)                    # (M, out_dim)
    out = out_flat.reshape(N, H, W, out_dim)
    return jnp.transpose(out, (0, 3, 1, 2))     # NCHW, matches PyTorch output


def _reference(params, continuous, discrete, prev_prediction, *, embedding_dim, out_dim):
    """Pure-JAX (f32) transliteration of the PyTorch forward, for verification."""
    B = discrete.shape[0]
    P = discrete.shape[2]
    C_d = discrete.shape[3]
    H, W = discrete.shape[4], discrete.shape[5]
    N = B * P
    idx = discrete.reshape(N, C_d, H, W).astype(jnp.int32)
    emb = params["embedding"][idx]                                      # (N,C_d,H,W,E)
    emb = jnp.transpose(emb, (0, 4, 1, 2, 3)).reshape(N, embedding_dim * C_d, H, W)
    cont = continuous.reshape(N, N_CONTINUOUS, H, W)
    prev = jax.nn.sigmoid(prev_prediction.reshape(N, N_PREV, H, W))
    combined = jnp.concatenate([cont, emb, prev], axis=1)               # (N, C_in, H, W)
    out = jnp.einsum("oc,nchw->nohw", params["conv_w"], combined)
    out = out + params["conv_b"][None, :, None, None]
    return jnp.where(out >= 0, out, LEAKY_SLOPE * out)


if __name__ == "__main__":
    # small, module-consistent shapes
    B, P, H, W = 2, 2, 16, 16
    embedding_dim = 8
    out_dim = 32
    C_in = embedding_dim * N_DISCRETE + N_CONTINUOUS + N_PREV

    key = jax.random.PRNGKey(0)
    k1, k2, k3, k4, k5, k6 = jax.random.split(key, 6)

    params = {
        "embedding": jax.random.normal(k1, (NUM_EMBEDDINGS, embedding_dim), jnp.float32) * 0.02,
        "conv_w": jax.random.normal(k2, (out_dim, C_in), jnp.float32) / jnp.sqrt(C_in),
        "conv_b": jax.random.normal(k3, (out_dim,), jnp.float32) * 0.01,
    }

    continuous = jax.random.normal(k4, (B, 1, P, N_CONTINUOUS, H, W), jnp.float32)
    discrete = jax.random.randint(k5, (B, 1, P, N_DISCRETE, H, W), 0, NUM_EMBEDDINGS, jnp.int32)
    prev_prediction = jax.random.normal(k6, (B, P, N_PREV, H, W), jnp.float32)

    fwd = jax.jit(functools.partial(conv_embedding_input_layer,
                                    embedding_dim=embedding_dim, out_dim=out_dim))
    out = jax.block_until_ready(fwd(params, continuous, discrete, prev_prediction))

    ref = jax.block_until_ready(_reference(params, continuous, discrete, prev_prediction,
                                           embedding_dim=embedding_dim, out_dim=out_dim))

    assert out.shape == (B * P, out_dim, H, W), out.shape
    out_f32 = out.astype(jnp.float32)
    max_err = float(jnp.max(jnp.abs(out_f32 - ref)))
    # bf16 matmul operands + bf16 output (f32 MXU accumulation) vs f32 reference
    assert jnp.allclose(out_f32, ref, atol=4e-2, rtol=4e-2), max_err
    print("KERNEL_OK")
</pallas_src>

<mosaic_0001>
module attributes {stable_mosaic.version = 11 : i64} {
  func.func @_conv1x1_kernel(%arg0: i32, %arg1: memref<512x77xbf16, #tpu.memory_space<vmem>>, %arg2: memref<512x576xbf16, #tpu.memory_space<vmem>>, %arg3: memref<77x32xbf16, #tpu.memory_space<vmem>>, %arg4: memref<576x32xbf16, #tpu.memory_space<vmem>>, %arg5: memref<1x32xf32, #tpu.memory_space<vmem>>, %arg6: memref<512x32xbf16, #tpu.memory_space<vmem>>) attributes {dimension_semantics = [#tpu.dimension_semantics<parallel>], iteration_bounds = array<i64: 2>, scalar_prefetch = 0 : i64, scratch_operands = 0 : i64, tpu.core_type = #tpu.core_type<tc>, window_params = [{transform_indices = @transform_0, window_bounds = array<i64: 512, 77>}, {transform_indices = @transform_1, window_bounds = array<i64: 512, 576>}, {pipeline_mode = #tpu.pipeline_mode<synchronous>, transform_indices = @transform_2, window_bounds = array<i64: 77, 32>}, {pipeline_mode = #tpu.pipeline_mode<synchronous>, transform_indices = @transform_3, window_bounds = array<i64: 576, 32>}, {pipeline_mode = #tpu.pipeline_mode<synchronous>, transform_indices = @transform_4, window_bounds = array<i64: 1, 32>}, {transform_indices = @transform_5, window_bounds = array<i64: 512, 32>}]} {
    %c0 = arith.constant 0 : index
    %c0_0 = arith.constant 0 : index
    %0 = vector.load %arg1[%c0, %c0_0] : memref<512x77xbf16, #tpu.memory_space<vmem>>, vector<512x77xbf16>
    %c0_1 = arith.constant 0 : index
    %c0_2 = arith.constant 0 : index
    %1 = vector.load %arg3[%c0_1, %c0_2] : memref<77x32xbf16, #tpu.memory_space<vmem>>, vector<77x32xbf16>
    %cst = arith.constant dense<0.000000e+00> : vector<512x32xf32>
    %2 = tpu.matmul %0, %1, %cst {dimension_numbers = #tpu.dot_dimension_numbers<[1], [0], [0], [1], [0, 0, 1, 1], [], []>} : vector<512x77xbf16>, vector<77x32xbf16>, vector<512x32xf32> -> vector<512x32xf32>
    %c0_3 = arith.constant 0 : index
    %c0_4 = arith.constant 0 : index
    %3 = vector.load %arg2[%c0_3, %c0_4] : memref<512x576xbf16, #tpu.memory_space<vmem>>, vector<512x576xbf16>
    %c0_5 = arith.constant 0 : index
    %c0_6 = arith.constant 0 : index
    %4 = vector.load %arg4[%c0_5, %c0_6] : memref<576x32xbf16, #tpu.memory_space<vmem>>, vector<576x32xbf16>
    %cst_7 = arith.constant dense<0.000000e+00> : vector<512x32xf32>
    %5 = tpu.matmul %3, %4, %cst_7 {dimension_numbers = #tpu.dot_dimension_numbers<[1], [0], [0], [1], [0, 0, 1, 1], [], []>} : vector<512x576xbf16>, vector<576x32xbf16>, vector<512x32xf32> -> vector<512x32xf32>
    %6 = arith.addf %2, %5 : vector<512x32xf32>
    %c0_8 = arith.constant 0 : index
    %c0_9 = arith.constant 0 : index
    %7 = vector.load %arg5[%c0_8, %c0_9] : memref<1x32xf32, #tpu.memory_space<vmem>>, vector<1x32xf32>
    %8 = vector.broadcast %7 : vector<1x32xf32> to vector<512x32xf32>
    %9 = arith.addf %6, %8 : vector<512x32xf32>
    %cst_10 = arith.constant 0.000000e+00 : f32
    %10 = vector.broadcast %cst_10 : f32 to vector<512x32xf32>
    %11 = arith.cmpf oge, %9, %10 : vector<512x32xf32>
    %cst_11 = arith.constant 0.00999999977 : f32
    %12 = vector.broadcast %cst_11 : f32 to vector<512x32xf32>
    %13 = arith.mulf %12, %9 : vector<512x32xf32>
    %14 = arith.select %11, %9, %13 : vector<512x32xi1>, vector<512x32xf32>
    %15 = arith.truncf %14 : vector<512x32xf32> to vector<512x32xbf16>
    %c0_12 = arith.constant 0 : index
    %c0_13 = arith.constant 0 : index
    %16 = vector.load %arg6[%c0_12, %c0_13] : memref<512x32xbf16, #tpu.memory_space<vmem>>, vector<512x32xbf16>
    tpu.vector_store %arg6[%c0_12, %c0_13], %15 {strides = array<i32>} : memref<512x32xbf16, #tpu.memory_space<vmem>>, vector<512x32xbf16>,
    return
  }
  func.func @transform_0(%arg0: i32) -> (i32, i32) {
    %c0_i32 = arith.constant 0 : i32
    %c0_i32_0 = arith.constant 0 : i32
    return %arg0, %c0_i32 : i32, i32
  }
  func.func @transform_1(%arg0: i32) -> (i32, i32) {
    %c0_i32 = arith.constant 0 : i32
    %c0_i32_0 = arith.constant 0 : i32
    return %arg0, %c0_i32 : i32, i32
  }
  func.func @transform_2(%arg0: i32) -> (i32, i32) {
    %c0_i32 = arith.constant 0 : i32
    %c0_i32_0 = arith.constant 0 : i32
    %c0_i32_1 = arith.constant 0 : i32
    return %c0_i32, %c0_i32_0 : i32, i32
  }
  func.func @transform_3(%arg0: i32) -> (i32, i32) {
    %c0_i32 = arith.constant 0 : i32
    %c0_i32_0 = arith.constant 0 : i32
    %c0_i32_1 = arith.constant 0 : i32
    return %c0_i32, %c0_i32_0 : i32, i32
  }
  func.func @transform_4(%arg0: i32) -> (i32, i32) {
    %c0_i32 = arith.constant 0 : i32
    %c0_i32_0 = arith.constant 0 : i32
    %c0_i32_1 = arith.constant 0 : i32
    return %c0_i32, %c0_i32_0 : i32, i32
  }
  func.func @transform_5(%arg0: i32) -> (i32, i32) {
    %c0_i32 = arith.constant 0 : i32
    %c0_i32_0 = arith.constant 0 : i32
    return %arg0, %c0_i32 : i32, i32
  }
}

</mosaic_0001>

<llo_original>
// kernel: conv_embedding_input_layer.1
$region0: #{conv_embedding_input_layer.1}
  #allocation0 [shape = 'u32[]', space=smem, size = 0x4, offset = 0x4, fixed_abs, tag = 'smem constant byte address 0x4 - core index']
  #allocation1 [shape = 'u32[144,128]{1,0:T(1,128)}', space=vmem, size = 0x12000, scoped, tag = 'internal scratch']
  %s0 = inlined_call_operand.vmem [shape: bf16[1024,77], index: 0, kind: input, shape index: {}]
  %s1 = inlined_call_operand.vmem [shape: bf16[1024,576], index: 1, kind: input, shape index: {}]
  %s2 = inlined_call_operand.vmem [shape: bf16[77,32], index: 2, kind: input, shape index: {}]
  %s3 = inlined_call_operand.vmem [shape: bf16[576,32], index: 3, kind: input, shape index: {}]
  %s4 = inlined_call_operand.vmem [shape: f32[1,32], index: 4, kind: input, shape index: {}]
  %s5 = inlined_call_operand.hbm [shape: bf16[1024,32], index: 5, kind: output, shape index: {}]
  %s6 = sld [smem:[#allocation0]]
  $region53: #{conv_embedding_input_layer.1} parent=0
    _
  %s8 = ssub.s32 1, %s6
  %s9 = scalar_select 0, %s8, %s6
  $region1: #{conv_embedding_input_layer.1} parent=0
    #allocation2 [shape = 'u8[262144]{0}', space=vmem, size = 0x40000, scoped, tag = 'output window, operand 0']
    #allocation3 [shape = 's32[2]{0}', space=sflag, size = 0x8, scoped, tag = 'scoped memory for conv_embedding_input_layer.1']
    %10 = vsyncpa [#allocation3], 0
    %s11 = scalar_lea.sflag [#allocation3], 1
    %12 = vsyncpa %s11, 0
    loop: start=0, step=1, limit=4
    $region2: #{conv_embedding_input_layer.1} parent=1 // loop_pre_header
      _
    $region3: #{conv_embedding_input_layer.1} parent=1 // loop_header
      %s14 = sphi 0, %s18
      %p15 = scmp.ge.s32.totalorder %s14, 4
      %s24 = sphi 0, %s26
      %s27 = sphi 0, %s24
      %s28 = sphi 0, %s27
      %s44 = sphi 0, %s28
      %s50 = sphi 0, %s52
      %s53 = sphi 0, %s50
      %s54 = sphi 0, %s53
      %s70 = sphi 0, %s54
      %s74 = sphi 0, %s74
      %s76 = sphi 0, %s74
      %s77 = sphi 0, %s76
      %s91 = sphi 0, %s77
      %s95 = sphi 0, %s95
      %s97 = sphi 0, %s95
      %s98 = sphi 0, %s97
      %s112 = sphi 0, %s98
      %s116 = sphi 0, %s116
      %s118 = sphi 0, %s116
      %s119 = sphi 0, %s118
      %s133 = sphi 0, %s119
      %s139 = sphi 0, %s141
      %s142 = sphi 0, %s139
      %s143 = sphi 0, %s142
      %s159 = sphi 0, %s143
    $region4: #{conv_embedding_input_layer.1} parent=1 // loop_header_branch
      %17 = sbr.rel (%p15) target = $region8
    $region5: #{conv_embedding_input_layer.1} parent=1 // loop_body
      %s19 = ssub.s32 %s14, 1
      %s20 = ssub.s32 %s14, 2
      %s21 = sadd.s32 %s14, 1
      %s22 = ssub.s32 %s14, %s21
      %p23 = scmp.eq.s32.totalorder %s22, 0
      %s25 = sadd.s32 %s24, 1
      %s26 = scalar_select %p23, %s24, %s25
      %p29 = pneg %p23
      %p30 = scmp.eq.s32.totalorder %s14, 1
      %p31 = por %p29, %p30
      %p32 = scmp.ne.s32.totalorder %s24, %s27
      %p33 = scmp.eq.s32.totalorder %s14, 0
      %p34 = por %p32, %p33
      %p35 = scmp.ne.s32.totalorder %s24, %s27
      %p36 = scmp.eq.s32.totalorder %s19, 1
      %p37 = por %p35, %p36
      %p38 = scmp.ne.s32.totalorder %s27, %s28
      %p39 = scmp.eq.s32.totalorder %s19, 0
      %p40 = por %p38, %p39
      %p41 = scmp.ne.s32.totalorder %s27, %s28
      %p42 = scmp.eq.s32.totalorder %s20, 1
      %p43 = por %p41, %p42
      %p45 = scmp.ne.s32.totalorder %s28, %s44
      %p46 = scmp.eq.s32.totalorder %s20, 0
      %p47 = por %p45, %p46
      %s48 = ssub.s32 %s14, %s21
      %p49 = scmp.eq.s32.totalorder %s48, 0
      %s51 = sadd.s32 %s50, 1
      %s52 = scalar_select %p49, %s50, %s51
      %p55 = pneg %p49
      %p56 = scmp.eq.s32.totalorder %s14, 1
      %p57 = por %p55, %p56
      %p58 = scmp.ne.s32.totalorder %s50, %s53
      %p59 = scmp.eq.s32.totalorder %s14, 0
      %p60 = por %p58, %p59
      %p61 = scmp.ne.s32.totalorder %s50, %s53
      %p62 = scmp.eq.s32.totalorder %s19, 1
      %p63 = por %p61, %p62
      %p64 = scmp.ne.s32.totalorder %s53, %s54
      %p65 = scmp.eq.s32.totalorder %s19, 0
      %p66 = por %p64, %p65
      %p67 = scmp.ne.s32.totalorder %s53, %s54
      %p68 = scmp.eq.s32.totalorder %s20, 1
      %p69 = por %p67, %p68
      %p71 = scmp.ne.s32.totalorder %s54, %s70
      %p72 = scmp.eq.s32.totalorder %s20, 0
      %p73 = por %p71, %p72
      %s75 = sadd.s32 %s74, 1
      %p78 = scmp.eq.s32.totalorder %s14, 1
      %p79 = scmp.ne.s32.totalorder %s74, %s76
      %p80 = scmp.eq.s32.totalorder %s14, 0
      %p81 = por %p79, %p80
      %p82 = scmp.ne.s32.totalorder %s74, %s76
      %p83 = scmp.eq.s32.totalorder %s19, 1
      %p84 = por %p82, %p83
      %p85 = scmp.ne.s32.totalorder %s76, %s77
      %p86 = scmp.eq.s32.totalorder %s19, 0
      %p87 = por %p85, %p86
      %p88 = scmp.ne.s32.totalorder %s76, %s77
      %p89 = scmp.eq.s32.totalorder %s20, 1
      %p90 = por %p88, %p89
      %p92 = scmp.ne.s32.totalorder %s77, %s91
      %p93 = scmp.eq.s32.totalorder %s20, 0
      %p94 = por %p92, %p93
      %s96 = sadd.s32 %s95, 1
      %p99 = scmp.eq.s32.totalorder %s14, 1
      %p100 = scmp.ne.s32.totalorder %s95, %s97
      %p101 = scmp.eq.s32.totalorder %s14, 0
      %p102 = por %p100, %p101
      %p103 = scmp.ne.s32.totalorder %s95, %s97
      %p104 = scmp.eq.s32.totalorder %s19, 1
      %p105 = por %p103, %p104
      %p106 = scmp.ne.s32.totalorder %s97, %s98
      %p107 = scmp.eq.s32.totalorder %s19, 0
      %p108 = por %p106, %p107
      %p109 = scmp.ne.s32.totalorder %s97, %s98
      %p110 = scmp.eq.s32.totalorder %s20, 1
      %p111 = por %p109, %p110
      %p113 = scmp.ne.s32.totalorder %s98, %s112
      %p114 = scmp.eq.s32.totalorder %s20, 0
      %p115 = por %p113, %p114
      %s117 = sadd.s32 %s116, 1
      %p120 = scmp.eq.s32.totalorder %s14, 1
      %p121 = scmp.ne.s32.totalorder %s116, %s118
      %p122 = scmp.eq.s32.totalorder %s14, 0
      %p123 = por %p121, %p122
      %p124 = scmp.ne.s32.totalorder %s116, %s118
      %p125 = scmp.eq.s32.totalorder %s19, 1
      %p126 = por %p124, %p125
      %p127 = scmp.ne.s32.totalorder %s118, %s119
      %p128 = scmp.eq.s32.totalorder %s19, 0
      %p129 = por %p127, %p128
      %p130 = scmp.ne.s32.totalorder %s118, %s119
      %p131 = scmp.eq.s32.totalorder %s20, 1
      %p132 = por %p130, %p131
      %p134 = scmp.ne.s32.totalorder %s119, %s133
      %p135 = scmp.eq.s32.totalorder %s20, 0
      %p136 = por %p134, %p135
      %s137 = ssub.s32 %s14, %s21
      %p138 = scmp.eq.s32.totalorder %s137, 0
      %s140 = sadd.s32 %s139, 1
      %s141 = scalar_select %p138, %s139, %s140
      %p144 = pneg %p138
      %p145 = scmp.eq.s32.totalorder %s14, 1
      %p146 = por %p144, %p145
      %p147 = scmp.ne.s32.totalorder %s139, %s142
      %p148 = scmp.eq.s32.totalorder %s14, 0
      %p149 = por %p147, %p148
      %p150 = scmp.ne.s32.totalorder %s139, %s142
      %p151 = scmp.eq.s32.totalorder %s19, 1
      %p152 = por %p150, %p151
      %p153 = scmp.ne.s32.totalorder %s142, %s143
      %p154 = scmp.eq.s32.totalorder %s19, 0
      %p155 = por %p153, %p154
      %p156 = scmp.ne.s32.totalorder %s142, %s143
      %p157 = scmp.eq.s32.totalorder %s20, 1
      %p158 = por %p156, %p157
      %p160 = scmp.ne.s32.totalorder %s143, %s159
      %p161 = scmp.eq.s32.totalorder %s20, 0
      %p162 = por %p160, %p161
      %p163 = scmp.le.s32.totalorder 1, %s14
      %p164 = scmp.lt.s32.totalorder %s14, 3
      %p165 = pnand %p163, %p164
      %p166 = pneg %p165
      // Predicated region
      $region9: #{conv_embedding_input_layer.1} parent=5 // pred_check
        _
      $region10: #{conv_embedding_input_layer.1} parent=5 // pred_check_branch
        %168 = sbr.rel (%p165) target = $region12
      $region11: #{conv_embedding_input_layer.1} parent=5 // pred_region
        %s169 = ssub.s32 %s14, 1
        // Predicated region
        $region13: #{conv_embedding_input_layer.1} parent=11 // pred_check
          %p170 = pneg %p87
        $region14: #{conv_embedding_input_layer.1} parent=11 // pred_check_branch
          %172 = sbr.rel (%p170) target = $region16
        $region15: #{conv_embedding_input_layer.1} parent=11 // pred_region
          _
        $region16: #{conv_embedding_input_layer.1} parent=11 // pred_fallthru
          _
        // Predicated region
        $region17: #{conv_embedding_input_layer.1} parent=11 // pred_check
          %p173 = pneg %p108
        $region18: #{conv_embedding_input_layer.1} parent=11 // pred_check_branch
          %175 = sbr.rel (%p173) target = $region20
        $region19: #{conv_embedding_input_layer.1} parent=11 // pred_region
          _
        $region20: #{conv_embedding_input_layer.1} parent=11 // pred_fallthru
          _
        // Predicated region
        $region21: #{conv_embedding_input_layer.1} parent=11 // pred_check
          %p176 = pneg %p129
        $region22: #{conv_embedding_input_layer.1} parent=11 // pred_check_branch
          %178 = sbr.rel (%p176) target = $region24
        $region23: #{conv_embedding_input_layer.1} parent=11 // pred_region
          _
        $region24: #{conv_embedding_input_layer.1} parent=11 // pred_fallthru
          _
      $region12: #{conv_embedding_input_layer.1} parent=5 // pred_fallthru
        _
      %p179 = scmp.lt.s32.totalorder %s14, 2
      // Predicated region
      $region25: #{conv_embedding_input_layer.1} parent=5 // pred_check
        %p180 = pneg %p179
      $region26: #{conv_embedding_input_layer.1} parent=5 // pred_check_branch
        %182 = sbr.rel (%p180) target = $region28
      $region27: #{conv_embedding_input_layer.1} parent=5 // pred_region
        // Predicated region
        $region29: #{conv_embedding_input_layer.1} parent=27 // pred_check
          %p183 = pneg %p34
        $region30: #{conv_embedding_input_layer.1} parent=27 // pred_check_branch
          %185 = sbr.rel (%p183) target = $region32
        $region31: #{conv_embedding_input_layer.1} parent=27 // pred_region
          %s186 = smul.u32 64, %s14
          %p187 = scmp.lt.s32.totalorder %s186, 127
          %s188 = scalar_select %p187, %s186, 127
          %s189 = smul.addr %s188, 4
          %s190 = scalar_lea.vmem %s0, %s189
          %s191 = smul.u32 64, %s14
        $region32: #{conv_embedding_input_layer.1} parent=27 // pred_fallthru
          _
        // Predicated region
        $region33: #{conv_embedding_input_layer.1} parent=27 // pred_check
          %p192 = pneg %p60
        $region34: #{conv_embedding_input_layer.1} parent=27 // pred_check_branch
          %194 = sbr.rel (%p192) target = $region36
        $region35: #{conv_embedding_input_layer.1} parent=27 // pred_region
          %s195 = smul.u32 64, %s14
          %p196 = scmp.lt.s32.totalorder %s195, 127
          %s197 = scalar_select %p196, %s195, 127
          %s198 = smul.addr %s197, 5
          %s199 = smul.addr %s198, 4
          %s200 = scalar_lea.vmem %s1, %s199
          %s201 = smul.u32 64, %s14
        $region36: #{conv_embedding_input_layer.1} parent=27 // pred_fallthru
          _
      $region28: #{conv_embedding_input_layer.1} parent=5 // pred_fallthru
        _
      %p202 = scmp.le.s32.totalorder 1, %s14
      %p203 = scmp.lt.s32.totalorder %s14, 3
      %p204 = pnand %p202, %p203
      %p205 = pneg %p204
      // Predicated region
      $region37: #{conv_embedding_input_layer.1} parent=5 // pred_check
        _
      $region38: #{conv_embedding_input_layer.1} parent=5 // pred_check_branch
        %207 = sbr.rel (%p204) target = $region40
      $region39: #{conv_embedding_input_layer.1} parent=5 // pred_region
        %s208 = ssub.s32 %s14, 1
        %s209 = smul.u32 64, %s19
        %p210 = scmp.lt.s32.totalorder %s209, 127
        %s211 = scalar_select %p210, %s209, 127
        %s212 = smul.addr %s211, 4
        %s213 = scalar_lea.vmem %s0, %s212
        %p214 = pneg %p40
        %p215 = pneg %p37
        %s216 = smul.u32 64, %s19
        %p217 = scmp.lt.s32.totalorder %s216, 127
        %s218 = scalar_select %p217, %s216, 127
        %s219 = smul.addr %s218, 5
        %s220 = smul.addr %s219, 4
        %s221 = scalar_lea.vmem %s1, %s220
        %p222 = pneg %p66
        %p223 = pneg %p63
        %p224 = pneg %p87
        %p225 = pneg %p84
        %p226 = pneg %p108
        %p227 = pneg %p105
        %p228 = pneg %p129
        %p229 = pneg %p126
        %p230 = pneg %p155
        %p231 = pneg %p152
        %s232 = sand.u32 %s142, 1
        %s233 = scalar_lea.sflag [#allocation3], %s232
        %s234 = sand.u32 %s142, 1
        %s235 = smul.addr %s234, 256
        %s236 = scalar_lea.vmem [#allocation2], %s235
        %s237 = smul.u32 64, %s19
        %p238 = scmp.lt.s32.totalorder %s237, 127
        %s239 = scalar_select %p238, %s237, 127
        %s240 = smul.addr %s239, 4
        %s241 = scalar_lea.vmem %s0, %s240
        %s242 = smul.u32 64, %s19
        %s243 = smul.u32 64, %s19
        %p244 = scmp.lt.s32.totalorder %s243, 127
        %s245 = scalar_select %p244, %s243, 127
        %s246 = smul.addr %s245, 5
        %s247 = smul.addr %s246, 4
        %s248 = scalar_lea.vmem %s1, %s247
        %s249 = smul.u32 64, %s19
        %s250 = smul.u32 64, %s19
        %v252 = vld [vmem:[%s241] sm:$0xf]
        %v253 = vld [vmem:[%s241 + $0x4] sm:$0xf]
        %v254 = vld [vmem:[%s241 + $0x8] sm:$0xf]
        %v255 = vld [vmem:[%s241 + $0xc] sm:$0xf]
        %v256 = vld [vmem:[%s241 + $0x10] sm:$0xf]
        %v257 = vld [vmem:[%s241 + $0x14] sm:$0xf]
        %v258 = vld [vmem:[%s241 + $0x18] sm:$0xf]
        %v259 = vld [vmem:[%s241 + $0x1c] sm:$0xf]
        %v260 = vld [vmem:[%s241 + $0x20] sm:$0xf]
        %v261 = vld [vmem:[%s241 + $0x24] sm:$0xf]
        %v262 = vld [vmem:[%s241 + $0x28] sm:$0xf]
        %v263 = vld [vmem:[%s241 + $0x2c] sm:$0xf]
        %v264 = vld [vmem:[%s241 + $0x30] sm:$0xf]
        %v265 = vld [vmem:[%s241 + $0x34] sm:$0xf]
        %v266 = vld [vmem:[%s241 + $0x38] sm:$0xf]
        %v267 = vld [vmem:[%s241 + $0x3c] sm:$0xf]
        %v268 = vld [vmem:[%s241 + $0x40] sm:$0xf]
        %v269 = vld [vmem:[%s241 + $0x44] sm:$0xf]
        %v270 = vld [vmem:[%s241 + $0x48] sm:$0xf]
        %v271 = vld [vmem:[%s241 + $0x4c] sm:$0xf]
        %v272 = vld [vmem:[%s241 + $0x50] sm:$0xf]
        %v273 = vld [vmem:[%s241 + $0x54] sm:$0xf]
        %v274 = vld [vmem:[%s241 + $0x58] sm:$0xf]
        %v275 = vld [vmem:[%s241 + $0x5c] sm:$0xf]
        %v276 = vld [vmem:[%s241 + $0x60] sm:$0xf]
        %v277 = vld [vmem:[%s241 + $0x64] sm:$0xf]
        %v278 = vld [vmem:[%s241 + $0x68] sm:$0xf]
        %v279 = vld [vmem:[%s241 + $0x6c] sm:$0xf]
        %v280 = vld [vmem:[%s241 + $0x70] sm:$0xf]
        %v281 = vld [vmem:[%s241 + $0x74] sm:$0xf]
        %v282 = vld [vmem:[%s241 + $0x78] sm:$0xf]
        %v283 = vld [vmem:[%s241 + $0x7c] sm:$0xf]
        %v284 = vld [vmem:[%s241 + $0x80] sm:$0xf]
        %v285 = vld [vmem:[%s241 + $0x84] sm:$0xf]
        %v286 = vld [vmem:[%s241 + $0x88] sm:$0xf]
        %v287 = vld [vmem:[%s241 + $0x8c] sm:$0xf]
        %v288 = vld [vmem:[%s241 + $0x90] sm:$0xf]
        %v289 = vld [vmem:[%s241 + $0x94] sm:$0xf]
        %v290 = vld [vmem:[%s241 + $0x98] sm:$0xf]
        %v291 = vld [vmem:[%s241 + $0x9c] sm:$0xf]
        %v292 = vld [vmem:[%s241 + $0xa0] sm:$0xf]
        %v293 = vld [vmem:[%s241 + $0xa4] sm:$0xf]
        %v294 = vld [vmem:[%s241 + $0xa8] sm:$0xf]
        %v295 = vld [vmem:[%s241 + $0xac] sm:$0xf]
        %v296 = vld [vmem:[%s241 + $0xb0] sm:$0xf]
        %v297 = vld [vmem:[%s241 + $0xb4] sm:$0xf]
        %v298 = vld [vmem:[%s241 + $0xb8] sm:$0xf]
        %v299 = vld [vmem:[%s241 + $0xbc] sm:$0xf]
        %v300 = vld [vmem:[%s241 + $0xc0] sm:$0xf]
        %v301 = vld [vmem:[%s241 + $0xc4] sm:$0xf]
        %v302 = vld [vmem:[%s241 + $0xc8] sm:$0xf]
        %v303 = vld [vmem:[%s241 + $0xcc] sm:$0xf]
        %v304 = vld [vmem:[%s241 + $0xd0] sm:$0xf]
        %v305 = vld [vmem:[%s241 + $0xd4] sm:$0xf]
        %v306 = vld [vmem:[%s241 + $0xd8] sm:$0xf]
        %v307 = vld [vmem:[%s241 + $0xdc] sm:$0xf]
        %v308 = vld [vmem:[%s241 + $0xe0] sm:$0xf]
        %v309 = vld [vmem:[%s241 + $0xe4] sm:$0xf]
        %v310 = vld [vmem:[%s241 + $0xe8] sm:$0xf]
        %v311 = vld [vmem:[%s241 + $0xec] sm:$0xf]
        %v312 = vld [vmem:[%s241 + $0xf0] sm:$0xf]
        %v313 = vld [vmem:[%s241 + $0xf4] sm:$0xf]
        %v314 = vld [vmem:[%s241 + $0xf8] sm:$0xf]
        %v315 = vld [vmem:[%s241 + $0xfc] sm:$0xf]
        %v316 = vld [vmem:[%s2] sm:$0xf]
        %v317 = vld [vmem:[%s2 + $0x4] sm:$0xf]
        %v318 = vld [vmem:[%s2 + $0x8] sm:$0xf]
        %v319 = vld [vmem:[%s2 + $0xc] sm:$0xf]
        %v320 = vld [vmem:[%s2 + $0x10] sm:$0xf]
        %v321 = vld [vmem:[%s2 + $0x14] sm:$0xf]
        %v322 = vld [vmem:[%s2 + $0x18] sm:$0xf]
        %v323 = vld [vmem:[%s2 + $0x1c] sm:$0xf]
        %v324 = vld [vmem:[%s2 + $0x20] sm:$0xf]
        %v325 = vld [vmem:[%s2 + $0x24] sm:$0x7]
        %v326 = vld [vmem:[%s248] sm:$0xff]
        %v327 = vld [vmem:[%s248 + $0x8] sm:$0xff]
        %v328 = vld [vmem:[%s248 + $0x10] sm:$0xf]
        %v329 = vld [vmem:[%s248 + $0x14] sm:$0xff]
        %v330 = vld [vmem:[%s248 + $0x1c] sm:$0xff]
        %v331 = vld [vmem:[%s248 + $0x24] sm:$0xf]
        %v332 = vld [vmem:[%s248 + $0x28] sm:$0xff]
        %v333 = vld [vmem:[%s248 + $0x30] sm:$0xff]
        %v334 = vld [vmem:[%s248 + $0x38] sm:$0xf]
        %v335 = vld [vmem:[%s248 + $0x3c] sm:$0xff]
        %v336 = vld [vmem:[%s248 + $0x44] sm:$0xff]
        %v337 = vld [vmem:[%s248 + $0x4c] sm:$0xf]
        %v338 = vld [vmem:[%s248 + $0x50] sm:$0xff]
        %v339 = vld [vmem:[%s248 + $0x58] sm:$0xff]
        %v340 = vld [vmem:[%s248 + $0x60] sm:$0xf]
        %v341 = vld [vmem:[%s248 + $0x64] sm:$0xff]
        %v342 = vld [vmem:[%s248 + $0x6c] sm:$0xff]
        %v343 = vld [vmem:[%s248 + $0x74] sm:$0xf]
        %v344 = vld [vmem:[%s248 + $0x78] sm:$0xff]
        %v345 = vld [vmem:[%s248 + $0x80] sm:$0xff]
        %v346 = vld [vmem:[%s248 + $0x88] sm:$0xf]
        %v347 = vld [vmem:[%s248 + $0x8c] sm:$0xff]
        %v348 = vld [vmem:[%s248 + $0x94] sm:$0xff]
        %v349 = vld [vmem:[%s248 + $0x9c] sm:$0xf]
        %v350 = vld [vmem:[%s248 + $0xa0] sm:$0xff]
        %v351 = vld [vmem:[%s248 + $0xa8] sm:$0xff]
        %v352 = vld [vmem:[%s248 + $0xb0] sm:$0xf]
        %v353 = vld [vmem:[%s248 + $0xb4] sm:$0xff]
        %v354 = vld [vmem:[%s248 + $0xbc] sm:$0xff]
        %v355 = vld [vmem:[%s248 + $0xc4] sm:$0xf]
        %v356 = vld [vmem:[%s248 + $0xc8] sm:$0xff]
        %v357 = vld [vmem:[%s248 + $0xd0] sm:$0xff]
        %v358 = vld [vmem:[%s248 + $0xd8] sm:$0xf]
        %v359 = vld [vmem:[%s248 + $0xdc] sm:$0xff]
        %v360 = vld [vmem:[%s248 + $0xe4] sm:$0xff]
        %v361 = vld [vmem:[%s248 + $0xec] sm:$0xf]
        %v362 = vld [vmem:[%s248 + $0xf0] sm:$0xff]
        %v363 = vld [vmem:[%s248 + $0xf8] sm:$0xff]
        %v364 = vld [vmem:[%s248 + $0x100] sm:$0xf]
        %v365 = vld [vmem:[%s248 + $0x104] sm:$0xff]
        %v366 = vld [vmem:[%s248 + $0x10c] sm:$0xff]
        %v367 = vld [vmem:[%s248 + $0x114] sm:$0xf]
        %v368 = vld [vmem:[%s248 + $0x118] sm:$0xff]
        %v369 = vld [vmem:[%s248 + $0x120] sm:$0xff]
        %v370 = vld [vmem:[%s248 + $0x128] sm:$0xf]
        %v371 = vld [vmem:[%s248 + $0x12c] sm:$0xff]
        %v372 = vld [vmem:[%s248 + $0x134] sm:$0xff]
        %v373 = vld [vmem:[%s248 + $0x13c] sm:$0xf]
        %v374 = vld [vmem:[%s248 + $0x140] sm:$0xff]
        %v375 = vld [vmem:[%s248 + $0x148] sm:$0xff]
        %v376 = vld [vmem:[%s248 + $0x150] sm:$0xf]
        %v377 = vld [vmem:[%s248 + $0x154] sm:$0xff]
        %v378 = vld [vmem:[%s248 + $0x15c] sm:$0xff]
        %v379 = vld [vmem:[%s248 + $0x164] sm:$0xf]
        %v380 = vld [vmem:[%s248 + $0x168] sm:$0xff]
        %v381 = vld [vmem:[%s248 + $0x170] sm:$0xff]
        %v382 = vld [vmem:[%s248 + $0x178] sm:$0xf]
        %v383 = vld [vmem:[%s248 + $0x17c] sm:$0xff]
        %v384 = vld [vmem:[%s248 + $0x184] sm:$0xff]
        %v385 = vld [vmem:[%s248 + $0x18c] sm:$0xf]
        %v386 = vld [vmem:[%s248 + $0x190] sm:$0xff]
        %v387 = vld [vmem:[%s248 + $0x198] sm:$0xff]
        %v388 = vld [vmem:[%s248 + $0x1a0] sm:$0xf]
        %v389 = vld [vmem:[%s248 + $0x1a4] sm:$0xff]
        %v390 = vld [vmem:[%s248 + $0x1ac] sm:$0xff]
        %v391 = vld [vmem:[%s248 + $0x1b4] sm:$0xf]
        %v392 = vld [vmem:[%s248 + $0x1b8] sm:$0xff]
        %v393 = vld [vmem:[%s248 + $0x1c0] sm:$0xff]
        %v394 = vld [vmem:[%s248 + $0x1c8] sm:$0xf]
        %v395 = vld [vmem:[%s248 + $0x1cc] sm:$0xff]
        %v396 = vld [vmem:[%s248 + $0x1d4] sm:$0xff]
        %v397 = vld [vmem:[%s248 + $0x1dc] sm:$0xf]
        %v398 = vld [vmem:[%s248 + $0x1e0] sm:$0xff]
        %v399 = vld [vmem:[%s248 + $0x1e8] sm:$0xff]
        %v400 = vld [vmem:[%s248 + $0x1f0] sm:$0xf]
        %v401 = vld [vmem:[%s248 + $0x1f4] sm:$0xff]
        %v402 = vld [vmem:[%s248 + $0x1fc] sm:$0xff]
        %v403 = vld [vmem:[%s248 + $0x204] sm:$0xf]
        %v404 = vld [vmem:[%s248 + $0x208] sm:$0xff]
        %v405 = vld [vmem:[%s248 + $0x210] sm:$0xff]
        %v406 = vld [vmem:[%s248 + $0x218] sm:$0xf]
        %v407 = vld [vmem:[%s248 + $0x21c] sm:$0xff]
        %v408 = vld [vmem:[%s248 + $0x224] sm:$0xff]
        %v409 = vld [vmem:[%s248 + $0x22c] sm:$0xf]
        %v410 = vld [vmem:[%s248 + $0x230] sm:$0xff]
        %v411 = vld [vmem:[%s248 + $0x238] sm:$0xff]
        %v412 = vld [vmem:[%s248 + $0x240] sm:$0xf]
        %v413 = vld [vmem:[%s248 + $0x244] sm:$0xff]
        %v414 = vld [vmem:[%s248 + $0x24c] sm:$0xff]
        %v415 = vld [vmem:[%s248 + $0x254] sm:$0xf]
        %v416 = vld [vmem:[%s248 + $0x258] sm:$0xff]
        %v417 = vld [vmem:[%s248 + $0x260] sm:$0xff]
        %v418 = vld [vmem:[%s248 + $0x268] sm:$0xf]
        %v419 = vld [vmem:[%s248 + $0x26c] sm:$0xff]
        %v420 = vld [vmem:[%s248 + $0x274] sm:$0xff]
        %v421 = vld [vmem:[%s248 + $0x27c] sm:$0xf]
        %v422 = vld [vmem:[%s248 + $0x280] sm:$0xff]
        %v423 = vld [vmem:[%s248 + $0x288] sm:$0xff]
        %v424 = vld [vmem:[%s248 + $0x290] sm:$0xf]
        %v425 = vld [vmem:[%s248 + $0x294] sm:$0xff]
        %v426 = vld [vmem:[%s248 + $0x29c] sm:$0xff]
        %v427 = vld [vmem:[%s248 + $0x2a4] sm:$0xf]
        %v428 = vld [vmem:[%s248 + $0x2a8] sm:$0xff]
        %v429 = vld [vmem:[%s248 + $0x2b0] sm:$0xff]
        %v430 = vld [vmem:[%s248 + $0x2b8] sm:$0xf]
        %v431 = vld [vmem:[%s248 + $0x2bc] sm:$0xff]
        %v432 = vld [vmem:[%s248 + $0x2c4] sm:$0xff]
        %v433 = vld [vmem:[%s248 + $0x2cc] sm:$0xf]
        %v434 = vld [vmem:[%s248 + $0x2d0] sm:$0xff]
        %v435 = vld [vmem:[%s248 + $0x2d8] sm:$0xff]
        %v436 = vld [vmem:[%s248 + $0x2e0] sm:$0xf]
        %v437 = vld [vmem:[%s248 + $0x2e4] sm:$0xff]
        %v438 = vld [vmem:[%s248 + $0x2ec] sm:$0xff]
        %v439 = vld [vmem:[%s248 + $0x2f4] sm:$0xf]
        %v440 = vld [vmem:[%s248 + $0x2f8] sm:$0xff]
        %v441 = vld [vmem:[%s248 + $0x300] sm:$0xff]
        %v442 = vld [vmem:[%s248 + $0x308] sm:$0xf]
        %v443 = vld [vmem:[%s248 + $0x30c] sm:$0xff]
        %v444 = vld [vmem:[%s248 + $0x314] sm:$0xff]
        %v445 = vld [vmem:[%s248 + $0x31c] sm:$0xf]
        %v446 = vld [vmem:[%s248 + $0x320] sm:$0xff]
        %v447 = vld [vmem:[%s248 + $0x328] sm:$0xff]
        %v448 = vld [vmem:[%s248 + $0x330] sm:$0xf]
        %v449 = vld [vmem:[%s248 + $0x334] sm:$0xff]
        %v450 = vld [vmem:[%s248 + $0x33c] sm:$0xff]
        %v451 = vld [vmem:[%s248 + $0x344] sm:$0xf]
        %v452 = vld [vmem:[%s248 + $0x348] sm:$0xff]
        %v453 = vld [vmem:[%s248 + $0x350] sm:$0xff]
        %v454 = vld [vmem:[%s248 + $0x358] sm:$0xf]
        %v455 = vld [vmem:[%s248 + $0x35c] sm:$0xff]
        %v456 = vld [vmem:[%s248 + $0x364] sm:$0xff]
        %v457 = vld [vmem:[%s248 + $0x36c] sm:$0xf]
        %v458 = vld [vmem:[%s248 + $0x370] sm:$0xff]
        %v459 = vld [vmem:[%s248 + $0x378] sm:$0xff]
        %v460 = vld [vmem:[%s248 + $0x380] sm:$0xf]
        %v461 = vld [vmem:[%s248 + $0x384] sm:$0xff]
        %v462 = vld [vmem:[%s248 + $0x38c] sm:$0xff]
        %v463 = vld [vmem:[%s248 + $0x394] sm:$0xf]
        %v464 = vld [vmem:[%s248 + $0x398] sm:$0xff]
        %v465 = vld [vmem:[%s248 + $0x3a0] sm:$0xff]
        %v466 = vld [vmem:[%s248 + $0x3a8] sm:$0xf]
        %v467 = vld [vmem:[%s248 + $0x3ac] sm:$0xff]
        %v468 = vld [vmem:[%s248 + $0x3b4] sm:$0xff]
        %v469 = vld [vmem:[%s248 + $0x3bc] sm:$0xf]
        %v470 = vld [vmem:[%s248 + $0x3c0] sm:$0xff]
        %v471 = vld [vmem:[%s248 + $0x3c8] sm:$0xff]
        %v472 = vld [vmem:[%s248 + $0x3d0] sm:$0xf]
        %v473 = vld [vmem:[%s248 + $0x3d4] sm:$0xff]
        %v474 = vld [vmem:[%s248 + $0x3dc] sm:$0xff]
        %v475 = vld [vmem:[%s248 + $0x3e4] sm:$0xf]
        %v476 = vld [vmem:[%s248 + $0x3e8] sm:$0xff]
        %v477 = vld [vmem:[%s248 + $0x3f0] sm:$0xff]
        %v478 = vld [vmem:[%s248 + $0x3f8] sm:$0xf]
        %v479 = vld [vmem:[%s248 + $0x3fc] sm:$0xff]
        %v480 = vld [vmem:[%s248 + $0x404] sm:$0xff]
        %v481 = vld [vmem:[%s248 + $0x40c] sm:$0xf]
        %v482 = vld [vmem:[%s248 + $0x410] sm:$0xff]
        %v483 = vld [vmem:[%s248 + $0x418] sm:$0xff]
        %v484 = vld [vmem:[%s248 + $0x420] sm:$0xf]
        %v485 = vld [vmem:[%s248 + $0x424] sm:$0xff]
        %v486 = vld [vmem:[%s248 + $0x42c] sm:$0xff]
        %v487 = vld [vmem:[%s248 + $0x434] sm:$0xf]
        %v488 = vld [vmem:[%s248 + $0x438] sm:$0xff]
        %v489 = vld [vmem:[%s248 + $0x440] sm:$0xff]
        %v490 = vld [vmem:[%s248 + $0x448] sm:$0xf]
        %v491 = vld [vmem:[%s248 + $0x44c] sm:$0xff]
        %v492 = vld [vmem:[%s248 + $0x454] sm:$0xff]
        %v493 = vld [vmem:[%s248 + $0x45c] sm:$0xf]
        %v494 = vld [vmem:[%s248 + $0x460] sm:$0xff]
        %v495 = vld [vmem:[%s248 + $0x468] sm:$0xff]
        %v496 = vld [vmem:[%s248 + $0x470] sm:$0xf]
        %v497 = vld [vmem:[%s248 + $0x474] sm:$0xff]
        %v498 = vld [vmem:[%s248 + $0x47c] sm:$0xff]
        %v499 = vld [vmem:[%s248 + $0x484] sm:$0xf]
        %v500 = vld [vmem:[%s248 + $0x488] sm:$0xff]
        %v501 = vld [vmem:[%s248 + $0x490] sm:$0xff]
        %v502 = vld [vmem:[%s248 + $0x498] sm:$0xf]
        %v503 = vld [vmem:[%s248 + $0x49c] sm:$0xff]
        %v504 = vld [vmem:[%s248 + $0x4a4] sm:$0xff]
        %v505 = vld [vmem:[%s248 + $0x4ac] sm:$0xf]
        %v506 = vld [vmem:[%s248 + $0x4b0] sm:$0xff]
        %v507 = vld [vmem:[%s248 + $0x4b8] sm:$0xff]
        %v508 = vld [vmem:[%s248 + $0x4c0] sm:$0xf]
        %v509 = vld [vmem:[%s248 + $0x4c4] sm:$0xff]
        %v510 = vld [vmem:[%s248 + $0x4cc] sm:$0xff]
        %v511 = vld [vmem:[%s248 + $0x4d4] sm:$0xf]
        %v512 = vld [vmem:[%s248 + $0x4d8] sm:$0xff]
        %v513 = vld [vmem:[%s248 + $0x4e0] sm:$0xff]
        %v514 = vld [vmem:[%s248 + $0x4e8] sm:$0xf]
        %v515 = vld [vmem:[%s248 + $0x4ec] sm:$0xff]
        %v516 = vld [vmem:[%s248 + $0x4f4] sm:$0xff]
        %v517 = vld [vmem:[%s248 + $0x4fc] sm:$0xf]
        %v518 = vld [vmem:[%s3] sm:$0xf]
        %v519 = vld [vmem:[%s3 + $0x4] sm:$0xf]
        %v520 = vld [vmem:[%s3 + $0x8] sm:$0xf]
        %v521 = vld [vmem:[%s3 + $0xc] sm:$0xf]
        %v522 = vld [vmem:[%s3 + $0x10] sm:$0xf]
        %v523 = vld [vmem:[%s3 + $0x14] sm:$0xf]
        %v524 = vld [vmem:[%s3 + $0x18] sm:$0xf]
        %v525 = vld [vmem:[%s3 + $0x1c] sm:$0xf]
        %v526 = vld [vmem:[%s3 + $0x20] sm:$0xf]
        %v527 = vld [vmem:[%s3 + $0x24] sm:$0xf]
        %v528 = vld [vmem:[%s3 + $0x28] sm:$0xf]
        %v529 = vld [vmem:[%s3 + $0x2c] sm:$0xf]
        %v530 = vld [vmem:[%s3 + $0x30] sm:$0xf]
        %v531 = vld [vmem:[%s3 + $0x34] sm:$0xf]
        %v532 = vld [vmem:[%s3 + $0x38] sm:$0xf]
        %v533 = vld [vmem:[%s3 + $0x3c] sm:$0xf]
        %v534 = vld [vmem:[%s3 + $0x40] sm:$0xf]
        %v535 = vld [vmem:[%s3 + $0x44] sm:$0xf]
        %v536 = vld [vmem:[%s3 + $0x48] sm:$0xf]
        %v537 = vld [vmem:[%s3 + $0x4c] sm:$0xf]
        %v538 = vld [vmem:[%s3 + $0x50] sm:$0xf]
        %v539 = vld [vmem:[%s3 + $0x54] sm:$0xf]
        %v540 = vld [vmem:[%s3 + $0x58] sm:$0xf]
        %v541 = vld [vmem:[%s3 + $0x5c] sm:$0xf]
        %v542 = vld [vmem:[%s3 + $0x60] sm:$0xf]
        %v543 = vld [vmem:[%s3 + $0x64] sm:$0xf]
        %v544 = vld [vmem:[%s3 + $0x68] sm:$0xf]
        %v545 = vld [vmem:[%s3 + $0x6c] sm:$0xf]
        %v546 = vld [vmem:[%s3 + $0x70] sm:$0xf]
        %v547 = vld [vmem:[%s3 + $0x74] sm:$0xf]
        %v548 = vld [vmem:[%s3 + $0x78] sm:$0xf]
        %v549 = vld [vmem:[%s3 + $0x7c] sm:$0xf]
        %v550 = vld [vmem:[%s3 + $0x80] sm:$0xf]
        %v551 = vld [vmem:[%s3 + $0x84] sm:$0xf]
        %v552 = vld [vmem:[%s3 + $0x88] sm:$0xf]
        %v553 = vld [vmem:[%s3 + $0x8c] sm:$0xf]
        %v554 = vld [vmem:[%s3 + $0x90] sm:$0xf]
        %v555 = vld [vmem:[%s3 + $0x94] sm:$0xf]
        %v556 = vld [vmem:[%s3 + $0x98] sm:$0xf]
        %v557 = vld [vmem:[%s3 + $0x9c] sm:$0xf]
        %v558 = vld [vmem:[%s3 + $0xa0] sm:$0xf]
        %v559 = vld [vmem:[%s3 + $0xa4] sm:$0xf]
        %v560 = vld [vmem:[%s3 + $0xa8] sm:$0xf]
        %v561 = vld [vmem:[%s3 + $0xac] sm:$0xf]
        %v562 = vld [vmem:[%s3 + $0xb0] sm:$0xf]
        %v563 = vld [vmem:[%s3 + $0xb4] sm:$0xf]
        %v564 = vld [vmem:[%s3 + $0xb8] sm:$0xf]
        %v565 = vld [vmem:[%s3 + $0xbc] sm:$0xf]
        %v566 = vld [vmem:[%s3 + $0xc0] sm:$0xf]
        %v567 = vld [vmem:[%s3 + $0xc4] sm:$0xf]
        %v568 = vld [vmem:[%s3 + $0xc8] sm:$0xf]
        %v569 = vld [vmem:[%s3 + $0xcc] sm:$0xf]
        %v570 = vld [vmem:[%s3 + $0xd0] sm:$0xf]
        %v571 = vld [vmem:[%s3 + $0xd4] sm:$0xf]
        %v572 = vld [vmem:[%s3 + $0xd8] sm:$0xf]
        %v573 = vld [vmem:[%s3 + $0xdc] sm:$0xf]
        %v574 = vld [vmem:[%s3 + $0xe0] sm:$0xf]
        %v575 = vld [vmem:[%s3 + $0xe4] sm:$0xf]
        %v576 = vld [vmem:[%s3 + $0xe8] sm:$0xf]
        %v577 = vld [vmem:[%s3 + $0xec] sm:$0xf]
        %v578 = vld [vmem:[%s3 + $0xf0] sm:$0xf]
        %v579 = vld [vmem:[%s3 + $0xf4] sm:$0xf]
        %v580 = vld [vmem:[%s3 + $0xf8] sm:$0xf]
        %v581 = vld [vmem:[%s3 + $0xfc] sm:$0xf]
        %v582 = vld [vmem:[%s3 + $0x100] sm:$0xf]
        %v583 = vld [vmem:[%s3 + $0x104] sm:$0xf]
        %v584 = vld [vmem:[%s3 + $0x108] sm:$0xf]
        %v585 = vld [vmem:[%s3 + $0x10c] sm:$0xf]
        %v586 = vld [vmem:[%s3 + $0x110] sm:$0xf]
        %v587 = vld [vmem:[%s3 + $0x114] sm:$0xf]
        %v588 = vld [vmem:[%s3 + $0x118] sm:$0xf]
        %v589 = vld [vmem:[%s3 + $0x11c] sm:$0xf]
        %v782 = vunpack.c.l.b16 %v326
        %v783 = vunpack.c.h.b16 %v326
        %v784 = vunpack.c.l.b16 %v327
        %v785 = vunpack.c.h.b16 %v327
        %v786 = vunpack.c.l.b16 %v328
        %v787 = vunpack.c.l.b16 %v329
        %v788 = vunpack.c.h.b16 %v329
        %v789 = vunpack.c.l.b16 %v330
        %v790 = vunpack.c.h.b16 %v330
        %v791 = vunpack.c.l.b16 %v331
        %v792 = vunpack.c.l.b16 %v332
        %v793 = vunpack.c.h.b16 %v332
        %v794 = vunpack.c.l.b16 %v333
        %v795 = vunpack.c.h.b16 %v333
        %v796 = vunpack.c.l.b16 %v334
        %v797 = vunpack.c.l.b16 %v335
        %v798 = vunpack.c.h.b16 %v335
        %v799 = vunpack.c.l.b16 %v336
        %v800 = vunpack.c.h.b16 %v336
        %v801 = vunpack.c.l.b16 %v337
        %v802 = vunpack.c.l.b16 %v338
        %v803 = vunpack.c.h.b16 %v338
        %v804 = vunpack.c.l.b16 %v339
        %v805 = vunpack.c.h.b16 %v339
        %v806 = vunpack.c.l.b16 %v340
        %v807 = vunpack.c.l.b16 %v341
        %v808 = vunpack.c.h.b16 %v341
        %v809 = vunpack.c.l.b16 %v342
        %v810 = vunpack.c.h.b16 %v342
        %v811 = vunpack.c.l.b16 %v343
        %v812 = vunpack.c.l.b16 %v344
        %v813 = vunpack.c.h.b16 %v344
        %v814 = vunpack.c.l.b16 %v345
        %v815 = vunpack.c.h.b16 %v345
        %v816 = vunpack.c.l.b16 %v346
        %v817 = vunpack.c.l.b16 %v347
        %v818 = vunpack.c.h.b16 %v347
        %v819 = vunpack.c.l.b16 %v348
        %v820 = vunpack.c.h.b16 %v348
        %v821 = vunpack.c.l.b16 %v349
        %v822 = vunpack.c.l.b16 %v350
        %v823 = vunpack.c.h.b16 %v350
        %v824 = vunpack.c.l.b16 %v351
        %v825 = vunpack.c.h.b16 %v351
        %v826 = vunpack.c.l.b16 %v352
        %v827 = vunpack.c.l.b16 %v353
        %v828 = vunpack.c.h.b16 %v353
        %v829 = vunpack.c.l.b16 %v354
        %v830 = vunpack.c.h.b16 %v354
        %v831 = vunpack.c.l.b16 %v355
        %v832 = vunpack.c.l.b16 %v356
        %v833 = vunpack.c.h.b16 %v356
        %v834 = vunpack.c.l.b16 %v357
        %v835 = vunpack.c.h.b16 %v357
        %v836 = vunpack.c.l.b16 %v358
        %v837 = vunpack.c.l.b16 %v359
        %v838 = vunpack.c.h.b16 %v359
        %v839 = vunpack.c.l.b16 %v360
        %v840 = vunpack.c.h.b16 %v360
        %v841 = vunpack.c.l.b16 %v361
        %v842 = vunpack.c.l.b16 %v362
        %v843 = vunpack.c.h.b16 %v362
        %v844 = vunpack.c.l.b16 %v363
        %v845 = vunpack.c.h.b16 %v363
        %v846 = vunpack.c.l.b16 %v364
        %v847 = vunpack.c.l.b16 %v365
        %v848 = vunpack.c.h.b16 %v365
        %v849 = vunpack.c.l.b16 %v366
        %v850 = vunpack.c.h.b16 %v366
        %v851 = vunpack.c.l.b16 %v367
        %v852 = vunpack.c.l.b16 %v368
        %v853 = vunpack.c.h.b16 %v368
        %v854 = vunpack.c.l.b16 %v369
        %v855 = vunpack.c.h.b16 %v369
        %v856 = vunpack.c.l.b16 %v370
        %v857 = vunpack.c.l.b16 %v371
        %v858 = vunpack.c.h.b16 %v371
        %v859 = vunpack.c.l.b16 %v372
        %v860 = vunpack.c.h.b16 %v372
        %v861 = vunpack.c.l.b16 %v373
        %v862 = vunpack.c.l.b16 %v374
        %v863 = vunpack.c.h.b16 %v374
        %v864 = vunpack.c.l.b16 %v375
        %v865 = vunpack.c.h.b16 %v375
        %v866 = vunpack.c.l.b16 %v376
        %v867 = vunpack.c.l.b16 %v377
        %v868 = vunpack.c.h.b16 %v377
        %v869 = vunpack.c.l.b16 %v378
        %v870 = vunpack.c.h.b16 %v378
        %v871 = vunpack.c.l.b16 %v379
        %v872 = vunpack.c.l.b16 %v380
        %v873 = vunpack.c.h.b16 %v380
        %v874 = vunpack.c.l.b16 %v381
        %v875 = vunpack.c.h.b16 %v381
        %v876 = vunpack.c.l.b16 %v382
        %v877 = vunpack.c.l.b16 %v383
        %v878 = vunpack.c.h.b16 %v383
        %v879 = vunpack.c.l.b16 %v384
        %v880 = vunpack.c.h.b16 %v384
        %v881 = vunpack.c.l.b16 %v385
        %v882 = vunpack.c.l.b16 %v386
        %v883 = vunpack.c.h.b16 %v386
        %v884 = vunpack.c.l.b16 %v387
        %v885 = vunpack.c.h.b16 %v387
        %v886 = vunpack.c.l.b16 %v388
        %v887 = vunpack.c.l.b16 %v389
        %v888 = vunpack.c.h.b16 %v389
        %v889 = vunpack.c.l.b16 %v390
        %v890 = vunpack.c.h.b16 %v390
        %v891 = vunpack.c.l.b16 %v391
        %v892 = vunpack.c.l.b16 %v392
        %v893 = vunpack.c.h.b16 %v392
        %v894 = vunpack.c.l.b16 %v393
        %v895 = vunpack.c.h.b16 %v393
        %v896 = vunpack.c.l.b16 %v394
        %v897 = vunpack.c.l.b16 %v395
        %v898 = vunpack.c.h.b16 %v395
        %v899 = vunpack.c.l.b16 %v396
        %v900 = vunpack.c.h.b16 %v396
        %v901 = vunpack.c.l.b16 %v397
        %v902 = vunpack.c.l.b16 %v398
        %v903 = vunpack.c.h.b16 %v398
        %v904 = vunpack.c.l.b16 %v399
        %v905 = vunpack.c.h.b16 %v399
        %v906 = vunpack.c.l.b16 %v400
        %v907 = vunpack.c.l.b16 %v401
        %v908 = vunpack.c.h.b16 %v401
        %v909 = vunpack.c.l.b16 %v402
        %v910 = vunpack.c.h.b16 %v402
        %v911 = vunpack.c.l.b16 %v403
        %v912 = vunpack.c.l.b16 %v404
        %v913 = vunpack.c.h.b16 %v404
        %v914 = vunpack.c.l.b16 %v405
        %v915 = vunpack.c.h.b16 %v405
        %v916 = vunpack.c.l.b16 %v406
        %v917 = vunpack.c.l.b16 %v407
        %v918 = vunpack.c.h.b16 %v407
        %v919 = vunpack.c.l.b16 %v408
        %v920 = vunpack.c.h.b16 %v408
        %v921 = vunpack.c.l.b16 %v409
        %v922 = vunpack.c.l.b16 %v410
        %v923 = vunpack.c.h.b16 %v410
        %v924 = vunpack.c.l.b16 %v411
        %v925 = vunpack.c.h.b16 %v411
        %v926 = vunpack.c.l.b16 %v412
        %v927 = vunpack.c.l.b16 %v413
        %v928 = vunpack.c.h.b16 %v413
        %v929 = vunpack.c.l.b16 %v414
        %v930 = vunpack.c.h.b16 %v414
        %v931 = vunpack.c.l.b16 %v415
        %v932 = vunpack.c.l.b16 %v416
        %v933 = vunpack.c.h.b16 %v416
        %v934 = vunpack.c.l.b16 %v417
        %v935 = vunpack.c.h.b16 %v417
        %v936 = vunpack.c.l.b16 %v418
        %v937 = vunpack.c.l.b16 %v419
        %v938 = vunpack.c.h.b16 %v419
        %v939 = vunpack.c.l.b16 %v420
        %v940 = vunpack.c.h.b16 %v420
        %v941 = vunpack.c.l.b16 %v421
        %v942 = vunpack.c.l.b16 %v422
        %v943 = vunpack.c.h.b16 %v422
        %v944 = vunpack.c.l.b16 %v423
        %v945 = vunpack.c.h.b16 %v423
        %v946 = vunpack.c.l.b16 %v424
        %v947 = vunpack.c.l.b16 %v425
        %v948 = vunpack.c.h.b16 %v425
        %v949 = vunpack.c.l.b16 %v426
        %v950 = vunpack.c.h.b16 %v426
        %v951 = vunpack.c.l.b16 %v427
        %v952 = vunpack.c.l.b16 %v428
        %v953 = vunpack.c.h.b16 %v428
        %v954 = vunpack.c.l.b16 %v429
        %v955 = vunpack.c.h.b16 %v429
        %v956 = vunpack.c.l.b16 %v430
        %v957 = vunpack.c.l.b16 %v431
        %v958 = vunpack.c.h.b16 %v431
        %v959 = vunpack.c.l.b16 %v432
        %v960 = vunpack.c.h.b16 %v432
        %v961 = vunpack.c.l.b16 %v433
        %v962 = vunpack.c.l.b16 %v434
        %v963 = vunpack.c.h.b16 %v434
        %v964 = vunpack.c.l.b16 %v435
        %v965 = vunpack.c.h.b16 %v435
        %v966 = vunpack.c.l.b16 %v436
        %v967 = vunpack.c.l.b16 %v437
        %v968 = vunpack.c.h.b16 %v437
        %v969 = vunpack.c.l.b16 %v438
        %v970 = vunpack.c.h.b16 %v438
        %v971 = vunpack.c.l.b16 %v439
        %v972 = vunpack.c.l.b16 %v440
        %v973 = vunpack.c.h.b16 %v440
        %v974 = vunpack.c.l.b16 %v441
        %v975 = vunpack.c.h.b16 %v441
        %v976 = vunpack.c.l.b16 %v442
        %v977 = vunpack.c.l.b16 %v443
        %v978 = vunpack.c.h.b16 %v443
        %v979 = vunpack.c.l.b16 %v444
        %v980 = vunpack.c.h.b16 %v444
        %v981 = vunpack.c.l.b16 %v445
        %v982 = vunpack.c.l.b16 %v446
        %v983 = vunpack.c.h.b16 %v446
        %v984 = vunpack.c.l.b16 %v447
        %v985 = vunpack.c.h.b16 %v447
        %v986 = vunpack.c.l.b16 %v448
        %v987 = vunpack.c.l.b16 %v449
        %v988 = vunpack.c.h.b16 %v449
        %v989 = vunpack.c.l.b16 %v450
        %v990 = vunpack.c.h.b16 %v450
        %v991 = vunpack.c.l.b16 %v451
        %v992 = vunpack.c.l.b16 %v452
        %v993 = vunpack.c.h.b16 %v452
        %v994 = vunpack.c.l.b16 %v453
        %v995 = vunpack.c.h.b16 %v453
        %v996 = vunpack.c.l.b16 %v454
        %v997 = vunpack.c.l.b16 %v455
        %v998 = vunpack.c.h.b16 %v455
        %v999 = vunpack.c.l.b16 %v456
        %v1000 = vunpack.c.h.b16 %v456
        %v1001 = vunpack.c.l.b16 %v457
        %v1002 = vunpack.c.l.b16 %v458
        %v1003 = vunpack.c.h.b16 %v458
        %v1004 = vunpack.c.l.b16 %v459
        %v1005 = vunpack.c.h.b16 %v459
        %v1006 = vunpack.c.l.b16 %v460
        %v1007 = vunpack.c.l.b16 %v461
        %v1008 = vunpack.c.h.b16 %v461
        %v1009 = vunpack.c.l.b16 %v462
        %v1010 = vunpack.c.h.b16 %v462
        %v1011 = vunpack.c.l.b16 %v463
        %v1012 = vunpack.c.l.b16 %v464
        %v1013 = vunpack.c.h.b16 %v464
        %v1014 = vunpack.c.l.b16 %v465
        %v1015 = vunpack.c.h.b16 %v465
        %v1016 = vunpack.c.l.b16 %v466
        %v1017 = vunpack.c.l.b16 %v467
        %v1018 = vunpack.c.h.b16 %v467
        %v1019 = vunpack.c.l.b16 %v468
        %v1020 = vunpack.c.h.b16 %v468
        %v1021 = vunpack.c.l.b16 %v469
        %v1022 = vunpack.c.l.b16 %v470
        %v1023 = vunpack.c.h.b16 %v470
        %v1024 = vunpack.c.l.b16 %v471
        %v1025 = vunpack.c.h.b16 %v471
        %v1026 = vunpack.c.l.b16 %v472
        %v1027 = vunpack.c.l.b16 %v473
        %v1028 = vunpack.c.h.b16 %v473
        %v1029 = vunpack.c.l.b16 %v474
        %v1030 = vunpack.c.h.b16 %v474
        %v1031 = vunpack.c.l.b16 %v475
        %v1032 = vunpack.c.l.b16 %v476
        %v1033 = vunpack.c.h.b16 %v476
        %v1034 = vunpack.c.l.b16 %v477
        %v1035 = vunpack.c.h.b16 %v477
        %v1036 = vunpack.c.l.b16 %v478
        %v1037 = vunpack.c.l.b16 %v479
        %v1038 = vunpack.c.h.b16 %v479
        %v1039 = vunpack.c.l.b16 %v480
        %v1040 = vunpack.c.h.b16 %v480
        %v1041 = vunpack.c.l.b16 %v481
        %v1042 = vunpack.c.l.b16 %v482
        %v1043 = vunpack.c.h.b16 %v482
        %v1044 = vunpack.c.l.b16 %v483
        %v1045 = vunpack.c.h.b16 %v483
        %v1046 = vunpack.c.l.b16 %v484
        %v1047 = vunpack.c.l.b16 %v485
        %v1048 = vunpack.c.h.b16 %v485
        %v1049 = vunpack.c.l.b16 %v486
        %v1050 = vunpack.c.h.b16 %v486
        %v1051 = vunpack.c.l.b16 %v487
        %v1052 = vunpack.c.l.b16 %v488
        %v1053 = vunpack.c.h.b16 %v488
        %v1054 = vunpack.c.l.b16 %v489
        %v1055 = vunpack.c.h.b16 %v489
        %v1056 = vunpack.c.l.b16 %v490
        %v1057 = vunpack.c.l.b16 %v491
        %v1058 = vunpack.c.h.b16 %v491
        %v1059 = vunpack.c.l.b16 %v492
        %v1060 = vunpack.c.h.b16 %v492
        %v1061 = vunpack.c.l.b16 %v493
        %v1062 = vunpack.c.l.b16 %v494
        %v1063 = vunpack.c.h.b16 %v494
        %v1064 = vunpack.c.l.b16 %v495
        %v1065 = vunpack.c.h.b16 %v495
        %v1066 = vunpack.c.l.b16 %v496
        %v1067 = vunpack.c.l.b16 %v497
        %v1068 = vunpack.c.h.b16 %v497
        %v1069 = vunpack.c.l.b16 %v498
        %v1070 = vunpack.c.h.b16 %v498
        %v1071 = vunpack.c.l.b16 %v499
        %v1072 = vunpack.c.l.b16 %v500
        %v1073 = vunpack.c.h.b16 %v500
        %v1074 = vunpack.c.l.b16 %v501
        %v1075 = vunpack.c.h.b16 %v501
        %v1076 = vunpack.c.l.b16 %v502
        %v1077 = vunpack.c.l.b16 %v503
        %v1078 = vunpack.c.h.b16 %v503
        %v1079 = vunpack.c.l.b16 %v504
        %v1080 = vunpack.c.h.b16 %v504
        %v1081 = vunpack.c.l.b16 %v505
        %v1082 = vunpack.c.l.b16 %v506
        %v1083 = vunpack.c.h.b16 %v506
        %v1084 = vunpack.c.l.b16 %v507
        %v1085 = vunpack.c.h.b16 %v507
        %v1086 = vunpack.c.l.b16 %v508
        %v1087 = vunpack.c.l.b16 %v509
        %v1088 = vunpack.c.h.b16 %v509
        %v1089 = vunpack.c.l.b16 %v510
        %v1090 = vunpack.c.h.b16 %v510
        %v1091 = vunpack.c.l.b16 %v511
        %v1092 = vunpack.c.l.b16 %v512
        %v1093 = vunpack.c.h.b16 %v512
        %v1094 = vunpack.c.l.b16 %v513
        %v1095 = vunpack.c.h.b16 %v513
        %v1096 = vunpack.c.l.b16 %v514
        %v1097 = vunpack.c.l.b16 %v515
        %v1098 = vunpack.c.h.b16 %v515
        %v1099 = vunpack.c.l.b16 %v516
        %v1100 = vunpack.c.h.b16 %v516
        %v1101 = vunpack.c.l.b16 %v517
        %v1102 = vpack.c.b16 %v787, %v782
        %v1103 = vpack.c.b16 %v788, %v783
        %v1104 = vpack.c.b16 %v789, %v784
        %v1105 = vpack.c.b16 %v790, %v785
        %v1106 = vpack.c.b16 %v791, %v786
        %v1107 = vpack.c.b16 %v797, %v792
        %v1108 = vpack.c.b16 %v798, %v793
        %v1109 = vpack.c.b16 %v799, %v794
        %v1110 = vpack.c.b16 %v800, %v795
        %v1111 = vpack.c.b16 %v801, %v796
        %v1112 = vpack.c.b16 %v807, %v802
        %v1113 = vpack.c.b16 %v808, %v803
        %v1114 = vpack.c.b16 %v809, %v804
        %v1115 = vpack.c.b16 %v810, %v805
        %v1116 = vpack.c.b16 %v811, %v806
        %v1117 = vpack.c.b16 %v817, %v812
        %v1118 = vpack.c.b16 %v818, %v813
        %v1119 = vpack.c.b16 %v819, %v814
        %v1120 = vpack.c.b16 %v820, %v815
        %v1121 = vpack.c.b16 %v821, %v816
        %v1122 = vpack.c.b16 %v827, %v822
        %v1123 = vpack.c.b16 %v828, %v823
        %v1124 = vpack.c.b16 %v829, %v824
        %v1125 = vpack.c.b16 %v830, %v825
        %v1126 = vpack.c.b16 %v831, %v826
        %v1127 = vpack.c.b16 %v837, %v832
        %v1128 = vpack.c.b16 %v838, %v833
        %v1129 = vpack.c.b16 %v839, %v834
        %v1130 = vpack.c.b16 %v840, %v835
        %v1131 = vpack.c.b16 %v841, %v836
        %v1132 = vpack.c.b16 %v847, %v842
        %v1133 = vpack.c.b16 %v848, %v843
        %v1134 = vpack.c.b16 %v849, %v844
        %v1135 = vpack.c.b16 %v850, %v845
        %v1136 = vpack.c.b16 %v851, %v846
        %v1137 = vpack.c.b16 %v857, %v852
        %v1138 = vpack.c.b16 %v858, %v853
        %v1139 = vpack.c.b16 %v859, %v854
        %v1140 = vpack.c.b16 %v860, %v855
        %v1141 = vpack.c.b16 %v861, %v856
        %v1142 = vpack.c.b16 %v867, %v862
        %v1143 = vpack.c.b16 %v868, %v863
        %v1144 = vpack.c.b16 %v869, %v864
        %v1145 = vpack.c.b16 %v870, %v865
        %v1146 = vpack.c.b16 %v871, %v866
        %v1147 = vpack.c.b16 %v877, %v872
        %v1148 = vpack.c.b16 %v878, %v873
        %v1149 = vpack.c.b16 %v879, %v874
        %v1150 = vpack.c.b16 %v880, %v875
        %v1151 = vpack.c.b16 %v881, %v876
        %v1152 = vpack.c.b16 %v887, %v882
        %v1153 = vpack.c.b16 %v888, %v883
        %v1154 = vpack.c.b16 %v889, %v884
        %v1155 = vpack.c.b16 %v890, %v885
        %v1156 = vpack.c.b16 %v891, %v886
        %v1157 = vpack.c.b16 %v897, %v892
        %v1158 = vpack.c.b16 %v898, %v893
        %v1159 = vpack.c.b16 %v899, %v894
        %v1160 = vpack.c.b16 %v900, %v895
        %v1161 = vpack.c.b16 %v901, %v896
        %v1162 = vpack.c.b16 %v907, %v902
        %v1163 = vpack.c.b16 %v908, %v903
        %v1164 = vpack.c.b16 %v909, %v904
        %v1165 = vpack.c.b16 %v910, %v905
        %v1166 = vpack.c.b16 %v911, %v906
        %v1167 = vpack.c.b16 %v917, %v912
        %v1168 = vpack.c.b16 %v918, %v913
        %v1169 = vpack.c.b16 %v919, %v914
        %v1170 = vpack.c.b16 %v920, %v915
        %v1171 = vpack.c.b16 %v921, %v916
        %v1172 = vpack.c.b16 %v927, %v922
        %v1173 = vpack.c.b16 %v928, %v923
        %v1174 = vpack.c.b16 %v929, %v924
        %v1175 = vpack.c.b16 %v930, %v925
        %v1176 = vpack.c.b16 %v931, %v926
        %v1177 = vpack.c.b16 %v937, %v932
        %v1178 = vpack.c.b16 %v938, %v933
        %v1179 = vpack.c.b16 %v939, %v934
        %v1180 = vpack.c.b16 %v940, %v935
        %v1181 = vpack.c.b16 %v941, %v936
        %v1182 = vpack.c.b16 %v947, %v942
        %v1183 = vpack.c.b16 %v948, %v943
        %v1184 = vpack.c.b16 %v949, %v944
        %v1185 = vpack.c.b16 %v950, %v945
        %v1186 = vpack.c.b16 %v951, %v946
        %v1187 = vpack.c.b16 %v957, %v952
        %v1188 = vpack.c.b16 %v958, %v953
        %v1189 = vpack.c.b16 %v959, %v954
        %v1190 = vpack.c.b16 %v960, %v955
        %v1191 = vpack.c.b16 %v961, %v956
        %v1192 = vpack.c.b16 %v967, %v962
        %v1193 = vpack.c.b16 %v968, %v963
        %v1194 = vpack.c.b16 %v969, %v964
        %v1195 = vpack.c.b16 %v970, %v965
        %v1196 = vpack.c.b16 %v971, %v966
        %v1197 = vpack.c.b16 %v977, %v972
        %v1198 = vpack.c.b16 %v978, %v973
        %v1199 = vpack.c.b16 %v979, %v974
        %v1200 = vpack.c.b16 %v980, %v975
        %v1201 = vpack.c.b16 %v981, %v976
        %v1202 = vpack.c.b16 %v987, %v982
        %v1203 = vpack.c.b16 %v988, %v983
        %v1204 = vpack.c.b16 %v989, %v984
        %v1205 = vpack.c.b16 %v990, %v985
        %v1206 = vpack.c.b16 %v991, %v986
        %v1207 = vpack.c.b16 %v997, %v992
        %v1208 = vpack.c.b16 %v998, %v993
        %v1209 = vpack.c.b16 %v999, %v994
        %v1210 = vpack.c.b16 %v1000, %v995
        %v1211 = vpack.c.b16 %v1001, %v996
        %v1212 = vpack.c.b16 %v1007, %v1002
        %v1213 = vpack.c.b16 %v1008, %v1003
        %v1214 = vpack.c.b16 %v1009, %v1004
        %v1215 = vpack.c.b16 %v1010, %v1005
        %v1216 = vpack.c.b16 %v1011, %v1006
        %v1217 = vpack.c.b16 %v1017, %v1012
        %v1218 = vpack.c.b16 %v1018, %v1013
        %v1219 = vpack.c.b16 %v1019, %v1014
        %v1220 = vpack.c.b16 %v1020, %v1015
        %v1221 = vpack.c.b16 %v1021, %v1016
        %v1222 = vpack.c.b16 %v1027, %v1022
        %v1223 = vpack.c.b16 %v1028, %v1023
        %v1224 = vpack.c.b16 %v1029, %v1024
        %v1225 = vpack.c.b16 %v1030, %v1025
        %v1226 = vpack.c.b16 %v1031, %v1026
        %v1227 = vpack.c.b16 %v1037, %v1032
        %v1228 = vpack.c.b16 %v1038, %v1033
        %v1229 = vpack.c.b16 %v1039, %v1034
        %v1230 = vpack.c.b16 %v1040, %v1035
        %v1231 = vpack.c.b16 %v1041, %v1036
        %v1232 = vpack.c.b16 %v1047, %v1042
        %v1233 = vpack.c.b16 %v1048, %v1043
        %v1234 = vpack.c.b16 %v1049, %v1044
        %v1235 = vpack.c.b16 %v1050, %v1045
        %v1236 = vpack.c.b16 %v1051, %v1046
        %v1237 = vpack.c.b16 %v1057, %v1052
        %v1238 = vpack.c.b16 %v1058, %v1053
        %v1239 = vpack.c.b16 %v1059, %v1054
        %v1240 = vpack.c.b16 %v1060, %v1055
        %v1241 = vpack.c.b16 %v1061, %v1056
        %v1242 = vpack.c.b16 %v1067, %v1062
        %v1243 = vpack.c.b16 %v1068, %v1063
        %v1244 = vpack.c.b16 %v1069, %v1064
        %v1245 = vpack.c.b16 %v1070, %v1065
        %v1246 = vpack.c.b16 %v1071, %v1066
        %v1247 = vpack.c.b16 %v1077, %v1072
        %v1248 = vpack.c.b16 %v1078, %v1073
        %v1249 = vpack.c.b16 %v1079, %v1074
        %v1250 = vpack.c.b16 %v1080, %v1075
        %v1251 = vpack.c.b16 %v1081, %v1076
        %v1252 = vpack.c.b16 %v1087, %v1082
        %v1253 = vpack.c.b16 %v1088, %v1083
        %v1254 = vpack.c.b16 %v1089, %v1084
        %v1255 = vpack.c.b16 %v1090, %v1085
        %v1256 = vpack.c.b16 %v1091, %v1086
        %v1257 = vpack.c.b16 %v1097, %v1092
        %v1258 = vpack.c.b16 %v1098, %v1093
        %v1259 = vpack.c.b16 %v1099, %v1094
        %v1260 = vpack.c.b16 %v1100, %v1095
        %v1261 = vpack.c.b16 %v1101, %v1096
        %v1462 = vunpack.c.l.b16 %v518
        %v1463 = vunpack.c.l.b16 %v519
        %v1464 = vunpack.c.l.b16 %v520
        %v1465 = vunpack.c.l.b16 %v521
        %v1466 = vunpack.c.l.b16 %v522
        %v1467 = vunpack.c.l.b16 %v523
        %v1468 = vunpack.c.l.b16 %v524
        %v1469 = vunpack.c.l.b16 %v525
        %v1470 = vunpack.c.l.b16 %v526
        %v1471 = vunpack.c.l.b16 %v527
        %v1472 = vunpack.c.l.b16 %v528
        %v1473 = vunpack.c.l.b16 %v529
        %v1474 = vunpack.c.l.b16 %v530
        %v1475 = vunpack.c.l.b16 %v531
        %v1476 = vunpack.c.l.b16 %v532
        %v1477 = vunpack.c.l.b16 %v533
        %v1478 = vunpack.c.l.b16 %v534
        %v1479 = vunpack.c.l.b16 %v535
        %v1480 = vunpack.c.l.b16 %v536
        %v1481 = vunpack.c.l.b16 %v537
        %v1482 = vunpack.c.l.b16 %v538
        %v1483 = vunpack.c.l.b16 %v539
        %v1484 = vunpack.c.l.b16 %v540
        %v1485 = vunpack.c.l.b16 %v541
        %v1486 = vunpack.c.l.b16 %v542
        %v1487 = vunpack.c.l.b16 %v543
        %v1488 = vunpack.c.l.b16 %v544
        %v1489 = vunpack.c.l.b16 %v545
        %v1490 = vunpack.c.l.b16 %v546
        %v1491 = vunpack.c.l.b16 %v547
        %v1492 = vunpack.c.l.b16 %v548
        %v1493 = vunpack.c.l.b16 %v549
        %v1494 = vunpack.c.l.b16 %v550
        %v1495 = vunpack.c.l.b16 %v551
        %v1496 = vunpack.c.l.b16 %v552
        %v1497 = vunpack.c.l.b16 %v553
        %v1498 = vunpack.c.l.b16 %v554
        %v1499 = vunpack.c.l.b16 %v555
        %v1500 = vunpack.c.l.b16 %v556
        %v1501 = vunpack.c.l.b16 %v557
        %v1502 = vunpack.c.l.b16 %v558
        %v1503 = vunpack.c.l.b16 %v559
        %v1504 = vunpack.c.l.b16 %v560
        %v1505 = vunpack.c.l.b16 %v561
        %v1506 = vunpack.c.l.b16 %v562
        %v1507 = vunpack.c.l.b16 %v563
        %v1508 = vunpack.c.l.b16 %v564
        %v1509 = vunpack.c.l.b16 %v565
        %v1510 = vunpack.c.l.b16 %v566
        %v1511 = vunpack.c.l.b16 %v567
        %v1512 = vunpack.c.l.b16 %v568
        %v1513 = vunpack.c.l.b16 %v569
        %v1514 = vunpack.c.l.b16 %v570
        %v1515 = vunpack.c.l.b16 %v571
        %v1516 = vunpack.c.l.b16 %v572
        %v1517 = vunpack.c.l.b16 %v573
        %v1518 = vunpack.c.l.b16 %v574
        %v1519 = vunpack.c.l.b16 %v575
        %v1520 = vunpack.c.l.b16 %v576
        %v1521 = vunpack.c.l.b16 %v577
        %v1522 = vunpack.c.l.b16 %v578
        %v1523 = vunpack.c.l.b16 %v579
        %v1524 = vunpack.c.l.b16 %v580
        %v1525 = vunpack.c.l.b16 %v581
        %v1526 = vunpack.c.l.b16 %v582
        %v1527 = vunpack.c.l.b16 %v583
        %v1528 = vunpack.c.l.b16 %v584
        %v1529 = vunpack.c.l.b16 %v585
        %v1530 = vunpack.c.l.b16 %v586
        %v1531 = vunpack.c.l.b16 %v587
        %v1532 = vunpack.c.l.b16 %v588
        %v1533 = vunpack.c.l.b16 %v589
        %v1534 = vpack.c.b16 %v1463, %v1462
        %v1535 = vpack.c.b16 %v1465, %v1464
        %v1536 = vpack.c.b16 %v1467, %v1466
        %v1537 = vpack.c.b16 %v1469, %v1468
        %v1538 = vpack.c.b16 %v1471, %v1470
        %v1539 = vpack.c.b16 %v1473, %v1472
        %v1540 = vpack.c.b16 %v1475, %v1474
        %v1541 = vpack.c.b16 %v1477, %v1476
        %v1542 = vpack.c.b16 %v1479, %v1478
        %v1543 = vpack.c.b16 %v1481, %v1480
        %v1544 = vpack.c.b16 %v1483, %v1482
        %v1545 = vpack.c.b16 %v1485, %v1484
        %v1546 = vpack.c.b16 %v1487, %v1486
        %v1547 = vpack.c.b16 %v1489, %v1488
        %v1548 = vpack.c.b16 %v1491, %v1490
        %v1549 = vpack.c.b16 %v1493, %v1492
        %v1550 = vpack.c.b16 %v1495, %v1494
        %v1551 = vpack.c.b16 %v1497, %v1496
        %v1552 = vpack.c.b16 %v1499, %v1498
        %v1553 = vpack.c.b16 %v1501, %v1500
        %v1554 = vpack.c.b16 %v1503, %v1502
        %v1555 = vpack.c.b16 %v1505, %v1504
        %v1556 = vpack.c.b16 %v1507, %v1506
        %v1557 = vpack.c.b16 %v1509, %v1508
        %v1558 = vpack.c.b16 %v1511, %v1510
        %v1559 = vpack.c.b16 %v1513, %v1512
        %v1560 = vpack.c.b16 %v1515, %v1514
        %v1561 = vpack.c.b16 %v1517, %v1516
        %v1562 = vpack.c.b16 %v1519, %v1518
        %v1563 = vpack.c.b16 %v1521, %v1520
        %v1564 = vpack.c.b16 %v1523, %v1522
        %v1565 = vpack.c.b16 %v1525, %v1524
        %v1566 = vpack.c.b16 %v1527, %v1526
        %v1567 = vpack.c.b16 %v1529, %v1528
        %v1568 = vpack.c.b16 %v1531, %v1530
        %v1569 = vpack.c.b16 %v1533, %v1532
        %vm1606 = vcmask 523264
        %v1608 = vsel %vm1606, %v1106, 0
        %v1611 = vsel %vm1606, %v1111, 0
        %v1614 = vsel %vm1606, %v1116, 0
        %v1617 = vsel %vm1606, %v1121, 0
        %v1620 = vsel %vm1606, %v1126, 0
        %v1623 = vsel %vm1606, %v1131, 0
        %v1626 = vsel %vm1606, %v1136, 0
        %v1629 = vsel %vm1606, %v1141, 0
        %v1632 = vsel %vm1606, %v1146, 0
        %v1635 = vsel %vm1606, %v1151, 0
        %v1638 = vsel %vm1606, %v1156, 0
        %v1641 = vsel %vm1606, %v1161, 0
        %v1644 = vsel %vm1606, %v1166, 0
        %v1647 = vsel %vm1606, %v1171, 0
        %v1650 = vsel %vm1606, %v1176, 0
        %v1653 = vsel %vm1606, %v1181, 0
        %v1656 = vsel %vm1606, %v1186, 0
        %v1659 = vsel %vm1606, %v1191, 0
        %v1662 = vsel %vm1606, %v1196, 0
        %v1665 = vsel %vm1606, %v1201, 0
        %v1668 = vsel %vm1606, %v1206, 0
        %v1671 = vsel %vm1606, %v1211, 0
        %v1674 = vsel %vm1606, %v1216, 0
        %v1677 = vsel %vm1606, %v1221, 0
        %v1680 = vsel %vm1606, %v1226, 0
        %v1683 = vsel %vm1606, %v1231, 0
        %v1686 = vsel %vm1606, %v1236, 0
        %v1689 = vsel %vm1606, %v1241, 0
        %v1692 = vsel %vm1606, %v1246, 0
        %v1695 = vsel %vm1606, %v1251, 0
        %v1698 = vsel %vm1606, %v1256, 0
        %v1701 = vsel %vm1606, %v1261, 0
        %1703 = vmatprep.subr.bf16.mxu0 0
        %1704 = vmatpush1.bf16.msra.mxu0 %v1541
        %1705 = vmatprep.subr.bf16.mxu0 0
        %1706 = vmatpush1.bf16.msra.mxu0 %v1540
        %1707 = vmatprep.subr.bf16.mxu0 0
        %1708 = vmatpush1.bf16.msra.mxu0 %v1539
        %1709 = vmatprep.subr.bf16.mxu0 0
        %1710 = vmatpush1.bf16.msra.mxu0 %v1538
        %1711 = vmatprep.subr.bf16.mxu0 0
        %1712 = vmatpush1.bf16.msra.mxu0 %v1537
        %1713 = vmatprep.subr.bf16.mxu0 0
        %1714 = vmatpush1.bf16.msra.mxu0 %v1536
        %1715 = vmatprep.subr.bf16.mxu0 0
        %1716 = vmatpush1.bf16.msra.mxu0 %v1535
        %1717 = vmatprep.subr.bf16.mxu0 0
        %1718 = vmatpush1.bf16.msra.mxu0 %v1534
        %1719 = vmatprep.subr.bf16.mxu0 0
        %1720 = vmatpush2.bf16.msra.mxu0 %v1549
        %1721 = vmatprep.subr.bf16.mxu0 0
        %1722 = vmatpush2.bf16.msra.mxu0 %v1548
        %1723 = vmatprep.subr.bf16.mxu0 0
        %1724 = vmatpush2.bf16.msra.mxu0 %v1547
        %1725 = vmatprep.subr.bf16.mxu0 0
        %1726 = vmatpush2.bf16.msra.mxu0 %v1546
        %1727 = vmatprep.subr.bf16.mxu0 0
        %1728 = vmatpush2.bf16.msra.mxu0 %v1545
        %1729 = vmatprep.subr.bf16.mxu0 0
        %1730 = vmatpush2.bf16.msra.mxu0 %v1544
        %1731 = vmatprep.subr.bf16.mxu0 0
        %1732 = vmatpush2.bf16.msra.mxu0 %v1543
        %1733 = vmatprep.subr.bf16.mxu0 0
        %1734 = vmatpush2.bf16.msra.mxu0 %v1542
        %1735 = vmatprep.mubr.bf16.mxu0 %v1103
        %1736 = vmatmul.mubr.bf16.gmra.mxu0 %v1102
        %v1737 = vpop.f32.mrf.mxu0
        %v1738 = vadd.f32 0.0, %v1737
        %v1739 = vpop.f32.mrf.mxu0
        %v1740 = vpop.f32.mrf.mxu0
        %v1741 = vadd.f32 0.0, %v1740
        %v1742 = vpop.f32.mrf.mxu0
        %1743 = vmatprep.mubr.bf16.mxu0 %v1108
        %1744 = vmatmul.mubr.bf16.gmra.mxu0 %v1107
        %v1745 = vpop.f32.mrf.mxu0
        %v1746 = vadd.f32 0.0, %v1745
        %v1747 = vpop.f32.mrf.mxu0
        %v1748 = vpop.f32.mrf.mxu0
        %v1749 = vadd.f32 0.0, %v1748
        %v1750 = vpop.f32.mrf.mxu0
        %1751 = vmatprep.mubr.bf16.mxu0 %v1113
        %1752 = vmatmul.mubr.bf16.gmra.mxu0 %v1112
        %v1753 = vpop.f32.mrf.mxu0
        %v1754 = vadd.f32 0.0, %v1753
        %v1755 = vpop.f32.mrf.mxu0
        %v1756 = vpop.f32.mrf.mxu0
        %v1757 = vadd.f32 0.0, %v1756
        %v1758 = vpop.f32.mrf.mxu0
        %1759 = vmatprep.mubr.bf16.mxu0 %v1118
        %1760 = vmatmul.mubr.bf16.gmra.mxu0 %v1117
        %v1761 = vpop.f32.mrf.mxu0
        %v1762 = vadd.f32 0.0, %v1761
        %v1763 = vpop.f32.mrf.mxu0
        %v1764 = vpop.f32.mrf.mxu0
        %v1765 = vadd.f32 0.0, %v1764
        %v1766 = vpop.f32.mrf.mxu0
        %1767 = vmatprep.mubr.bf16.mxu0 %v1123
        %1768 = vmatmul.mubr.bf16.gmra.mxu0 %v1122
        %v1769 = vpop.f32.mrf.mxu0
        %v1770 = vadd.f32 0.0, %v1769
        %v1771 = vpop.f32.mrf.mxu0
        %v1772 = vpop.f32.mrf.mxu0
        %v1773 = vadd.f32 0.0, %v1772
        %v1774 = vpop.f32.mrf.mxu0
        %1775 = vmatprep.mubr.bf16.mxu0 %v1128
        %1776 = vmatmul.mubr.bf16.gmra.mxu0 %v1127
        %v1777 = vpop.f32.mrf.mxu0
        %v1778 = vadd.f32 0.0, %v1777
        %v1779 = vpop.f32.mrf.mxu0
        %v1780 = vpop.f32.mrf.mxu0
        %v1781 = vadd.f32 0.0, %v1780
        %v1782 = vpop.f32.mrf.mxu0
        %1783 = vmatprep.mubr.bf16.mxu0 %v1133
        %1784 = vmatmul.mubr.bf16.gmra.mxu0 %v1132
        %v1785 = vpop.f32.mrf.mxu0
        %v1786 = vadd.f32 0.0, %v1785
        %v1787 = vpop.f32.mrf.mxu0
        %v1788 = vpop.f32.mrf.mxu0
        %v1789 = vadd.f32 0.0, %v1788
        %v1790 = vpop.f32.mrf.mxu0
        %1791 = vmatprep.mubr.bf16.mxu0 %v1138
        %1792 = vmatmul.mubr.bf16.gmra.mxu0 %v1137
        %v1793 = vpop.f32.mrf.mxu0
        %v1794 = vadd.f32 0.0, %v1793
        %v1795 = vpop.f32.mrf.mxu0
        %v1796 = vpop.f32.mrf.mxu0
        %v1797 = vadd.f32 0.0, %v1796
        %v1798 = vpop.f32.mrf.mxu0
        %1799 = vmatprep.mubr.bf16.mxu0 %v1143
        %1800 = vmatmul.mubr.bf16.gmra.mxu0 %v1142
        %v1801 = vpop.f32.mrf.mxu0
        %v1802 = vadd.f32 0.0, %v1801
        %v1803 = vpop.f32.mrf.mxu0
        %v1804 = vpop.f32.mrf.mxu0
        %v1805 = vadd.f32 0.0, %v1804
        %v1806 = vpop.f32.mrf.mxu0
        %1807 = vmatprep.mubr.bf16.mxu0 %v1148
        %1808 = vmatmul.mubr.bf16.gmra.mxu0 %v1147
        %v1809 = vpop.f32.mrf.mxu0
        %v1810 = vadd.f32 0.0, %v1809
        %v1811 = vpop.f32.mrf.mxu0
        %v1812 = vpop.f32.mrf.mxu0
        %v1813 = vadd.f32 0.0, %v1812
        %v1814 = vpop.f32.mrf.mxu0
        %1815 = vmatprep.mubr.bf16.mxu0 %v1153
        %1816 = vmatmul.mubr.bf16.gmra.mxu0 %v1152
        %v1817 = vpop.f32.mrf.mxu0
        %v1818 = vadd.f32 0.0, %v1817
        %v1819 = vpop.f32.mrf.mxu0
        %v1820 = vpop.f32.mrf.mxu0
        %v1821 = vadd.f32 0.0, %v1820
        %v1822 = vpop.f32.mrf.mxu0
        %1823 = vmatprep.mubr.bf16.mxu0 %v1158
        %1824 = vmatmul.mubr.bf16.gmra.mxu0 %v1157
        %v1825 = vpop.f32.mrf.mxu0
        %v1826 = vadd.f32 0.0, %v1825
        %v1827 = vpop.f32.mrf.mxu0
        %v1828 = vpop.f32.mrf.mxu0
        %v1829 = vadd.f32 0.0, %v1828
        %v1830 = vpop.f32.mrf.mxu0
        %1831 = vmatprep.mubr.bf16.mxu0 %v1163
        %1832 = vmatmul.mubr.bf16.gmra.mxu0 %v1162
        %v1833 = vpop.f32.mrf.mxu0
        %v1834 = vadd.f32 0.0, %v1833
        %v1835 = vpop.f32.mrf.mxu0
        %v1836 = vpop.f32.mrf.mxu0
        %v1837 = vadd.f32 0.0, %v1836
        %v1838 = vpop.f32.mrf.mxu0
        %1839 = vmatprep.mubr.bf16.mxu0 %v1168
        %1840 = vmatmul.mubr.bf16.gmra.mxu0 %v1167
        %v1841 = vpop.f32.mrf.mxu0
        %v1842 = vadd.f32 0.0, %v1841
        %v1843 = vpop.f32.mrf.mxu0
        %v1844 = vpop.f32.mrf.mxu0
        %v1845 = vadd.f32 0.0, %v1844
        %v1846 = vpop.f32.mrf.mxu0
        %1847 = vmatprep.mubr.bf16.mxu0 %v1173
        %1848 = vmatmul.mubr.bf16.gmra.mxu0 %v1172
        %v1849 = vpop.f32.mrf.mxu0
        %v1850 = vadd.f32 0.0, %v1849
        %v1851 = vpop.f32.mrf.mxu0
        %v1852 = vpop.f32.mrf.mxu0
        %v1853 = vadd.f32 0.0, %v1852
        %v1854 = vpop.f32.mrf.mxu0
        %1855 = vmatprep.mubr.bf16.mxu0 %v1178
        %1856 = vmatmul.mubr.bf16.gmra.mxu0 %v1177
        %v1857 = vpop.f32.mrf.mxu0
        %v1858 = vadd.f32 0.0, %v1857
        %v1859 = vpop.f32.mrf.mxu0
        %v1860 = vpop.f32.mrf.mxu0
        %v1861 = vadd.f32 0.0, %v1860
        %v1862 = vpop.f32.mrf.mxu0
        %1863 = vmatprep.mubr.bf16.mxu0 %v1183
        %1864 = vmatmul.mubr.bf16.gmra.mxu0 %v1182
        %v1865 = vpop.f32.mrf.mxu0
        %v1866 = vadd.f32 0.0, %v1865
        %v1867 = vpop.f32.mrf.mxu0
        %v1868 = vpop.f32.mrf.mxu0
        %v1869 = vadd.f32 0.0, %v1868
        %v1870 = vpop.f32.mrf.mxu0
        %1871 = vmatprep.mubr.bf16.mxu0 %v1188
        %1872 = vmatmul.mubr.bf16.gmra.mxu0 %v1187
        %v1873 = vpop.f32.mrf.mxu0
        %v1874 = vadd.f32 0.0, %v1873
        %v1875 = vpop.f32.mrf.mxu0
        %v1876 = vpop.f32.mrf.mxu0
        %v1877 = vadd.f32 0.0, %v1876
        %v1878 = vpop.f32.mrf.mxu0
        %1879 = vmatprep.mubr.bf16.mxu0 %v1193
        %1880 = vmatmul.mubr.bf16.gmra.mxu0 %v1192
        %v1881 = vpop.f32.mrf.mxu0
        %v1882 = vadd.f32 0.0, %v1881
        %v1883 = vpop.f32.mrf.mxu0
        %v1884 = vpop.f32.mrf.mxu0
        %v1885 = vadd.f32 0.0, %v1884
        %v1886 = vpop.f32.mrf.mxu0
        %1887 = vmatprep.mubr.bf16.mxu0 %v1198
        %1888 = vmatmul.mubr.bf16.gmra.mxu0 %v1197
        %v1889 = vpop.f32.mrf.mxu0
        %v1890 = vadd.f32 0.0, %v1889
        %v1891 = vpop.f32.mrf.mxu0
        %v1892 = vpop.f32.mrf.mxu0
        %v1893 = vadd.f32 0.0, %v1892
        %v1894 = vpop.f32.mrf.mxu0
        %1895 = vmatprep.mubr.bf16.mxu0 %v1203
        %1896 = vmatmul.mubr.bf16.gmra.mxu0 %v1202
        %v1897 = vpop.f32.mrf.mxu0
        %v1898 = vadd.f32 0.0, %v1897
        %v1899 = vpop.f32.mrf.mxu0
        %v1900 = vpop.f32.mrf.mxu0
        %v1901 = vadd.f32 0.0, %v1900
        %v1902 = vpop.f32.mrf.mxu0
        %1903 = vmatprep.mubr.bf16.mxu0 %v1208
        %1904 = vmatmul.mubr.bf16.gmra.mxu0 %v1207
        %v1905 = vpop.f32.mrf.mxu0
        %v1906 = vadd.f32 0.0, %v1905
        %v1907 = vpop.f32.mrf.mxu0
        %v1908 = vpop.f32.mrf.mxu0
        %v1909 = vadd.f32 0.0, %v1908
        %v1910 = vpop.f32.mrf.mxu0
        %1911 = vmatprep.mubr.bf16.mxu0 %v1213
        %1912 = vmatmul.mubr.bf16.gmra.mxu0 %v1212
        %v1913 = vpop.f32.mrf.mxu0
        %v1914 = vadd.f32 0.0, %v1913
        %v1915 = vpop.f32.mrf.mxu0
        %v1916 = vpop.f32.mrf.mxu0
        %v1917 = vadd.f32 0.0, %v1916
        %v1918 = vpop.f32.mrf.mxu0
        %1919 = vmatprep.mubr.bf16.mxu0 %v1218
        %1920 = vmatmul.mubr.bf16.gmra.mxu0 %v1217
        %v1921 = vpop.f32.mrf.mxu0
        %v1922 = vadd.f32 0.0, %v1921
        %v1923 = vpop.f32.mrf.mxu0
        %v1924 = vpop.f32.mrf.mxu0
        %v1925 = vadd.f32 0.0, %v1924
        %v1926 = vpop.f32.mrf.mxu0
        %1927 = vmatprep.mubr.bf16.mxu0 %v1223
        %1928 = vmatmul.mubr.bf16.gmra.mxu0 %v1222
        %v1929 = vpop.f32.mrf.mxu0
        %v1930 = vadd.f32 0.0, %v1929
        %v1931 = vpop.f32.mrf.mxu0
        %v1932 = vpop.f32.mrf.mxu0
        %v1933 = vadd.f32 0.0, %v1932
        %v1934 = vpop.f32.mrf.mxu0
        %1935 = vmatprep.mubr.bf16.mxu0 %v1228
        %1936 = vmatmul.mubr.bf16.gmra.mxu0 %v1227
        %v1937 = vpop.f32.mrf.mxu0
        %v1938 = vadd.f32 0.0, %v1937
        %v1939 = vpop.f32.mrf.mxu0
        %v1940 = vpop.f32.mrf.mxu0
        %v1941 = vadd.f32 0.0, %v1940
        %v1942 = vpop.f32.mrf.mxu0
        %1943 = vmatprep.mubr.bf16.mxu0 %v1233
        %1944 = vmatmul.mubr.bf16.gmra.mxu0 %v1232
        %v1945 = vpop.f32.mrf.mxu0
        %v1946 = vadd.f32 0.0, %v1945
        %v1947 = vpop.f32.mrf.mxu0
        %v1948 = vpop.f32.mrf.mxu0
        %v1949 = vadd.f32 0.0, %v1948
        %v1950 = vpop.f32.mrf.mxu0
        %1951 = vmatprep.mubr.bf16.mxu0 %v1238
        %1952 = vmatmul.mubr.bf16.gmra.mxu0 %v1237
        %v1953 = vpop.f32.mrf.mxu0
        %v1954 = vadd.f32 0.0, %v1953
        %v1955 = vpop.f32.mrf.mxu0
        %v1956 = vpop.f32.mrf.mxu0
        %v1957 = vadd.f32 0.0, %v1956
        %v1958 = vpop.f32.mrf.mxu0
        %1959 = vmatprep.mubr.bf16.mxu0 %v1243
        %1960 = vmatmul.mubr.bf16.gmra.mxu0 %v1242
        %v1961 = vpop.f32.mrf.mxu0
        %v1962 = vadd.f32 0.0, %v1961
        %v1963 = vpop.f32.mrf.mxu0
        %v1964 = vpop.f32.mrf.mxu0
        %v1965 = vadd.f32 0.0, %v1964
        %v1966 = vpop.f32.mrf.mxu0
        %1967 = vmatprep.mubr.bf16.mxu0 %v1248
        %1968 = vmatmul.mubr.bf16.gmra.mxu0 %v1247
        %v1969 = vpop.f32.mrf.mxu0
        %v1970 = vadd.f32 0.0, %v1969
        %v1971 = vpop.f32.mrf.mxu0
        %v1972 = vpop.f32.mrf.mxu0
        %v1973 = vadd.f32 0.0, %v1972
        %v1974 = vpop.f32.mrf.mxu0
        %1975 = vmatprep.mubr.bf16.mxu0 %v1253
        %1976 = vmatmul.mubr.bf16.gmra.mxu0 %v1252
        %v1977 = vpop.f32.mrf.mxu0
        %v1978 = vadd.f32 0.0, %v1977
        %v1979 = vpop.f32.mrf.mxu0
        %v1980 = vpop.f32.mrf.mxu0
        %v1981 = vadd.f32 0.0, %v1980
        %v1982 = vpop.f32.mrf.mxu0
        %1983 = vmatprep.mubr.bf16.mxu0 %v1258
        %1984 = vmatmul.mubr.bf16.gmra.mxu0 %v1257
        %v1985 = vpop.f32.mrf.mxu0
        %v1986 = vadd.f32 0.0, %v1985
        %v1987 = vpop.f32.mrf.mxu0
        %v1988 = vpop.f32.mrf.mxu0
        %v1989 = vadd.f32 0.0, %v1988
        %v1990 = vpop.f32.mrf.mxu0
        %1991 = vdwg.mxu0
        %1992 = vmatprep.subr.bf16.mxu0 0
        %1993 = vmatpush1.bf16.msra.mxu0 %v1557
        %1994 = vmatprep.subr.bf16.mxu0 0
        %1995 = vmatpush1.bf16.msra.mxu0 %v1556
        %1996 = vmatprep.subr.bf16.mxu0 0
        %1997 = vmatpush1.bf16.msra.mxu0 %v1555
        %1998 = vmatprep.subr.bf16.mxu0 0
        %1999 = vmatpush1.bf16.msra.mxu0 %v1554
        %2000 = vmatprep.subr.bf16.mxu0 0
        %2001 = vmatpush1.bf16.msra.mxu0 %v1553
        %2002 = vmatprep.subr.bf16.mxu0 0
        %2003 = vmatpush1.bf16.msra.mxu0 %v1552
        %2004 = vmatprep.subr.bf16.mxu0 0
        %2005 = vmatpush1.bf16.msra.mxu0 %v1551
        %2006 = vmatprep.subr.bf16.mxu0 0
        %2007 = vmatpush1.bf16.msra.mxu0 %v1550
        %2008 = vmatprep.subr.bf16.mxu0 0
        %2009 = vmatpush2.bf16.msra.mxu0 %v1565
        %2010 = vmatprep.subr.bf16.mxu0 0
        %2011 = vmatpush2.bf16.msra.mxu0 %v1564
        %2012 = vmatprep.subr.bf16.mxu0 0
        %2013 = vmatpush2.bf16.msra.mxu0 %v1563
        %2014 = vmatprep.subr.bf16.mxu0 0
        %2015 = vmatpush2.bf16.msra.mxu0 %v1562
        %2016 = vmatprep.subr.bf16.mxu0 0
        %2017 = vmatpush2.bf16.msra.mxu0 %v1561
        %2018 = vmatprep.subr.bf16.mxu0 0
        %2019 = vmatpush2.bf16.msra.mxu0 %v1560
        %2020 = vmatprep.subr.bf16.mxu0 0
        %2021 = vmatpush2.bf16.msra.mxu0 %v1559
        %2022 = vmatprep.subr.bf16.mxu0 0
        %2023 = vmatpush2.bf16.msra.mxu0 %v1558
        %2024 = vmatprep.mubr.bf16.mxu0 %v1105
        %2025 = vmatmul.mubr.bf16.gmra.mxu0 %v1104
        %v2026 = vpop.f32.mrf.mxu0
        %v2027 = vadd.f32 %v1738, %v2026
        %v2028 = vpop.f32.mrf.mxu0
        %v2029 = vpop.f32.mrf.mxu0
        %v2030 = vadd.f32 %v1741, %v2029
        %v2031 = vpop.f32.mrf.mxu0
        %2032 = vmatprep.mubr.bf16.mxu0 %v1110
        %2033 = vmatmul.mubr.bf16.gmra.mxu0 %v1109
        %v2034 = vpop.f32.mrf.mxu0
        %v2035 = vadd.f32 %v1746, %v2034
        %v2036 = vpop.f32.mrf.mxu0
        %v2037 = vpop.f32.mrf.mxu0
        %v2038 = vadd.f32 %v1749, %v2037
        %v2039 = vpop.f32.mrf.mxu0
        %2040 = vmatprep.mubr.bf16.mxu0 %v1115
        %2041 = vmatmul.mubr.bf16.gmra.mxu0 %v1114
        %v2042 = vpop.f32.mrf.mxu0
        %v2043 = vadd.f32 %v1754, %v2042
        %v2044 = vpop.f32.mrf.mxu0
        %v2045 = vpop.f32.mrf.mxu0
        %v2046 = vadd.f32 %v1757, %v2045
        %v2047 = vpop.f32.mrf.mxu0
        %2048 = vmatprep.mubr.bf16.mxu0 %v1120
        %2049 = vmatmul.mubr.bf16.gmra.mxu0 %v1119
        %v2050 = vpop.f32.mrf.mxu0
        %v2051 = vadd.f32 %v1762, %v2050
        %v2052 = vpop.f32.mrf.mxu0
        %v2053 = vpop.f32.mrf.mxu0
        %v2054 = vadd.f32 %v1765, %v2053
        %v2055 = vpop.f32.mrf.mxu0
        %2056 = vmatprep.mubr.bf16.mxu0 %v1125
        %2057 = vmatmul.mubr.bf16.gmra.mxu0 %v1124
        %v2058 = vpop.f32.mrf.mxu0
        %v2059 = vadd.f32 %v1770, %v2058
        %v2060 = vpop.f32.mrf.mxu0
        %v2061 = vpop.f32.mrf.mxu0
        %v2062 = vadd.f32 %v1773, %v2061
        %v2063 = vpop.f32.mrf.mxu0
        %2064 = vmatprep.mubr.bf16.mxu0 %v1130
        %2065 = vmatmul.mubr.bf16.gmra.mxu0 %v1129
        %v2066 = vpop.f32.mrf.mxu0
        %v2067 = vadd.f32 %v1778, %v2066
        %v2068 = vpop.f32.mrf.mxu0
        %v2069 = vpop.f32.mrf.mxu0
        %v2070 = vadd.f32 %v1781, %v2069
        %v2071 = vpop.f32.mrf.mxu0
        %2072 = vmatprep.mubr.bf16.mxu0 %v1135
        %2073 = vmatmul.mubr.bf16.gmra.mxu0 %v1134
        %v2074 = vpop.f32.mrf.mxu0
        %v2075 = vadd.f32 %v1786, %v2074
        %v2076 = vpop.f32.mrf.mxu0
        %v2077 = vpop.f32.mrf.mxu0
        %v2078 = vadd.f32 %v1789, %v2077
        %v2079 = vpop.f32.mrf.mxu0
        %2080 = vmatprep.mubr.bf16.mxu0 %v1140
        %2081 = vmatmul.mubr.bf16.gmra.mxu0 %v1139
        %v2082 = vpop.f32.mrf.mxu0
        %v2083 = vadd.f32 %v1794, %v2082
        %v2084 = vpop.f32.mrf.mxu0
        %v2085 = vpop.f32.mrf.mxu0
        %v2086 = vadd.f32 %v1797, %v2085
        %v2087 = vpop.f32.mrf.mxu0
        %2088 = vmatprep.mubr.bf16.mxu0 %v1145
        %2089 = vmatmul.mubr.bf16.gmra.mxu0 %v1144
        %v2090 = vpop.f32.mrf.mxu0
        %v2091 = vadd.f32 %v1802, %v2090
        %v2092 = vpop.f32.mrf.mxu0
        %v2093 = vpop.f32.mrf.mxu0
        %v2094 = vadd.f32 %v1805, %v2093
        %v2095 = vpop.f32.mrf.mxu0
        %2096 = vmatprep.mubr.bf16.mxu0 %v1150
        %2097 = vmatmul.mubr.bf16.gmra.mxu0 %v1149
        %v2098 = vpop.f32.mrf.mxu0
        %v2099 = vadd.f32 %v1810, %v2098
        %v2100 = vpop.f32.mrf.mxu0
        %v2101 = vpop.f32.mrf.mxu0
        %v2102 = vadd.f32 %v1813, %v2101
        %v2103 = vpop.f32.mrf.mxu0
        %2104 = vmatprep.mubr.bf16.mxu0 %v1155
        %2105 = vmatmul.mubr.bf16.gmra.mxu0 %v1154
        %v2106 = vpop.f32.mrf.mxu0
        %v2107 = vadd.f32 %v1818, %v2106
        %v2108 = vpop.f32.mrf.mxu0
        %v2109 = vpop.f32.mrf.mxu0
        %v2110 = vadd.f32 %v1821, %v2109
        %v2111 = vpop.f32.mrf.mxu0
        %2112 = vmatprep.mubr.bf16.mxu0 %v1160
        %2113 = vmatmul.mubr.bf16.gmra.mxu0 %v1159
        %v2114 = vpop.f32.mrf.mxu0
        %v2115 = vadd.f32 %v1826, %v2114
        %v2116 = vpop.f32.mrf.mxu0
        %v2117 = vpop.f32.mrf.mxu0
        %v2118 = vadd.f32 %v1829, %v2117
        %v2119 = vpop.f32.mrf.mxu0
        %2120 = vmatprep.mubr.bf16.mxu0 %v1165
        %2121 = vmatmul.mubr.bf16.gmra.mxu0 %v1164
        %v2122 = vpop.f32.mrf.mxu0
        %v2123 = vadd.f32 %v1834, %v2122
        %v2124 = vpop.f32.mrf.mxu0
        %v2125 = vpop.f32.mrf.mxu0
        %v2126 = vadd.f32 %v1837, %v2125
        %v2127 = vpop.f32.mrf.mxu0
        %2128 = vmatprep.mubr.bf16.mxu0 %v1170
        %2129 = vmatmul.mubr.bf16.gmra.mxu0 %v1169
        %v2130 = vpop.f32.mrf.mxu0
        %v2131 = vadd.f32 %v1842, %v2130
        %v2132 = vpop.f32.mrf.mxu0
        %v2133 = vpop.f32.mrf.mxu0
        %v2134 = vadd.f32 %v1845, %v2133
        %v2135 = vpop.f32.mrf.mxu0
        %2136 = vmatprep.mubr.bf16.mxu0 %v1175
        %2137 = vmatmul.mubr.bf16.gmra.mxu0 %v1174
        %v2138 = vpop.f32.mrf.mxu0
        %v2139 = vadd.f32 %v1850, %v2138
        %v2140 = vpop.f32.mrf.mxu0
        %v2141 = vpop.f32.mrf.mxu0
        %v2142 = vadd.f32 %v1853, %v2141
        %v2143 = vpop.f32.mrf.mxu0
        %2144 = vmatprep.mubr.bf16.mxu0 %v1180
        %2145 = vmatmul.mubr.bf16.gmra.mxu0 %v1179
        %v2146 = vpop.f32.mrf.mxu0
        %v2147 = vadd.f32 %v1858, %v2146
        %v2148 = vpop.f32.mrf.mxu0
        %v2149 = vpop.f32.mrf.mxu0
        %v2150 = vadd.f32 %v1861, %v2149
        %v2151 = vpop.f32.mrf.mxu0
        %2152 = vmatprep.mubr.bf16.mxu0 %v1185
        %2153 = vmatmul.mubr.bf16.gmra.mxu0 %v1184
        %v2154 = vpop.f32.mrf.mxu0
        %v2155 = vadd.f32 %v1866, %v2154
        %v2156 = vpop.f32.mrf.mxu0
        %v2157 = vpop.f32.mrf.mxu0
        %v2158 = vadd.f32 %v1869, %v2157
        %v2159 = vpop.f32.mrf.mxu0
        %2160 = vmatprep.mubr.bf16.mxu0 %v1190
        %2161 = vmatmul.mubr.bf16.gmra.mxu0 %v1189
        %v2162 = vpop.f32.mrf.mxu0
        %v2163 = vadd.f32 %v1874, %v2162
        %v2164 = vpop.f32.mrf.mxu0
        %v2165 = vpop.f32.mrf.mxu0
        %v2166 = vadd.f32 %v1877, %v2165
        %v2167 = vpop.f32.mrf.mxu0
        %2168 = vmatprep.mubr.bf16.mxu0 %v1195
        %2169 = vmatmul.mubr.bf16.gmra.mxu0 %v1194
        %v2170 = vpop.f32.mrf.mxu0
        %v2171 = vadd.f32 %v1882, %v2170
        %v2172 = vpop.f32.mrf.mxu0
        %v2173 = vpop.f32.mrf.mxu0
        %v2174 = vadd.f32 %v1885, %v2173
        %v2175 = vpop.f32.mrf.mxu0
        %2176 = vmatprep.mubr.bf16.mxu0 %v1200
        %2177 = vmatmul.mubr.bf16.gmra.mxu0 %v1199
        %v2178 = vpop.f32.mrf.mxu0
        %v2179 = vadd.f32 %v1890, %v2178
        %v2180 = vpop.f32.mrf.mxu0
        %v2181 = vpop.f32.mrf.mxu0
        %v2182 = vadd.f32 %v1893, %v2181
        %v2183 = vpop.f32.mrf.mxu0
        %2184 = vmatprep.mubr.bf16.mxu0 %v1205
        %2185 = vmatmul.mubr.bf16.gmra.mxu0 %v1204
        %v2186 = vpop.f32.mrf.mxu0
        %v2187 = vadd.f32 %v1898, %v2186
        %v2188 = vpop.f32.mrf.mxu0
        %v2189 = vpop.f32.mrf.mxu0
        %v2190 = vadd.f32 %v1901, %v2189
        %v2191 = vpop.f32.mrf.mxu0
        %2192 = vmatprep.mubr.bf16.mxu0 %v1210
        %2193 = vmatmul.mubr.bf16.gmra.mxu0 %v1209
        %v2194 = vpop.f32.mrf.mxu0
        %v2195 = vadd.f32 %v1906, %v2194
        %v2196 = vpop.f32.mrf.mxu0
        %v2197 = vpop.f32.mrf.mxu0
        %v2198 = vadd.f32 %v1909, %v2197
        %v2199 = vpop.f32.mrf.mxu0
        %2200 = vmatprep.mubr.bf16.mxu0 %v1215
        %2201 = vmatmul.mubr.bf16.gmra.mxu0 %v1214
        %v2202 = vpop.f32.mrf.mxu0
        %v2203 = vadd.f32 %v1914, %v2202
        %v2204 = vpop.f32.mrf.mxu0
        %v2205 = vpop.f32.mrf.mxu0
        %v2206 = vadd.f32 %v1917, %v2205
        %v2207 = vpop.f32.mrf.mxu0
        %2208 = vmatprep.mubr.bf16.mxu0 %v1220
        %2209 = vmatmul.mubr.bf16.gmra.mxu0 %v1219
        %v2210 = vpop.f32.mrf.mxu0
        %v2211 = vadd.f32 %v1922, %v2210
        %v2212 = vpop.f32.mrf.mxu0
        %v2213 = vpop.f32.mrf.mxu0
        %v2214 = vadd.f32 %v1925, %v2213
        %v2215 = vpop.f32.mrf.mxu0
        %2216 = vmatprep.mubr.bf16.mxu0 %v1225
        %2217 = vmatmul.mubr.bf16.gmra.mxu0 %v1224
        %v2218 = vpop.f32.mrf.mxu0
        %v2219 = vadd.f32 %v1930, %v2218
        %v2220 = vpop.f32.mrf.mxu0
        %v2221 = vpop.f32.mrf.mxu0
        %v2222 = vadd.f32 %v1933, %v2221
        %v2223 = vpop.f32.mrf.mxu0
        %2224 = vmatprep.mubr.bf16.mxu0 %v1230
        %2225 = vmatmul.mubr.bf16.gmra.mxu0 %v1229
        %v2226 = vpop.f32.mrf.mxu0
        %v2227 = vadd.f32 %v1938, %v2226
        %v2228 = vpop.f32.mrf.mxu0
        %v2229 = vpop.f32.mrf.mxu0
        %v2230 = vadd.f32 %v1941, %v2229
        %v2231 = vpop.f32.mrf.mxu0
        %2232 = vmatprep.mubr.bf16.mxu0 %v1235
        %2233 = vmatmul.mubr.bf16.gmra.mxu0 %v1234
        %v2234 = vpop.f32.mrf.mxu0
        %v2235 = vadd.f32 %v1946, %v2234
        %v2236 = vpop.f32.mrf.mxu0
        %v2237 = vpop.f32.mrf.mxu0
        %v2238 = vadd.f32 %v1949, %v2237
        %v2239 = vpop.f32.mrf.mxu0
        %2240 = vmatprep.mubr.bf16.mxu0 %v1240
        %2241 = vmatmul.mubr.bf16.gmra.mxu0 %v1239
        %v2242 = vpop.f32.mrf.mxu0
        %v2243 = vadd.f32 %v1954, %v2242
        %v2244 = vpop.f32.mrf.mxu0
        %v2245 = vpop.f32.mrf.mxu0
        %v2246 = vadd.f32 %v1957, %v2245
        %v2247 = vpop.f32.mrf.mxu0
        %2248 = vmatprep.mubr.bf16.mxu0 %v1245
        %2249 = vmatmul.mubr.bf16.gmra.mxu0 %v1244
        %v2250 = vpop.f32.mrf.mxu0
        %v2251 = vadd.f32 %v1962, %v2250
        %v2252 = vpop.f32.mrf.mxu0
        %v2253 = vpop.f32.mrf.mxu0
        %v2254 = vadd.f32 %v1965, %v2253
        %v2255 = vpop.f32.mrf.mxu0
        %2256 = vmatprep.mubr.bf16.mxu0 %v1250
        %2257 = vmatmul.mubr.bf16.gmra.mxu0 %v1249
        %v2258 = vpop.f32.mrf.mxu0
        %v2259 = vadd.f32 %v1970, %v2258
        %v2260 = vpop.f32.mrf.mxu0
        %v2261 = vpop.f32.mrf.mxu0
        %v2262 = vadd.f32 %v1973, %v2261
        %v2263 = vpop.f32.mrf.mxu0
        %2264 = vmatprep.mubr.bf16.mxu0 %v1255
        %2265 = vmatmul.mubr.bf16.gmra.mxu0 %v1254
        %v2266 = vpop.f32.mrf.mxu0
        %v2267 = vadd.f32 %v1978, %v2266
        %v2268 = vpop.f32.mrf.mxu0
        %v2269 = vpop.f32.mrf.mxu0
        %v2270 = vadd.f32 %v1981, %v2269
        %v2271 = vpop.f32.mrf.mxu0
        %2272 = vmatprep.mubr.bf16.mxu0 %v1260
        %2273 = vmatmul.mubr.bf16.gmra.mxu0 %v1259
        %v2274 = vpop.f32.mrf.mxu0
        %v2275 = vadd.f32 %v1986, %v2274
        %v2276 = vpop.f32.mrf.mxu0
        %v2277 = vpop.f32.mrf.mxu0
        %v2278 = vadd.f32 %v1989, %v2277
        %v2279 = vpop.f32.mrf.mxu0
        %2280 = vdwg.mxu0
        %2281 = vmatprep.subr.bf16.mxu0 0
        %2282 = vmatpush1.bf16.msra.mxu0 0
        %2283 = vmatprep.subr.bf16.mxu0 0
        %2284 = vmatpush1.bf16.msra.mxu0 0
        %2285 = vmatprep.subr.bf16.mxu0 0
        %2286 = vmatpush1.bf16.msra.mxu0 0
        %2287 = vmatprep.subr.bf16.mxu0 0
        %2288 = vmatpush1.bf16.msra.mxu0 0
        %2289 = vmatprep.subr.bf16.mxu0 0
        %2290 = vmatpush1.bf16.msra.mxu0 %v1569
        %2291 = vmatprep.subr.bf16.mxu0 0
        %2292 = vmatpush1.bf16.msra.mxu0 %v1568
        %2293 = vmatprep.subr.bf16.mxu0 0
        %2294 = vmatpush1.bf16.msra.mxu0 %v1567
        %2295 = vmatprep.subr.bf16.mxu0 0
        %2296 = vmatpush1.bf16.msra.mxu0 %v1566
        %2297 = vmatprep.subr.bf16.mxu0 0
        %2298 = vmatpush2.bf16.msra.mxu0 0
        %2299 = vmatprep.subr.bf16.mxu0 0
        %2300 = vmatpush2.bf16.msra.mxu0 0
        %2301 = vmatprep.subr.bf16.mxu0 0
        %2302 = vmatpush2.bf16.msra.mxu0 0
        %2303 = vmatprep.subr.bf16.mxu0 0
        %2304 = vmatpush2.bf16.msra.mxu0 0
        %2305 = vmatprep.subr.bf16.mxu0 0
        %2306 = vmatpush2.bf16.msra.mxu0 0
        %2307 = vmatprep.subr.bf16.mxu0 0
        %2308 = vmatpush2.bf16.msra.mxu0 0
        %2309 = vmatprep.subr.bf16.mxu0 0
        %2310 = vmatpush2.bf16.msra.mxu0 0
        %2311 = vmatprep.subr.bf16.mxu0 0
        %2312 = vmatpush2.bf16.msra.mxu0 0
        %2313 = vmatprep.mubr.bf16.mxu0 0
        %2314 = vmatmul.mubr.bf16.gmra.mxu0 %v1608
        %v2315 = vpop.f32.mrf.mxu0
        %v2316 = vadd.f32 %v2027, %v2315
        %v2317 = vpop.f32.mrf.mxu0
        %v2318 = vpop.f32.mrf.mxu0
        %v2319 = vadd.f32 %v2030, %v2318
        %v2320 = vpop.f32.mrf.mxu0
        %2321 = vmatprep.mubr.bf16.mxu0 0
        %2322 = vmatmul.mubr.bf16.gmra.mxu0 %v1611
        %v2323 = vpop.f32.mrf.mxu0
        %v2324 = vadd.f32 %v2035, %v2323
        %v2325 = vpop.f32.mrf.mxu0
        %v2326 = vpop.f32.mrf.mxu0
        %v2327 = vadd.f32 %v2038, %v2326
        %v2328 = vpop.f32.mrf.mxu0
        %2329 = vmatprep.mubr.bf16.mxu0 0
        %2330 = vmatmul.mubr.bf16.gmra.mxu0 %v1614
        %v2331 = vpop.f32.mrf.mxu0
        %v2332 = vadd.f32 %v2043, %v2331
        %v2333 = vpop.f32.mrf.mxu0
        %v2334 = vpop.f32.mrf.mxu0
        %v2335 = vadd.f32 %v2046, %v2334
        %v2336 = vpop.f32.mrf.mxu0
        %2337 = vmatprep.mubr.bf16.mxu0 0
        %2338 = vmatmul.mubr.bf16.gmra.mxu0 %v1617
        %v2339 = vpop.f32.mrf.mxu0
        %v2340 = vadd.f32 %v2051, %v2339
        %v2341 = vpop.f32.mrf.mxu0
        %v2342 = vpop.f32.mrf.mxu0
        %v2343 = vadd.f32 %v2054, %v2342
        %v2344 = vpop.f32.mrf.mxu0
        %2345 = vmatprep.mubr.bf16.mxu0 0
        %2346 = vmatmul.mubr.bf16.gmra.mxu0 %v1620
        %v2347 = vpop.f32.mrf.mxu0
        %v2348 = vadd.f32 %v2059, %v2347
        %v2349 = vpop.f32.mrf.mxu0
        %v2350 = vpop.f32.mrf.mxu0
        %v2351 = vadd.f32 %v2062, %v2350
        %v2352 = vpop.f32.mrf.mxu0
        %2353 = vmatprep.mubr.bf16.mxu0 0
        %2354 = vmatmul.mubr.bf16.gmra.mxu0 %v1623
        %v2355 = vpop.f32.mrf.mxu0
        %v2356 = vadd.f32 %v2067, %v2355
        %v2357 = vpop.f32.mrf.mxu0
        %v2358 = vpop.f32.mrf.mxu0
        %v2359 = vadd.f32 %v2070, %v2358
        %v2360 = vpop.f32.mrf.mxu0
        %2361 = vmatprep.mubr.bf16.mxu0 0
        %2362 = vmatmul.mubr.bf16.gmra.mxu0 %v1626
        %v2363 = vpop.f32.mrf.mxu0
        %v2364 = vadd.f32 %v2075, %v2363
        %v2365 = vpop.f32.mrf.mxu0
        %v2366 = vpop.f32.mrf.mxu0
        %v2367 = vadd.f32 %v2078, %v2366
        %v2368 = vpop.f32.mrf.mxu0
        %2369 = vmatprep.mubr.bf16.mxu0 0
        %2370 = vmatmul.mubr.bf16.gmra.mxu0 %v1629
        %v2371 = vpop.f32.mrf.mxu0
        %v2372 = vadd.f32 %v2083, %v2371
        %v2373 = vpop.f32.mrf.mxu0
        %v2374 = vpop.f32.mrf.mxu0
        %v2375 = vadd.f32 %v2086, %v2374
        %v2376 = vpop.f32.mrf.mxu0
        %2377 = vmatprep.mubr.bf16.mxu0 0
        %2378 = vmatmul.mubr.bf16.gmra.mxu0 %v1632
        %v2379 = vpop.f32.mrf.mxu0
        %v2380 = vadd.f32 %v2091, %v2379
        %v2381 = vpop.f32.mrf.mxu0
        %v2382 = vpop.f32.mrf.mxu0
        %v2383 = vadd.f32 %v2094, %v2382
        %v2384 = vpop.f32.mrf.mxu0
        %2385 = vmatprep.mubr.bf16.mxu0 0
        %2386 = vmatmul.mubr.bf16.gmra.mxu0 %v1635
        %v2387 = vpop.f32.mrf.mxu0
        %v2388 = vadd.f32 %v2099, %v2387
        %v2389 = vpop.f32.mrf.mxu0
        %v2390 = vpop.f32.mrf.mxu0
        %v2391 = vadd.f32 %v2102, %v2390
        %v2392 = vpop.f32.mrf.mxu0
        %2393 = vmatprep.mubr.bf16.mxu0 0
        %2394 = vmatmul.mubr.bf16.gmra.mxu0 %v1638
        %v2395 = vpop.f32.mrf.mxu0
        %v2396 = vadd.f32 %v2107, %v2395
        %v2397 = vpop.f32.mrf.mxu0
        %v2398 = vpop.f32.mrf.mxu0
        %v2399 = vadd.f32 %v2110, %v2398
        %v2400 = vpop.f32.mrf.mxu0
        %2401 = vmatprep.mubr.bf16.mxu0 0
        %2402 = vmatmul.mubr.bf16.gmra.mxu0 %v1641
        %v2403 = vpop.f32.mrf.mxu0
        %v2404 = vadd.f32 %v2115, %v2403
        %v2405 = vpop.f32.mrf.mxu0
        %v2406 = vpop.f32.mrf.mxu0
        %v2407 = vadd.f32 %v2118, %v2406
        %v2408 = vpop.f32.mrf.mxu0
        %2409 = vmatprep.mubr.bf16.mxu0 0
        %2410 = vmatmul.mubr.bf16.gmra.mxu0 %v1644
        %v2411 = vpop.f32.mrf.mxu0
        %v2412 = vadd.f32 %v2123, %v2411
        %v2413 = vpop.f32.mrf.mxu0
        %v2414 = vpop.f32.mrf.mxu0
        %v2415 = vadd.f32 %v2126, %v2414
        %v2416 = vpop.f32.mrf.mxu0
        %2417 = vmatprep.mubr.bf16.mxu0 0
        %2418 = vmatmul.mubr.bf16.gmra.mxu0 %v1647
        %v2419 = vpop.f32.mrf.mxu0
        %v2420 = vadd.f32 %v2131, %v2419
        %v2421 = vpop.f32.mrf.mxu0
        %v2422 = vpop.f32.mrf.mxu0
        %v2423 = vadd.f32 %v2134, %v2422
        %v2424 = vpop.f32.mrf.mxu0
        %2425 = vmatprep.mubr.bf16.mxu0 0
        %2426 = vmatmul.mubr.bf16.gmra.mxu0 %v1650
        %v2427 = vpop.f32.mrf.mxu0
        %v2428 = vadd.f32 %v2139, %v2427
        %v2429 = vpop.f32.mrf.mxu0
        %v2430 = vpop.f32.mrf.mxu0
        %v2431 = vadd.f32 %v2142, %v2430
        %v2432 = vpop.f32.mrf.mxu0
        %2433 = vmatprep.mubr.bf16.mxu0 0
        %2434 = vmatmul.mubr.bf16.gmra.mxu0 %v1653
        %v2435 = vpop.f32.mrf.mxu0
        %v2436 = vadd.f32 %v2147, %v2435
        %v2437 = vpop.f32.mrf.mxu0
        %v2438 = vpop.f32.mrf.mxu0
        %v2439 = vadd.f32 %v2150, %v2438
        %v2440 = vpop.f32.mrf.mxu0
        %2441 = vmatprep.mubr.bf16.mxu0 0
        %2442 = vmatmul.mubr.bf16.gmra.mxu0 %v1656
        %v2443 = vpop.f32.mrf.mxu0
        %v2444 = vadd.f32 %v2155, %v2443
        %v2445 = vpop.f32.mrf.mxu0
        %v2446 = vpop.f32.mrf.mxu0
        %v2447 = vadd.f32 %v2158, %v2446
        %v2448 = vpop.f32.mrf.mxu0
        %2449 = vmatprep.mubr.bf16.mxu0 0
        %2450 = vmatmul.mubr.bf16.gmra.mxu0 %v1659
        %v2451 = vpop.f32.mrf.mxu0
        %v2452 = vadd.f32 %v2163, %v2451
        %v2453 = vpop.f32.mrf.mxu0
        %v2454 = vpop.f32.mrf.mxu0
        %v2455 = vadd.f32 %v2166, %v2454
        %v2456 = vpop.f32.mrf.mxu0
        %2457 = vmatprep.mubr.bf16.mxu0 0
        %2458 = vmatmul.mubr.bf16.gmra.mxu0 %v1662
        %v2459 = vpop.f32.mrf.mxu0
        %v2460 = vadd.f32 %v2171, %v2459
        %v2461 = vpop.f32.mrf.mxu0
        %v2462 = vpop.f32.mrf.mxu0
        %v2463 = vadd.f32 %v2174, %v2462
        %v2464 = vpop.f32.mrf.mxu0
        %2465 = vmatprep.mubr.bf16.mxu0 0
        %2466 = vmatmul.mubr.bf16.gmra.mxu0 %v1665
        %v2467 = vpop.f32.mrf.mxu0
        %v2468 = vadd.f32 %v2179, %v2467
        %v2469 = vpop.f32.mrf.mxu0
        %v2470 = vpop.f32.mrf.mxu0
        %v2471 = vadd.f32 %v2182, %v2470
        %v2472 = vpop.f32.mrf.mxu0
        %2473 = vmatprep.mubr.bf16.mxu0 0
        %2474 = vmatmul.mubr.bf16.gmra.mxu0 %v1668
        %v2475 = vpop.f32.mrf.mxu0
        %v2476 = vadd.f32 %v2187, %v2475
        %v2477 = vpop.f32.mrf.mxu0
        %v2478 = vpop.f32.mrf.mxu0
        %v2479 = vadd.f32 %v2190, %v2478
        %v2480 = vpop.f32.mrf.mxu0
        %2481 = vmatprep.mubr.bf16.mxu0 0
        %2482 = vmatmul.mubr.bf16.gmra.mxu0 %v1671
        %v2483 = vpop.f32.mrf.mxu0
        %v2484 = vadd.f32 %v2195, %v2483
        %v2485 = vpop.f32.mrf.mxu0
        %v2486 = vpop.f32.mrf.mxu0
        %v2487 = vadd.f32 %v2198, %v2486
        %v2488 = vpop.f32.mrf.mxu0
        %2489 = vmatprep.mubr.bf16.mxu0 0
        %2490 = vmatmul.mubr.bf16.gmra.mxu0 %v1674
        %v2491 = vpop.f32.mrf.mxu0
        %v2492 = vadd.f32 %v2203, %v2491
        %v2493 = vpop.f32.mrf.mxu0
        %v2494 = vpop.f32.mrf.mxu0
        %v2495 = vadd.f32 %v2206, %v2494
        %v2496 = vpop.f32.mrf.mxu0
        %2497 = vmatprep.mubr.bf16.mxu0 0
        %2498 = vmatmul.mubr.bf16.gmra.mxu0 %v1677
        %v2499 = vpop.f32.mrf.mxu0
        %v2500 = vadd.f32 %v2211, %v2499
        %v2501 = vpop.f32.mrf.mxu0
        %v2502 = vpop.f32.mrf.mxu0
        %v2503 = vadd.f32 %v2214, %v2502
        %v2504 = vpop.f32.mrf.mxu0
        %2505 = vmatprep.mubr.bf16.mxu0 0
        %2506 = vmatmul.mubr.bf16.gmra.mxu0 %v1680
        %v2507 = vpop.f32.mrf.mxu0
        %v2508 = vadd.f32 %v2219, %v2507
        %v2509 = vpop.f32.mrf.mxu0
        %v2510 = vpop.f32.mrf.mxu0
        %v2511 = vadd.f32 %v2222, %v2510
        %v2512 = vpop.f32.mrf.mxu0
        %2513 = vmatprep.mubr.bf16.mxu0 0
        %2514 = vmatmul.mubr.bf16.gmra.mxu0 %v1683
        %v2515 = vpop.f32.mrf.mxu0
        %v2516 = vadd.f32 %v2227, %v2515
        %v2517 = vpop.f32.mrf.mxu0
        %v2518 = vpop.f32.mrf.mxu0
        %v2519 = vadd.f32 %v2230, %v2518
        %v2520 = vpop.f32.mrf.mxu0
        %2521 = vmatprep.mubr.bf16.mxu0 0
        %2522 = vmatmul.mubr.bf16.gmra.mxu0 %v1686
        %v2523 = vpop.f32.mrf.mxu0
        %v2524 = vadd.f32 %v2235, %v2523
        %v2525 = vpop.f32.mrf.mxu0
        %v2526 = vpop.f32.mrf.mxu0
        %v2527 = vadd.f32 %v2238, %v2526
        %v2528 = vpop.f32.mrf.mxu0
        %2529 = vmatprep.mubr.bf16.mxu0 0
        %2530 = vmatmul.mubr.bf16.gmra.mxu0 %v1689
        %v2531 = vpop.f32.mrf.mxu0
        %v2532 = vadd.f32 %v2243, %v2531
        %v2533 = vpop.f32.mrf.mxu0
        %v2534 = vpop.f32.mrf.mxu0
        %v2535 = vadd.f32 %v2246, %v2534
        %v2536 = vpop.f32.mrf.mxu0
        %2537 = vmatprep.mubr.bf16.mxu0 0
        %2538 = vmatmul.mubr.bf16.gmra.mxu0 %v1692
        %v2539 = vpop.f32.mrf.mxu0
        %v2540 = vadd.f32 %v2251, %v2539
        %v2541 = vpop.f32.mrf.mxu0
        %v2542 = vpop.f32.mrf.mxu0
        %v2543 = vadd.f32 %v2254, %v2542
        %v2544 = vpop.f32.mrf.mxu0
        %2545 = vmatprep.mubr.bf16.mxu0 0
        %2546 = vmatmul.mubr.bf16.gmra.mxu0 %v1695
        %v2547 = vpop.f32.mrf.mxu0
        %v2548 = vadd.f32 %v2259, %v2547
        %v2549 = vpop.f32.mrf.mxu0
        %v2550 = vpop.f32.mrf.mxu0
        %v2551 = vadd.f32 %v2262, %v2550
        %v2552 = vpop.f32.mrf.mxu0
        %2553 = vmatprep.mubr.bf16.mxu0 0
        %2554 = vmatmul.mubr.bf16.gmra.mxu0 %v1698
        %v2555 = vpop.f32.mrf.mxu0
        %v2556 = vadd.f32 %v2267, %v2555
        %v2557 = vpop.f32.mrf.mxu0
        %v2558 = vpop.f32.mrf.mxu0
        %v2559 = vadd.f32 %v2270, %v2558
        %v2560 = vpop.f32.mrf.mxu0
        %2561 = vmatprep.mubr.bf16.mxu0 0
        %2562 = vmatmul.mubr.bf16.gmra.mxu0 %v1701
        %v2563 = vpop.f32.mrf.mxu0
        %v2564 = vadd.f32 %v2275, %v2563
        %v2565 = vpop.f32.mrf.mxu0
        %v2566 = vpop.f32.mrf.mxu0
        %v2567 = vadd.f32 %v2278, %v2566
        %v2568 = vpop.f32.mrf.mxu0
        %2569 = vdwg.mxu0
        %v2634 = vunpack.c.l.b16 %v252
        %v2635 = vunpack.c.l.b16 %v253
        %v2636 = vunpack.c.l.b16 %v254
        %v2637 = vunpack.c.l.b16 %v255
        %v2638 = vunpack.c.l.b16 %v256
        %v2639 = vunpack.c.l.b16 %v257
        %v2640 = vunpack.c.l.b16 %v258
        %v2641 = vunpack.c.l.b16 %v259
        %v2642 = vunpack.c.l.b16 %v260
        %v2643 = vunpack.c.l.b16 %v261
        %v2644 = vunpack.c.l.b16 %v262
        %v2645 = vunpack.c.l.b16 %v263
        %v2646 = vunpack.c.l.b16 %v264
        %v2647 = vunpack.c.l.b16 %v265
        %v2648 = vunpack.c.l.b16 %v266
        %v2649 = vunpack.c.l.b16 %v267
        %v2650 = vunpack.c.l.b16 %v268
        %v2651 = vunpack.c.l.b16 %v269
        %v2652 = vunpack.c.l.b16 %v270
        %v2653 = vunpack.c.l.b16 %v271
        %v2654 = vunpack.c.l.b16 %v272
        %v2655 = vunpack.c.l.b16 %v273
        %v2656 = vunpack.c.l.b16 %v274
        %v2657 = vunpack.c.l.b16 %v275
        %v2658 = vunpack.c.l.b16 %v276
        %v2659 = vunpack.c.l.b16 %v277
        %v2660 = vunpack.c.l.b16 %v278
        %v2661 = vunpack.c.l.b16 %v279
        %v2662 = vunpack.c.l.b16 %v280
        %v2663 = vunpack.c.l.b16 %v281
        %v2664 = vunpack.c.l.b16 %v282
        %v2665 = vunpack.c.l.b16 %v283
        %v2666 = vunpack.c.l.b16 %v284
        %v2667 = vunpack.c.l.b16 %v285
        %v2668 = vunpack.c.l.b16 %v286
        %v2669 = vunpack.c.l.b16 %v287
        %v2670 = vunpack.c.l.b16 %v288
        %v2671 = vunpack.c.l.b16 %v289
        %v2672 = vunpack.c.l.b16 %v290
        %v2673 = vunpack.c.l.b16 %v291
        %v2674 = vunpack.c.l.b16 %v292
        %v2675 = vunpack.c.l.b16 %v293
        %v2676 = vunpack.c.l.b16 %v294
        %v2677 = vunpack.c.l.b16 %v295
        %v2678 = vunpack.c.l.b16 %v296
        %v2679 = vunpack.c.l.b16 %v297
        %v2680 = vunpack.c.l.b16 %v298
        %v2681 = vunpack.c.l.b16 %v299
        %v2682 = vunpack.c.l.b16 %v300
        %v2683 = vunpack.c.l.b16 %v301
        %v2684 = vunpack.c.l.b16 %v302
        %v2685 = vunpack.c.l.b16 %v303
        %v2686 = vunpack.c.l.b16 %v304
        %v2687 = vunpack.c.l.b16 %v305
        %v2688 = vunpack.c.l.b16 %v306
        %v2689 = vunpack.c.l.b16 %v307
        %v2690 = vunpack.c.l.b16 %v308
        %v2691 = vunpack.c.l.b16 %v309
        %v2692 = vunpack.c.l.b16 %v310
        %v2693 = vunpack.c.l.b16 %v311
        %v2694 = vunpack.c.l.b16 %v312
        %v2695 = vunpack.c.l.b16 %v313
        %v2696 = vunpack.c.l.b16 %v314
        %v2697 = vunpack.c.l.b16 %v315
        %v2698 = vpack.c.b16 %v2635, %v2634
        %v2699 = vpack.c.b16 %v2637, %v2636
        %v2700 = vpack.c.b16 %v2639, %v2638
        %v2701 = vpack.c.b16 %v2641, %v2640
        %v2702 = vpack.c.b16 %v2643, %v2642
        %v2703 = vpack.c.b16 %v2645, %v2644
        %v2704 = vpack.c.b16 %v2647, %v2646
        %v2705 = vpack.c.b16 %v2649, %v2648
        %v2706 = vpack.c.b16 %v2651, %v2650
        %v2707 = vpack.c.b16 %v2653, %v2652
        %v2708 = vpack.c.b16 %v2655, %v2654
        %v2709 = vpack.c.b16 %v2657, %v2656
        %v2710 = vpack.c.b16 %v2659, %v2658
        %v2711 = vpack.c.b16 %v2661, %v2660
        %v2712 = vpack.c.b16 %v2663, %v2662
        %v2713 = vpack.c.b16 %v2665, %v2664
        %v2714 = vpack.c.b16 %v2667, %v2666
        %v2715 = vpack.c.b16 %v2669, %v2668
        %v2716 = vpack.c.b16 %v2671, %v2670
        %v2717 = vpack.c.b16 %v2673, %v2672
        %v2718 = vpack.c.b16 %v2675, %v2674
        %v2719 = vpack.c.b16 %v2677, %v2676
        %v2720 = vpack.c.b16 %v2679, %v2678
        %v2721 = vpack.c.b16 %v2681, %v2680
        %v2722 = vpack.c.b16 %v2683, %v2682
        %v2723 = vpack.c.b16 %v2685, %v2684
        %v2724 = vpack.c.b16 %v2687, %v2686
        %v2725 = vpack.c.b16 %v2689, %v2688
        %v2726 = vpack.c.b16 %v2691, %v2690
        %v2727 = vpack.c.b16 %v2693, %v2692
        %v2728 = vpack.c.b16 %v2695, %v2694
        %v2729 = vpack.c.b16 %v2697, %v2696
        %v2740 = vunpack.c.l.b16 %v316
        %v2741 = vunpack.c.l.b16 %v317
        %v2742 = vunpack.c.l.b16 %v318
        %v2743 = vunpack.c.l.b16 %v319
        %v2744 = vunpack.c.l.b16 %v320
        %v2745 = vunpack.c.l.b16 %v321
        %v2746 = vunpack.c.l.b16 %v322
        %v2747 = vunpack.c.l.b16 %v323
        %v2748 = vunpack.c.l.b16 %v324
        %v2749 = vunpack.c.l.b16 %v325
        %v2750 = vpack.c.b16 %v2741, %v2740
        %v2751 = vpack.c.b16 %v2743, %v2742
        %v2752 = vpack.c.b16 %v2745, %v2744
        %v2753 = vpack.c.b16 %v2747, %v2746
        %v2754 = vpack.c.b16 %v2749, %v2748
        %vm2759 = vcmask 629760
        %v2761 = vsel %vm2759, %v2698, 0
        %v2764 = vsel %vm2759, %v2699, 0
        %v2767 = vsel %vm2759, %v2700, 0
        %v2770 = vsel %vm2759, %v2701, 0
        %v2773 = vsel %vm2759, %v2702, 0
        %v2776 = vsel %vm2759, %v2703, 0
        %v2779 = vsel %vm2759, %v2704, 0
        %v2782 = vsel %vm2759, %v2705, 0
        %v2785 = vsel %vm2759, %v2706, 0
        %v2788 = vsel %vm2759, %v2707, 0
        %v2791 = vsel %vm2759, %v2708, 0
        %v2794 = vsel %vm2759, %v2709, 0
        %v2797 = vsel %vm2759, %v2710, 0
        %v2800 = vsel %vm2759, %v2711, 0
        %v2803 = vsel %vm2759, %v2712, 0
        %v2806 = vsel %vm2759, %v2713, 0
        %v2809 = vsel %vm2759, %v2714, 0
        %v2812 = vsel %vm2759, %v2715, 0
        %v2815 = vsel %vm2759, %v2716, 0
        %v2818 = vsel %vm2759, %v2717, 0
        %v2821 = vsel %vm2759, %v2718, 0
        %v2824 = vsel %vm2759, %v2719, 0
        %v2827 = vsel %vm2759, %v2720, 0
        %v2830 = vsel %vm2759, %v2721, 0
        %v2833 = vsel %vm2759, %v2722, 0
        %v2836 = vsel %vm2759, %v2723, 0
        %v2839 = vsel %vm2759, %v2724, 0
        %v2842 = vsel %vm2759, %v2725, 0
        %v2845 = vsel %vm2759, %v2726, 0
        %v2848 = vsel %vm2759, %v2727, 0
        %v2851 = vsel %vm2759, %v2728, 0
        %v2854 = vsel %vm2759, %v2729, 0
        %vm2856 = vcmask 1045504
        %vm2857 = vcmask 1046528
        %v2858 = vsel %vm2856, 4294967295, 65535
        %v2859 = vsel %vm2857, %v2858, 0
        %v2861 = vand.u32 %v2754, %v2859
        %2863 = vmatprep.subr.bf16.mxu0 0
        %2864 = vmatpush1.bf16.msra.mxu0 0
        %2865 = vmatprep.subr.bf16.mxu0 0
        %2866 = vmatpush1.bf16.msra.mxu0 0
        %2867 = vmatprep.subr.bf16.mxu0 0
        %2868 = vmatpush1.bf16.msra.mxu0 0
        %2869 = vmatprep.subr.bf16.mxu0 0
        %2870 = vmatpush1.bf16.msra.mxu0 %v2861
        %2871 = vmatprep.subr.bf16.mxu0 0
        %2872 = vmatpush1.bf16.msra.mxu0 %v2753
        %2873 = vmatprep.subr.bf16.mxu0 0
        %2874 = vmatpush1.bf16.msra.mxu0 %v2752
        %2875 = vmatprep.subr.bf16.mxu0 0
        %2876 = vmatpush1.bf16.msra.mxu0 %v2751
        %2877 = vmatprep.subr.bf16.mxu0 0
        %2878 = vmatpush1.bf16.msra.mxu0 %v2750
        %2879 = vmatprep.subr.bf16.mxu0 0
        %2880 = vmatpush2.bf16.msra.mxu0 0
        %2881 = vmatprep.subr.bf16.mxu0 0
        %2882 = vmatpush2.bf16.msra.mxu0 0
        %2883 = vmatprep.subr.bf16.mxu0 0
        %2884 = vmatpush2.bf16.msra.mxu0 0
        %2885 = vmatprep.subr.bf16.mxu0 0
        %2886 = vmatpush2.bf16.msra.mxu0 0
        %2887 = vmatprep.subr.bf16.mxu0 0
        %2888 = vmatpush2.bf16.msra.mxu0 0
        %2889 = vmatprep.subr.bf16.mxu0 0
        %2890 = vmatpush2.bf16.msra.mxu0 0
        %2891 = vmatprep.subr.bf16.mxu0 0
        %2892 = vmatpush2.bf16.msra.mxu0 0
        %2893 = vmatprep.subr.bf16.mxu0 0
        %2894 = vmatpush2.bf16.msra.mxu0 0
        %2895 = vmatprep.mubr.bf16.mxu0 0
        %2896 = vmatmul.mubr.bf16.gmra.mxu0 %v2761
        %v2897 = vpop.f32.mrf.mxu0
        %v2898 = vadd.f32 %v2316, %v2897
        %v2899 = vpop.f32.mrf.mxu0
        %v2900 = vpop.f32.mrf.mxu0
        %v2901 = vadd.f32 %v2319, %v2900
        %v2902 = vpop.f32.mrf.mxu0
        %2903 = vmatprep.mubr.bf16.mxu0 0
        %2904 = vmatmul.mubr.bf16.gmra.mxu0 %v2764
        %v2905 = vpop.f32.mrf.mxu0
        %v2906 = vadd.f32 %v2324, %v2905
        %v2907 = vpop.f32.mrf.mxu0
        %v2908 = vpop.f32.mrf.mxu0
        %v2909 = vadd.f32 %v2327, %v2908
        %v2910 = vpop.f32.mrf.mxu0
        %2911 = vmatprep.mubr.bf16.mxu0 0
        %2912 = vmatmul.mubr.bf16.gmra.mxu0 %v2767
        %v2913 = vpop.f32.mrf.mxu0
        %v2914 = vadd.f32 %v2332, %v2913
        %v2915 = vpop.f32.mrf.mxu0
        %v2916 = vpop.f32.mrf.mxu0
        %v2917 = vadd.f32 %v2335, %v2916
        %v2918 = vpop.f32.mrf.mxu0
        %2919 = vmatprep.mubr.bf16.mxu0 0
        %2920 = vmatmul.mubr.bf16.gmra.mxu0 %v2770
        %v2921 = vpop.f32.mrf.mxu0
        %v2922 = vadd.f32 %v2340, %v2921
        %v2923 = vpop.f32.mrf.mxu0
        %v2924 = vpop.f32.mrf.mxu0
        %v2925 = vadd.f32 %v2343, %v2924
        %v2926 = vpop.f32.mrf.mxu0
        %2927 = vmatprep.mubr.bf16.mxu0 0
        %2928 = vmatmul.mubr.bf16.gmra.mxu0 %v2773
        %v2929 = vpop.f32.mrf.mxu0
        %v2930 = vadd.f32 %v2348, %v2929
        %v2931 = vpop.f32.mrf.mxu0
        %v2932 = vpop.f32.mrf.mxu0
        %v2933 = vadd.f32 %v2351, %v2932
        %v2934 = vpop.f32.mrf.mxu0
        %2935 = vmatprep.mubr.bf16.mxu0 0
        %2936 = vmatmul.mubr.bf16.gmra.mxu0 %v2776
        %v2937 = vpop.f32.mrf.mxu0
        %v2938 = vadd.f32 %v2356, %v2937
        %v2939 = vpop.f32.mrf.mxu0
        %v2940 = vpop.f32.mrf.mxu0
        %v2941 = vadd.f32 %v2359, %v2940
        %v2942 = vpop.f32.mrf.mxu0
        %2943 = vmatprep.mubr.bf16.mxu0 0
        %2944 = vmatmul.mubr.bf16.gmra.mxu0 %v2779
        %v2945 = vpop.f32.mrf.mxu0
        %v2946 = vadd.f32 %v2364, %v2945
        %v2947 = vpop.f32.mrf.mxu0
        %v2948 = vpop.f32.mrf.mxu0
        %v2949 = vadd.f32 %v2367, %v2948
        %v2950 = vpop.f32.mrf.mxu0
        %2951 = vmatprep.mubr.bf16.mxu0 0
        %2952 = vmatmul.mubr.bf16.gmra.mxu0 %v2782
        %v2953 = vpop.f32.mrf.mxu0
        %v2954 = vadd.f32 %v2372, %v2953
        %v2955 = vpop.f32.mrf.mxu0
        %v2956 = vpop.f32.mrf.mxu0
        %v2957 = vadd.f32 %v2375, %v2956
        %v2958 = vpop.f32.mrf.mxu0
        %2959 = vmatprep.mubr.bf16.mxu0 0
        %2960 = vmatmul.mubr.bf16.gmra.mxu0 %v2785
        %v2961 = vpop.f32.mrf.mxu0
        %v2962 = vadd.f32 %v2380, %v2961
        %v2963 = vpop.f32.mrf.mxu0
        %v2964 = vpop.f32.mrf.mxu0
        %v2965 = vadd.f32 %v2383, %v2964
        %v2966 = vpop.f32.mrf.mxu0
        %2967 = vmatprep.mubr.bf16.mxu0 0
        %2968 = vmatmul.mubr.bf16.gmra.mxu0 %v2788
        %v2969 = vpop.f32.mrf.mxu0
        %v2970 = vadd.f32 %v2388, %v2969
        %v2971 = vpop.f32.mrf.mxu0
        %v2972 = vpop.f32.mrf.mxu0
        %v2973 = vadd.f32 %v2391, %v2972
        %v2974 = vpop.f32.mrf.mxu0
        %2975 = vmatprep.mubr.bf16.mxu0 0
        %2976 = vmatmul.mubr.bf16.gmra.mxu0 %v2791
        %v2977 = vpop.f32.mrf.mxu0
        %v2978 = vadd.f32 %v2396, %v2977
        %v2979 = vpop.f32.mrf.mxu0
        %v2980 = vpop.f32.mrf.mxu0
        %v2981 = vadd.f32 %v2399, %v2980
        %v2982 = vpop.f32.mrf.mxu0
        %2983 = vmatprep.mubr.bf16.mxu0 0
        %2984 = vmatmul.mubr.bf16.gmra.mxu0 %v2794
        %v2985 = vpop.f32.mrf.mxu0
        %v2986 = vadd.f32 %v2404, %v2985
        %v2987 = vpop.f32.mrf.mxu0
        %v2988 = vpop.f32.mrf.mxu0
        %v2989 = vadd.f32 %v2407, %v2988
        %v2990 = vpop.f32.mrf.mxu0
        %2991 = vmatprep.mubr.bf16.mxu0 0
        %2992 = vmatmul.mubr.bf16.gmra.mxu0 %v2797
        %v2993 = vpop.f32.mrf.mxu0
        %v2994 = vadd.f32 %v2412, %v2993
        %v2995 = vpop.f32.mrf.mxu0
        %v2996 = vpop.f32.mrf.mxu0
        %v2997 = vadd.f32 %v2415, %v2996
        %v2998 = vpop.f32.mrf.mxu0
        %2999 = vmatprep.mubr.bf16.mxu0 0
        %3000 = vmatmul.mubr.bf16.gmra.mxu0 %v2800
        %v3001 = vpop.f32.mrf.mxu0
        %v3002 = vadd.f32 %v2420, %v3001
        %v3003 = vpop.f32.mrf.mxu0
        %v3004 = vpop.f32.mrf.mxu0
        %v3005 = vadd.f32 %v2423, %v3004
        %v3006 = vpop.f32.mrf.mxu0
        %3007 = vmatprep.mubr.bf16.mxu0 0
        %3008 = vmatmul.mubr.bf16.gmra.mxu0 %v2803
        %v3009 = vpop.f32.mrf.mxu0
        %v3010 = vadd.f32 %v2428, %v3009
        %v3011 = vpop.f32.mrf.mxu0
        %v3012 = vpop.f32.mrf.mxu0
        %v3013 = vadd.f32 %v2431, %v3012
        %v3014 = vpop.f32.mrf.mxu0
        %3015 = vmatprep.mubr.bf16.mxu0 0
        %3016 = vmatmul.mubr.bf16.gmra.mxu0 %v2806
        %v3017 = vpop.f32.mrf.mxu0
        %v3018 = vadd.f32 %v2436, %v3017
        %v3019 = vpop.f32.mrf.mxu0
        %v3020 = vpop.f32.mrf.mxu0
        %v3021 = vadd.f32 %v2439, %v3020
        %v3022 = vpop.f32.mrf.mxu0
        %3023 = vmatprep.mubr.bf16.mxu0 0
        %3024 = vmatmul.mubr.bf16.gmra.mxu0 %v2809
        %v3025 = vpop.f32.mrf.mxu0
        %v3026 = vadd.f32 %v2444, %v3025
        %v3027 = vpop.f32.mrf.mxu0
        %v3028 = vpop.f32.mrf.mxu0
        %v3029 = vadd.f32 %v2447, %v3028
        %v3030 = vpop.f32.mrf.mxu0
        %3031 = vmatprep.mubr.bf16.mxu0 0
        %3032 = vmatmul.mubr.bf16.gmra.mxu0 %v2812
        %v3033 = vpop.f32.mrf.mxu0
        %v3034 = vadd.f32 %v2452, %v3033
        %v3035 = vpop.f32.mrf.mxu0
        %v3036 = vpop.f32.mrf.mxu0
        %v3037 = vadd.f32 %v2455, %v3036
        %v3038 = vpop.f32.mrf.mxu0
        %3039 = vmatprep.mubr.bf16.mxu0 0
        %3040 = vmatmul.mubr.bf16.gmra.mxu0 %v2815
        %v3041 = vpop.f32.mrf.mxu0
        %v3042 = vadd.f32 %v2460, %v3041
        %v3043 = vpop.f32.mrf.mxu0
        %v3044 = vpop.f32.mrf.mxu0
        %v3045 = vadd.f32 %v2463, %v3044
        %v3046 = vpop.f32.mrf.mxu0
        %3047 = vmatprep.mubr.bf16.mxu0 0
        %3048 = vmatmul.mubr.bf16.gmra.mxu0 %v2818
        %v3049 = vpop.f32.mrf.mxu0
        %v3050 = vadd.f32 %v2468, %v3049
        %v3051 = vpop.f32.mrf.mxu0
        %v3052 = vpop.f32.mrf.mxu0
        %v3053 = vadd.f32 %v2471, %v3052
        %v3054 = vpop.f32.mrf.mxu0
        %3055 = vmatprep.mubr.bf16.mxu0 0
        %3056 = vmatmul.mubr.bf16.gmra.mxu0 %v2821
        %v3057 = vpop.f32.mrf.mxu0
        %v3058 = vadd.f32 %v2476, %v3057
        %v3059 = vpop.f32.mrf.mxu0
        %v3060 = vpop.f32.mrf.mxu0
        %v3061 = vadd.f32 %v2479, %v3060
        %v3062 = vpop.f32.mrf.mxu0
        %3063 = vmatprep.mubr.bf16.mxu0 0
        %3064 = vmatmul.mubr.bf16.gmra.mxu0 %v2824
        %v3065 = vpop.f32.mrf.mxu0
        %v3066 = vadd.f32 %v2484, %v3065
        %v3067 = vpop.f32.mrf.mxu0
        %v3068 = vpop.f32.mrf.mxu0
        %v3069 = vadd.f32 %v2487, %v3068
        %v3070 = vpop.f32.mrf.mxu0
        %3071 = vmatprep.mubr.bf16.mxu0 0
        %3072 = vmatmul.mubr.bf16.gmra.mxu0 %v2827
        %v3073 = vpop.f32.mrf.mxu0
        %v3074 = vadd.f32 %v2492, %v3073
        %v3075 = vpop.f32.mrf.mxu0
        %v3076 = vpop.f32.mrf.mxu0
        %v3077 = vadd.f32 %v2495, %v3076
        %v3078 = vpop.f32.mrf.mxu0
        %3079 = vmatprep.mubr.bf16.mxu0 0
        %3080 = vmatmul.mubr.bf16.gmra.mxu0 %v2830
        %v3081 = vpop.f32.mrf.mxu0
        %v3082 = vadd.f32 %v2500, %v3081
        %v3083 = vpop.f32.mrf.mxu0
        %v3084 = vpop.f32.mrf.mxu0
        %v3085 = vadd.f32 %v2503, %v3084
        %v3086 = vpop.f32.mrf.mxu0
        %3087 = vmatprep.mubr.bf16.mxu0 0
        %3088 = vmatmul.mubr.bf16.gmra.mxu0 %v2833
        %v3089 = vpop.f32.mrf.mxu0
        %v3090 = vadd.f32 %v2508, %v3089
        %v3091 = vpop.f32.mrf.mxu0
        %v3092 = vpop.f32.mrf.mxu0
        %v3093 = vadd.f32 %v2511, %v3092
        %v3094 = vpop.f32.mrf.mxu0
        %3095 = vmatprep.mubr.bf16.mxu0 0
        %3096 = vmatmul.mubr.bf16.gmra.mxu0 %v2836
        %v3097 = vpop.f32.mrf.mxu0
        %v3098 = vadd.f32 %v2516, %v3097
        %v3099 = vpop.f32.mrf.mxu0
        %v3100 = vpop.f32.mrf.mxu0
        %v3101 = vadd.f32 %v2519, %v3100
        %v3102 = vpop.f32.mrf.mxu0
        %3103 = vmatprep.mubr.bf16.mxu0 0
        %3104 = vmatmul.mubr.bf16.gmra.mxu0 %v2839
        %v3105 = vpop.f32.mrf.mxu0
        %v3106 = vadd.f32 %v2524, %v3105
        %v3107 = vpop.f32.mrf.mxu0
        %v3108 = vpop.f32.mrf.mxu0
        %v3109 = vadd.f32 %v2527, %v3108
        %v3110 = vpop.f32.mrf.mxu0
        %3111 = vmatprep.mubr.bf16.mxu0 0
        %3112 = vmatmul.mubr.bf16.gmra.mxu0 %v2842
        %v3113 = vpop.f32.mrf.mxu0
        %v3114 = vadd.f32 %v2532, %v3113
        %v3115 = vpop.f32.mrf.mxu0
        %v3116 = vpop.f32.mrf.mxu0
        %v3117 = vadd.f32 %v2535, %v3116
        %v3118 = vpop.f32.mrf.mxu0
        %3119 = vmatprep.mubr.bf16.mxu0 0
        %3120 = vmatmul.mubr.bf16.gmra.mxu0 %v2845
        %v3121 = vpop.f32.mrf.mxu0
        %v3122 = vadd.f32 %v2540, %v3121
        %v3123 = vpop.f32.mrf.mxu0
        %v3124 = vpop.f32.mrf.mxu0
        %v3125 = vadd.f32 %v2543, %v3124
        %v3126 = vpop.f32.mrf.mxu0
        %3127 = vmatprep.mubr.bf16.mxu0 0
        %3128 = vmatmul.mubr.bf16.gmra.mxu0 %v2848
        %v3129 = vpop.f32.mrf.mxu0
        %v3130 = vadd.f32 %v2548, %v3129
        %v3131 = vpop.f32.mrf.mxu0
        %v3132 = vpop.f32.mrf.mxu0
        %v3133 = vadd.f32 %v2551, %v3132
        %v3134 = vpop.f32.mrf.mxu0
        %3135 = vmatprep.mubr.bf16.mxu0 0
        %3136 = vmatmul.mubr.bf16.gmra.mxu0 %v2851
        %v3137 = vpop.f32.mrf.mxu0
        %v3138 = vadd.f32 %v2556, %v3137
        %v3139 = vpop.f32.mrf.mxu0
        %v3140 = vpop.f32.mrf.mxu0
        %v3141 = vadd.f32 %v2559, %v3140
        %v3142 = vpop.f32.mrf.mxu0
        %3143 = vmatprep.mubr.bf16.mxu0 0
        %3144 = vmatmul.mubr.bf16.gmra.mxu0 %v2854
        %v3145 = vpop.f32.mrf.mxu0
        %v3146 = vadd.f32 %v2564, %v3145
        %v3147 = vpop.f32.mrf.mxu0
        %v3148 = vpop.f32.mrf.mxu0
        %v3149 = vadd.f32 %v2567, %v3148
        %v3150 = vpop.f32.mrf.mxu0
        %3151 = vdwg.mxu0
        %v3152 = vld [vmem:[%s4] sm:$0x1]
        %v3154 = vlaneseq
        %v3155 = vshrl.u32 %v3154, 7
        %v3156 = vsub.s32 0, %v3155
        %v3157 = vrot.slane %v3152, %v3156
        %v3159 = vadd.f32 %v2898, %v3157
        %v3160 = vadd.f32 %v2901, %v3157
        %v3161 = vadd.f32 %v2906, %v3157
        %v3162 = vadd.f32 %v2909, %v3157
        %v3163 = vadd.f32 %v2914, %v3157
        %v3164 = vadd.f32 %v2917, %v3157
        %v3165 = vadd.f32 %v2922, %v3157
        %v3166 = vadd.f32 %v2925, %v3157
        %v3167 = vadd.f32 %v2930, %v3157
        %v3168 = vadd.f32 %v2933, %v3157
        %v3169 = vadd.f32 %v2938, %v3157
        %v3170 = vadd.f32 %v2941, %v3157
        %v3171 = vadd.f32 %v2946, %v3157
        %v3172 = vadd.f32 %v2949, %v3157
        %v3173 = vadd.f32 %v2954, %v3157
        %v3174 = vadd.f32 %v2957, %v3157
        %v3175 = vadd.f32 %v2962, %v3157
        %v3176 = vadd.f32 %v2965, %v3157
        %v3177 = vadd.f32 %v2970, %v3157
        %v3178 = vadd.f32 %v2973, %v3157
        %v3179 = vadd.f32 %v2978, %v3157
        %v3180 = vadd.f32 %v2981, %v3157
        %v3181 = vadd.f32 %v2986, %v3157
        %v3182 = vadd.f32 %v2989, %v3157
        %v3183 = vadd.f32 %v2994, %v3157
        %v3184 = vadd.f32 %v2997, %v3157
        %v3185 = vadd.f32 %v3002, %v3157
        %v3186 = vadd.f32 %v3005, %v3157
        %v3187 = vadd.f32 %v3010, %v3157
        %v3188 = vadd.f32 %v3013, %v3157
        %v3189 = vadd.f32 %v3018, %v3157
        %v3190 = vadd.f32 %v3021, %v3157
        %v3191 = vadd.f32 %v3026, %v3157
        %v3192 = vadd.f32 %v3029, %v3157
        %v3193 = vadd.f32 %v3034, %v3157
        %v3194 = vadd.f32 %v3037, %v3157
        %v3195 = vadd.f32 %v3042, %v3157
        %v3196 = vadd.f32 %v3045, %v3157
        %v3197 = vadd.f32 %v3050, %v3157
        %v3198 = vadd.f32 %v3053, %v3157
        %v3199 = vadd.f32 %v3058, %v3157
        %v3200 = vadd.f32 %v3061, %v3157
        %v3201 = vadd.f32 %v3066, %v3157
        %v3202 = vadd.f32 %v3069, %v3157
        %v3203 = vadd.f32 %v3074, %v3157
        %v3204 = vadd.f32 %v3077, %v3157
        %v3205 = vadd.f32 %v3082, %v3157
        %v3206 = vadd.f32 %v3085, %v3157
        %v3207 = vadd.f32 %v3090, %v3157
        %v3208 = vadd.f32 %v3093, %v3157
        %v3209 = vadd.f32 %v3098, %v3157
        %v3210 = vadd.f32 %v3101, %v3157
        %v3211 = vadd.f32 %v3106, %v3157
        %v3212 = vadd.f32 %v3109, %v3157
        %v3213 = vadd.f32 %v3114, %v3157
        %v3214 = vadd.f32 %v3117, %v3157
        %v3215 = vadd.f32 %v3122, %v3157
        %v3216 = vadd.f32 %v3125, %v3157
        %v3217 = vadd.f32 %v3130, %v3157
        %v3218 = vadd.f32 %v3133, %v3157
        %v3219 = vadd.f32 %v3138, %v3157
        %v3220 = vadd.f32 %v3141, %v3157
        %v3221 = vadd.f32 %v3146, %v3157
        %v3222 = vadd.f32 %v3149, %v3157
        %vm3223 = vcmp.ge.f32.partialorder %v3159, 0.0
        %vm3224 = vcmp.ge.f32.partialorder %v3160, 0.0
        %vm3225 = vcmp.ge.f32.partialorder %v3161, 0.0
        %vm3226 = vcmp.ge.f32.partialorder %v3162, 0.0
        %vm3227 = vcmp.ge.f32.partialorder %v3163, 0.0
        %vm3228 = vcmp.ge.f32.partialorder %v3164, 0.0
        %vm3229 = vcmp.ge.f32.partialorder %v3165, 0.0
        %vm3230 = vcmp.ge.f32.partialorder %v3166, 0.0
        %vm3231 = vcmp.ge.f32.partialorder %v3167, 0.0
        %vm3232 = vcmp.ge.f32.partialorder %v3168, 0.0
        %vm3233 = vcmp.ge.f32.partialorder %v3169, 0.0
        %vm3234 = vcmp.ge.f32.partialorder %v3170, 0.0
        %vm3235 = vcmp.ge.f32.partialorder %v3171, 0.0
        %vm3236 = vcmp.ge.f32.partialorder %v3172, 0.0
        %vm3237 = vcmp.ge.f32.partialorder %v3173, 0.0
        %vm3238 = vcmp.ge.f32.partialorder %v3174, 0.0
        %vm3239 = vcmp.ge.f32.partialorder %v3175, 0.0
        %vm3240 = vcmp.ge.f32.partialorder %v3176, 0.0
        %vm3241 = vcmp.ge.f32.partialorder %v3177, 0.0
        %vm3242 = vcmp.ge.f32.partialorder %v3178, 0.0
        %vm3243 = vcmp.ge.f32.partialorder %v3179, 0.0
        %vm3244 = vcmp.ge.f32.partialorder %v3180, 0.0
        %vm3245 = vcmp.ge.f32.partialorder %v3181, 0.0
        %vm3246 = vcmp.ge.f32.partialorder %v3182, 0.0
        %vm3247 = vcmp.ge.f32.partialorder %v3183, 0.0
        %vm3248 = vcmp.ge.f32.partialorder %v3184, 0.0
        %vm3249 = vcmp.ge.f32.partialorder %v3185, 0.0
        %vm3250 = vcmp.ge.f32.partialorder %v3186, 0.0
        %vm3251 = vcmp.ge.f32.partialorder %v3187, 0.0
        %vm3252 = vcmp.ge.f32.partialorder %v3188, 0.0
        %vm3253 = vcmp.ge.f32.partialorder %v3189, 0.0
        %vm3254 = vcmp.ge.f32.partialorder %v3190, 0.0
        %vm3255 = vcmp.ge.f32.partialorder %v3191, 0.0
        %vm3256 = vcmp.ge.f32.partialorder %v3192, 0.0
        %vm3257 = vcmp.ge.f32.partialorder %v3193, 0.0
        %vm3258 = vcmp.ge.f32.partialorder %v3194, 0.0
        %vm3259 = vcmp.ge.f32.partialorder %v3195, 0.0
        %vm3260 = vcmp.ge.f32.partialorder %v3196, 0.0
        %vm3261 = vcmp.ge.f32.partialorder %v3197, 0.0
        %vm3262 = vcmp.ge.f32.partialorder %v3198, 0.0
        %vm3263 = vcmp.ge.f32.partialorder %v3199, 0.0
        %vm3264 = vcmp.ge.f32.partialorder %v3200, 0.0
        %vm3265 = vcmp.ge.f32.partialorder %v3201, 0.0
        %vm3266 = vcmp.ge.f32.partialorder %v3202, 0.0
        %vm3267 = vcmp.ge.f32.partialorder %v3203, 0.0
        %vm3268 = vcmp.ge.f32.partialorder %v3204, 0.0
        %vm3269 = vcmp.ge.f32.partialorder %v3205, 0.0
        %vm3270 = vcmp.ge.f32.partialorder %v3206, 0.0
        %vm3271 = vcmp.ge.f32.partialorder %v3207, 0.0
        %vm3272 = vcmp.ge.f32.partialorder %v3208, 0.0
        %vm3273 = vcmp.ge.f32.partialorder %v3209, 0.0
        %vm3274 = vcmp.ge.f32.partialorder %v3210, 0.0
        %vm3275 = vcmp.ge.f32.partialorder %v3211, 0.0
        %vm3276 = vcmp.ge.f32.partialorder %v3212, 0.0
        %vm3277 = vcmp.ge.f32.partialorder %v3213, 0.0
        %vm3278 = vcmp.ge.f32.partialorder %v3214, 0.0
        %vm3279 = vcmp.ge.f32.partialorder %v3215, 0.0
        %vm3280 = vcmp.ge.f32.partialorder %v3216, 0.0
        %vm3281 = vcmp.ge.f32.partialorder %v3217, 0.0
        %vm3282 = vcmp.ge.f32.partialorder %v3218, 0.0
        %vm3283 = vcmp.ge.f32.partialorder %v3219, 0.0
        %vm3284 = vcmp.ge.f32.partialorder %v3220, 0.0
        %vm3285 = vcmp.ge.f32.partialorder %v3221, 0.0
        %vm3286 = vcmp.ge.f32.partialorder %v3222, 0.0
        %v3287 = vmul.f32 %v3159, 0.01
        %v3288 = vmul.f32 %v3160, 0.01
        %v3289 = vmul.f32 %v3161, 0.01
        %v3290 = vmul.f32 %v3162, 0.01
        %v3291 = vmul.f32 %v3163, 0.01
        %v3292 = vmul.f32 %v3164, 0.01
        %v3293 = vmul.f32 %v3165, 0.01
        %v3294 = vmul.f32 %v3166, 0.01
        %v3295 = vmul.f32 %v3167, 0.01
        %v3296 = vmul.f32 %v3168, 0.01
        %v3297 = vmul.f32 %v3169, 0.01
        %v3298 = vmul.f32 %v3170, 0.01
        %v3299 = vmul.f32 %v3171, 0.01
        %v3300 = vmul.f32 %v3172, 0.01
        %v3301 = vmul.f32 %v3173, 0.01
        %v3302 = vmul.f32 %v3174, 0.01
        %v3303 = vmul.f32 %v3175, 0.01
        %v3304 = vmul.f32 %v3176, 0.01
        %v3305 = vmul.f32 %v3177, 0.01
        %v3306 = vmul.f32 %v3178, 0.01
        %v3307 = vmul.f32 %v3179, 0.01
        %v3308 = vmul.f32 %v3180, 0.01
        %v3309 = vmul.f32 %v3181, 0.01
        %v3310 = vmul.f32 %v3182, 0.01
        %v3311 = vmul.f32 %v3183, 0.01
        %v3312 = vmul.f32 %v3184, 0.01
        %v3313 = vmul.f32 %v3185, 0.01
        %v3314 = vmul.f32 %v3186, 0.01
        %v3315 = vmul.f32 %v3187, 0.01
        %v3316 = vmul.f32 %v3188, 0.01
        %v3317 = vmul.f32 %v3189, 0.01
        %v3318 = vmul.f32 %v3190, 0.01
        %v3319 = vmul.f32 %v3191, 0.01
        %v3320 = vmul.f32 %v3192, 0.01
        %v3321 = vmul.f32 %v3193, 0.01
        %v3322 = vmul.f32 %v3194, 0.01
        %v3323 = vmul.f32 %v3195, 0.01
        %v3324 = vmul.f32 %v3196, 0.01
        %v3325 = vmul.f32 %v3197, 0.01
        %v3326 = vmul.f32 %v3198, 0.01
        %v3327 = vmul.f32 %v3199, 0.01
        %v3328 = vmul.f32 %v3200, 0.01
        %v3329 = vmul.f32 %v3201, 0.01
        %v3330 = vmul.f32 %v3202, 0.01
        %v3331 = vmul.f32 %v3203, 0.01
        %v3332 = vmul.f32 %v3204, 0.01
        %v3333 = vmul.f32 %v3205, 0.01
        %v3334 = vmul.f32 %v3206, 0.01
        %v3335 = vmul.f32 %v3207, 0.01
        %v3336 = vmul.f32 %v3208, 0.01
        %v3337 = vmul.f32 %v3209, 0.01
        %v3338 = vmul.f32 %v3210, 0.01
        %v3339 = vmul.f32 %v3211, 0.01
        %v3340 = vmul.f32 %v3212, 0.01
        %v3341 = vmul.f32 %v3213, 0.01
        %v3342 = vmul.f32 %v3214, 0.01
        %v3343 = vmul.f32 %v3215, 0.01
        %v3344 = vmul.f32 %v3216, 0.01
        %v3345 = vmul.f32 %v3217, 0.01
        %v3346 = vmul.f32 %v3218, 0.01
        %v3347 = vmul.f32 %v3219, 0.01
        %v3348 = vmul.f32 %v3220, 0.01
        %v3349 = vmul.f32 %v3221, 0.01
        %v3350 = vmul.f32 %v3222, 0.01
        %v3351 = vsel %vm3223, %v3159, %v3287
        %v3352 = vsel %vm3224, %v3160, %v3288
        %v3353 = vsel %vm3225, %v3161, %v3289
        %v3354 = vsel %vm3226, %v3162, %v3290
        %v3355 = vsel %vm3227, %v3163, %v3291
        %v3356 = vsel %vm3228, %v3164, %v3292
        %v3357 = vsel %vm3229, %v3165, %v3293
        %v3358 = vsel %vm3230, %v3166, %v3294
        %v3359 = vsel %vm3231, %v3167, %v3295
        %v3360 = vsel %vm3232, %v3168, %v3296
        %v3361 = vsel %vm3233, %v3169, %v3297
        %v3362 = vsel %vm3234, %v3170, %v3298
        %v3363 = vsel %vm3235, %v3171, %v3299
        %v3364 = vsel %vm3236, %v3172, %v3300
        %v3365 = vsel %vm3237, %v3173, %v3301
        %v3366 = vsel %vm3238, %v3174, %v3302
        %v3367 = vsel %vm3239, %v3175, %v3303
        %v3368 = vsel %vm3240, %v3176, %v3304
        %v3369 = vsel %vm3241, %v3177, %v3305
        %v3370 = vsel %vm3242, %v3178, %v3306
        %v3371 = vsel %vm3243, %v3179, %v3307
        %v3372 = vsel %vm3244, %v3180, %v3308
        %v3373 = vsel %vm3245, %v3181, %v3309
        %v3374 = vsel %vm3246, %v3182, %v3310
        %v3375 = vsel %vm3247, %v3183, %v3311
        %v3376 = vsel %vm3248, %v3184, %v3312
        %v3377 = vsel %vm3249, %v3185, %v3313
        %v3378 = vsel %vm3250, %v3186, %v3314
        %v3379 = vsel %vm3251, %v3187, %v3315
        %v3380 = vsel %vm3252, %v3188, %v3316
        %v3381 = vsel %vm3253, %v3189, %v3317
        %v3382 = vsel %vm3254, %v3190, %v3318
        %v3383 = vsel %vm3255, %v3191, %v3319
        %v3384 = vsel %vm3256, %v3192, %v3320
        %v3385 = vsel %vm3257, %v3193, %v3321
        %v3386 = vsel %vm3258, %v3194, %v3322
        %v3387 = vsel %vm3259, %v3195, %v3323
        %v3388 = vsel %vm3260, %v3196, %v3324
        %v3389 = vsel %vm3261, %v3197, %v3325
        %v3390 = vsel %vm3262, %v3198, %v3326
        %v3391 = vsel %vm3263, %v3199, %v3327
        %v3392 = vsel %vm3264, %v3200, %v3328
        %v3393 = vsel %vm3265, %v3201, %v3329
        %v3394 = vsel %vm3266, %v3202, %v3330
        %v3395 = vsel %vm3267, %v3203, %v3331
        %v3396 = vsel %vm3268, %v3204, %v3332
        %v3397 = vsel %vm3269, %v3205, %v3333
        %v3398 = vsel %vm3270, %v3206, %v3334
        %v3399 = vsel %vm3271, %v3207, %v3335
        %v3400 = vsel %vm3272, %v3208, %v3336
        %v3401 = vsel %vm3273, %v3209, %v3337
        %v3402 = vsel %vm3274, %v3210, %v3338
        %v3403 = vsel %vm3275, %v3211, %v3339
        %v3404 = vsel %vm3276, %v3212, %v3340
        %v3405 = vsel %vm3277, %v3213, %v3341
        %v3406 = vsel %vm3278, %v3214, %v3342
        %v3407 = vsel %vm3279, %v3215, %v3343
        %v3408 = vsel %vm3280, %v3216, %v3344
        %v3409 = vsel %vm3281, %v3217, %v3345
        %v3410 = vsel %vm3282, %v3218, %v3346
        %v3411 = vsel %vm3283, %v3219, %v3347
        %v3412 = vsel %vm3284, %v3220, %v3348
        %v3413 = vsel %vm3285, %v3221, %v3349
        %v3414 = vsel %vm3286, %v3222, %v3350
        %v3415 = vpack.c.bf16 %v3352, %v3351
        %v3416 = vpack.c.bf16 %v3354, %v3353
        %v3417 = vpack.c.bf16 %v3356, %v3355
        %v3418 = vpack.c.bf16 %v3358, %v3357
        %v3419 = vpack.c.bf16 %v3360, %v3359
        %v3420 = vpack.c.bf16 %v3362, %v3361
        %v3421 = vpack.c.bf16 %v3364, %v3363
        %v3422 = vpack.c.bf16 %v3366, %v3365
        %v3423 = vpack.c.bf16 %v3368, %v3367
        %v3424 = vpack.c.bf16 %v3370, %v3369
        %v3425 = vpack.c.bf16 %v3372, %v3371
        %v3426 = vpack.c.bf16 %v3374, %v3373
        %v3427 = vpack.c.bf16 %v3376, %v3375
        %v3428 = vpack.c.bf16 %v3378, %v3377
        %v3429 = vpack.c.bf16 %v3380, %v3379
        %v3430 = vpack.c.bf16 %v3382, %v3381
        %v3431 = vpack.c.bf16 %v3384, %v3383
        %v3432 = vpack.c.bf16 %v3386, %v3385
        %v3433 = vpack.c.bf16 %v3388, %v3387
        %v3434 = vpack.c.bf16 %v3390, %v3389
        %v3435 = vpack.c.bf16 %v3392, %v3391
        %v3436 = vpack.c.bf16 %v3394, %v3393
        %v3437 = vpack.c.bf16 %v3396, %v3395
        %v3438 = vpack.c.bf16 %v3398, %v3397
        %v3439 = vpack.c.bf16 %v3400, %v3399
        %v3440 = vpack.c.bf16 %v3402, %v3401
        %v3441 = vpack.c.bf16 %v3404, %v3403
        %v3442 = vpack.c.bf16 %v3406, %v3405
        %v3443 = vpack.c.bf16 %v3408, %v3407
        %v3444 = vpack.c.bf16 %v3410, %v3409
        %v3445 = vpack.c.bf16 %v3412, %v3411
        %v3446 = vpack.c.bf16 %v3414, %v3413
        %v3479 = vunpack.c.l.b16 %v3415
        %v3480 = vunpack.c.h.b16 %v3415
        %v3481 = vunpack.c.l.b16 %v3416
        %v3482 = vunpack.c.h.b16 %v3416
        %v3483 = vunpack.c.l.b16 %v3417
        %v3484 = vunpack.c.h.b16 %v3417
        %v3485 = vunpack.c.l.b16 %v3418
        %v3486 = vunpack.c.h.b16 %v3418
        %v3487 = vunpack.c.l.b16 %v3419
        %v3488 = vunpack.c.h.b16 %v3419
        %v3489 = vunpack.c.l.b16 %v3420
        %v3490 = vunpack.c.h.b16 %v3420
        %v3491 = vunpack.c.l.b16 %v3421
        %v3492 = vunpack.c.h.b16 %v3421
        %v3493 = vunpack.c.l.b16 %v3422
        %v3494 = vunpack.c.h.b16 %v3422
        %v3495 = vunpack.c.l.b16 %v3423
        %v3496 = vunpack.c.h.b16 %v3423
        %v3497 = vunpack.c.l.b16 %v3424
        %v3498 = vunpack.c.h.b16 %v3424
        %v3499 = vunpack.c.l.b16 %v3425
        %v3500 = vunpack.c.h.b16 %v3425
        %v3501 = vunpack.c.l.b16 %v3426
        %v3502 = vunpack.c.h.b16 %v3426
        %v3503 = vunpack.c.l.b16 %v3427
        %v3504 = vunpack.c.h.b16 %v3427
        %v3505 = vunpack.c.l.b16 %v3428
        %v3506 = vunpack.c.h.b16 %v3428
        %v3507 = vunpack.c.l.b16 %v3429
        %v3508 = vunpack.c.h.b16 %v3429
        %v3509 = vunpack.c.l.b16 %v3430
        %v3510 = vunpack.c.h.b16 %v3430
        %v3511 = vunpack.c.l.b16 %v3431
        %v3512 = vunpack.c.h.b16 %v3431
        %v3513 = vunpack.c.l.b16 %v3432
        %v3514 = vunpack.c.h.b16 %v3432
        %v3515 = vunpack.c.l.b16 %v3433
        %v3516 = vunpack.c.h.b16 %v3433
        %v3517 = vunpack.c.l.b16 %v3434
        %v3518 = vunpack.c.h.b16 %v3434
        %v3519 = vunpack.c.l.b16 %v3435
        %v3520 = vunpack.c.h.b16 %v3435
        %v3521 = vunpack.c.l.b16 %v3436
        %v3522 = vunpack.c.h.b16 %v3436
        %v3523 = vunpack.c.l.b16 %v3437
        %v3524 = vunpack.c.h.b16 %v3437
        %v3525 = vunpack.c.l.b16 %v3438
        %v3526 = vunpack.c.h.b16 %v3438
        %v3527 = vunpack.c.l.b16 %v3439
        %v3528 = vunpack.c.h.b16 %v3439
        %v3529 = vunpack.c.l.b16 %v3440
        %v3530 = vunpack.c.h.b16 %v3440
        %v3531 = vunpack.c.l.b16 %v3441
        %v3532 = vunpack.c.h.b16 %v3441
        %v3533 = vunpack.c.l.b16 %v3442
        %v3534 = vunpack.c.h.b16 %v3442
        %v3535 = vunpack.c.l.b16 %v3443
        %v3536 = vunpack.c.h.b16 %v3443
        %v3537 = vunpack.c.l.b16 %v3444
        %v3538 = vunpack.c.h.b16 %v3444
        %v3539 = vunpack.c.l.b16 %v3445
        %v3540 = vunpack.c.h.b16 %v3445
        %v3541 = vunpack.c.l.b16 %v3446
        %v3542 = vunpack.c.h.b16 %v3446
        %v3543 = vpack.c.b16 %v3479, %v3479
        %v3544 = vpack.c.b16 %v3480, %v3480
        %v3545 = vpack.c.b16 %v3481, %v3481
        %v3546 = vpack.c.b16 %v3482, %v3482
        %v3547 = vpack.c.b16 %v3483, %v3483
        %v3548 = vpack.c.b16 %v3484, %v3484
        %v3549 = vpack.c.b16 %v3485, %v3485
        %v3550 = vpack.c.b16 %v3486, %v3486
        %v3551 = vpack.c.b16 %v3487, %v3487
        %v3552 = vpack.c.b16 %v3488, %v3488
        %v3553 = vpack.c.b16 %v3489, %v3489
        %v3554 = vpack.c.b16 %v3490, %v3490
        %v3555 = vpack.c.b16 %v3491, %v3491
        %v3556 = vpack.c.b16 %v3492, %v3492
        %v3557 = vpack.c.b16 %v3493, %v3493
        %v3558 = vpack.c.b16 %v3494, %v3494
        %v3559 = vpack.c.b16 %v3495, %v3495
        %v3560 = vpack.c.b16 %v3496, %v3496
        %v3561 = vpack.c.b16 %v3497, %v3497
        %v3562 = vpack.c.b16 %v3498, %v3498
        %v3563 = vpack.c.b16 %v3499, %v3499
        %v3564 = vpack.c.b16 %v3500, %v3500
        %v3565 = vpack.c.b16 %v3501, %v3501
        %v3566 = vpack.c.b16 %v3502, %v3502
        %v3567 = vpack.c.b16 %v3503, %v3503
        %v3568 = vpack.c.b16 %v3504, %v3504
        %v3569 = vpack.c.b16 %v3505, %v3505
        %v3570 = vpack.c.b16 %v3506, %v3506
        %v3571 = vpack.c.b16 %v3507, %v3507
        %v3572 = vpack.c.b16 %v3508, %v3508
        %v3573 = vpack.c.b16 %v3509, %v3509
        %v3574 = vpack.c.b16 %v3510, %v3510
        %v3575 = vpack.c.b16 %v3511, %v3511
        %v3576 = vpack.c.b16 %v3512, %v3512
        %v3577 = vpack.c.b16 %v3513, %v3513
        %v3578 = vpack.c.b16 %v3514, %v3514
        %v3579 = vpack.c.b16 %v3515, %v3515
        %v3580 = vpack.c.b16 %v3516, %v3516
        %v3581 = vpack.c.b16 %v3517, %v3517
        %v3582 = vpack.c.b16 %v3518, %v3518
        %v3583 = vpack.c.b16 %v3519, %v3519
        %v3584 = vpack.c.b16 %v3520, %v3520
        %v3585 = vpack.c.b16 %v3521, %v3521
        %v3586 = vpack.c.b16 %v3522, %v3522
        %v3587 = vpack.c.b16 %v3523, %v3523
        %v3588 = vpack.c.b16 %v3524, %v3524
        %v3589 = vpack.c.b16 %v3525, %v3525
        %v3590 = vpack.c.b16 %v3526, %v3526
        %v3591 = vpack.c.b16 %v3527, %v3527
        %v3592 = vpack.c.b16 %v3528, %v3528
        %v3593 = vpack.c.b16 %v3529, %v3529
        %v3594 = vpack.c.b16 %v3530, %v3530
        %v3595 = vpack.c.b16 %v3531, %v3531
        %v3596 = vpack.c.b16 %v3532, %v3532
        %v3597 = vpack.c.b16 %v3533, %v3533
        %v3598 = vpack.c.b16 %v3534, %v3534
        %v3599 = vpack.c.b16 %v3535, %v3535
        %v3600 = vpack.c.b16 %v3536, %v3536
        %v3601 = vpack.c.b16 %v3537, %v3537
        %v3602 = vpack.c.b16 %v3538, %v3538
        %v3603 = vpack.c.b16 %v3539, %v3539
        %v3604 = vpack.c.b16 %v3540, %v3540
        %v3605 = vpack.c.b16 %v3541, %v3541
        %v3606 = vpack.c.b16 %v3542, %v3542
        %vm3671 = vcmask 257024
        %3672 = vst.msk [vmem:[%s236] sm:$0xf] %vm3671, %v3543
        %3673 = vst.msk [vmem:[%s236 + $0x4] sm:$0xf] %vm3671, %v3544
        %3674 = vst.msk [vmem:[%s236 + $0x8] sm:$0xf] %vm3671, %v3545
        %3675 = vst.msk [vmem:[%s236 + $0xc] sm:$0xf] %vm3671, %v3546
        %3676 = vst.msk [vmem:[%s236 + $0x10] sm:$0xf] %vm3671, %v3547
        %3677 = vst.msk [vmem:[%s236 + $0x14] sm:$0xf] %vm3671, %v3548
        %3678 = vst.msk [vmem:[%s236 + $0x18] sm:$0xf] %vm3671, %v3549
        %3679 = vst.msk [vmem:[%s236 + $0x1c] sm:$0xf] %vm3671, %v3550
        %3680 = vst.msk [vmem:[%s236 + $0x20] sm:$0xf] %vm3671, %v3551
        %3681 = vst.msk [vmem:[%s236 + $0x24] sm:$0xf] %vm3671, %v3552
        %3682 = vst.msk [vmem:[%s236 + $0x28] sm:$0xf] %vm3671, %v3553
        %3683 = vst.msk [vmem:[%s236 + $0x2c] sm:$0xf] %vm3671, %v3554
        %3684 = vst.msk [vmem:[%s236 + $0x30] sm:$0xf] %vm3671, %v3555
        %3685 = vst.msk [vmem:[%s236 + $0x34] sm:$0xf] %vm3671, %v3556
        %3686 = vst.msk [vmem:[%s236 + $0x38] sm:$0xf] %vm3671, %v3557
        %3687 = vst.msk [vmem:[%s236 + $0x3c] sm:$0xf] %vm3671, %v3558
        %3688 = vst.msk [vmem:[%s236 + $0x40] sm:$0xf] %vm3671, %v3559
        %3689 = vst.msk [vmem:[%s236 + $0x44] sm:$0xf] %vm3671, %v3560
        %3690 = vst.msk [vmem:[%s236 + $0x48] sm:$0xf] %vm3671, %v3561
        %3691 = vst.msk [vmem:[%s236 + $0x4c] sm:$0xf] %vm3671, %v3562
        %3692 = vst.msk [vmem:[%s236 + $0x50] sm:$0xf] %vm3671, %v3563
        %3693 = vst.msk [vmem:[%s236 + $0x54] sm:$0xf] %vm3671, %v3564
        %3694 = vst.msk [vmem:[%s236 + $0x58] sm:$0xf] %vm3671, %v3565
        %3695 = vst.msk [vmem:[%s236 + $0x5c] sm:$0xf] %vm3671, %v3566
        %3696 = vst.msk [vmem:[%s236 + $0x60] sm:$0xf] %vm3671, %v3567
        %3697 = vst.msk [vmem:[%s236 + $0x64] sm:$0xf] %vm3671, %v3568
        %3698 = vst.msk [vmem:[%s236 + $0x68] sm:$0xf] %vm3671, %v3569
        %3699 = vst.msk [vmem:[%s236 + $0x6c] sm:$0xf] %vm3671, %v3570
        %3700 = vst.msk [vmem:[%s236 + $0x70] sm:$0xf] %vm3671, %v3571
        %3701 = vst.msk [vmem:[%s236 + $0x74] sm:$0xf] %vm3671, %v3572
        %3702 = vst.msk [vmem:[%s236 + $0x78] sm:$0xf] %vm3671, %v3573
        %3703 = vst.msk [vmem:[%s236 + $0x7c] sm:$0xf] %vm3671, %v3574
        %3704 = vst.msk [vmem:[%s236 + $0x80] sm:$0xf] %vm3671, %v3575
        %3705 = vst.msk [vmem:[%s236 + $0x84] sm:$0xf] %vm3671, %v3576
        %3706 = vst.msk [vmem:[%s236 + $0x88] sm:$0xf] %vm3671, %v3577
        %3707 = vst.msk [vmem:[%s236 + $0x8c] sm:$0xf] %vm3671, %v3578
        %3708 = vst.msk [vmem:[%s236 + $0x90] sm:$0xf] %vm3671, %v3579
        %3709 = vst.msk [vmem:[%s236 + $0x94] sm:$0xf] %vm3671, %v3580
        %3710 = vst.msk [vmem:[%s236 + $0x98] sm:$0xf] %vm3671, %v3581
        %3711 = vst.msk [vmem:[%s236 + $0x9c] sm:$0xf] %vm3671, %v3582
        %3712 = vst.msk [vmem:[%s236 + $0xa0] sm:$0xf] %vm3671, %v3583
        %3713 = vst.msk [vmem:[%s236 + $0xa4] sm:$0xf] %vm3671, %v3584
        %3714 = vst.msk [vmem:[%s236 + $0xa8] sm:$0xf] %vm3671, %v3585
        %3715 = vst.msk [vmem:[%s236 + $0xac] sm:$0xf] %vm3671, %v3586
        %3716 = vst.msk [vmem:[%s236 + $0xb0] sm:$0xf] %vm3671, %v3587
        %3717 = vst.msk [vmem:[%s236 + $0xb4] sm:$0xf] %vm3671, %v3588
        %3718 = vst.msk [vmem:[%s236 + $0xb8] sm:$0xf] %vm3671, %v3589
        %3719 = vst.msk [vmem:[%s236 + $0xbc] sm:$0xf] %vm3671, %v3590
        %3720 = vst.msk [vmem:[%s236 + $0xc0] sm:$0xf] %vm3671, %v3591
        %3721 = vst.msk [vmem:[%s236 + $0xc4] sm:$0xf] %vm3671, %v3592
        %3722 = vst.msk [vmem:[%s236 + $0xc8] sm:$0xf] %vm3671, %v3593
        %3723 = vst.msk [vmem:[%s236 + $0xcc] sm:$0xf] %vm3671, %v3594
        %3724 = vst.msk [vmem:[%s236 + $0xd0] sm:$0xf] %vm3671, %v3595
        %3725 = vst.msk [vmem:[%s236 + $0xd4] sm:$0xf] %vm3671, %v3596
        %3726 = vst.msk [vmem:[%s236 + $0xd8] sm:$0xf] %vm3671, %v3597
        %3727 = vst.msk [vmem:[%s236 + $0xdc] sm:$0xf] %vm3671, %v3598
        %3728 = vst.msk [vmem:[%s236 + $0xe0] sm:$0xf] %vm3671, %v3599
        %3729 = vst.msk [vmem:[%s236 + $0xe4] sm:$0xf] %vm3671, %v3600
        %3730 = vst.msk [vmem:[%s236 + $0xe8] sm:$0xf] %vm3671, %v3601
        %3731 = vst.msk [vmem:[%s236 + $0xec] sm:$0xf] %vm3671, %v3602
        %3732 = vst.msk [vmem:[%s236 + $0xf0] sm:$0xf] %vm3671, %v3603
        %3733 = vst.msk [vmem:[%s236 + $0xf4] sm:$0xf] %vm3671, %v3604
        %3734 = vst.msk [vmem:[%s236 + $0xf8] sm:$0xf] %vm3671, %v3605
        %3735 = vst.msk [vmem:[%s236 + $0xfc] sm:$0xf] %vm3671, %v3606
        %s3736 = sand.u32 %s142, 1
        %s3737 = scalar_lea.sflag [#allocation3], %s3736
        %s3738 = sand.u32 %s142, 1
        %s3739 = smul.addr %s3738, 256
        %s3740 = scalar_lea.vmem [#allocation2], %s3739
        // Predicated region
        $region41: #{conv_embedding_input_layer.1} parent=39 // pred_check
          %p3741 = pneg %p152
        $region42: #{conv_embedding_input_layer.1} parent=39 // pred_check_branch
          %3743 = sbr.rel (%p3741) target = $region44
        $region43: #{conv_embedding_input_layer.1} parent=39 // pred_region
          %s3744 = smul.u32 64, %s19
          %s3746 = ssub.s32 4096, 4096
          %3747 = vsyncadd %s3737, %s3746
          %s3748 = smul.addr %s3744, 64
          %s3749 = scalar_lea.hbm %s5, %s3748
          %s3750 = sshll.u32 %s3740, 4
          %s3751 = int_to_ptr.vmem [resolvable:$true] %s3750
          %3756 = dma.vmem_to_hbm [thread:$0]  %s3751, 4096, %s3749, %s3737, 64, 64, 4
        $region44: #{conv_embedding_input_layer.1} parent=39 // pred_fallthru
          _
      $region40: #{conv_embedding_input_layer.1} parent=5 // pred_fallthru
        _
      %p3757 = scmp.le.s32.totalorder 2, %s14
      // Predicated region
      $region45: #{conv_embedding_input_layer.1} parent=5 // pred_check
        %p3758 = pneg %p3757
      $region46: #{conv_embedding_input_layer.1} parent=5 // pred_check_branch
        %3760 = sbr.rel (%p3758) target = $region48
      $region47: #{conv_embedding_input_layer.1} parent=5 // pred_region
        %s3761 = ssub.s32 %s14, 2
        // Predicated region
        $region49: #{conv_embedding_input_layer.1} parent=47 // pred_check
          %p3762 = pneg %p158
        $region50: #{conv_embedding_input_layer.1} parent=47 // pred_check_branch
          %3764 = sbr.rel (%p3762) target = $region52
        $region51: #{conv_embedding_input_layer.1} parent=47 // pred_region
          %s3765 = sand.u32 %s143, 1
          %s3766 = scalar_lea.sflag [#allocation3], %s3765
          %s3767 = sand.u32 %s143, 1
          %s3768 = smul.addr %s3767, 256
          %s3769 = scalar_lea.vmem [#allocation2], %s3768
          %3770 = dma.done %s3766, 4096
        $region52: #{conv_embedding_input_layer.1} parent=47 // pred_fallthru
          _
      $region48: #{conv_embedding_input_layer.1} parent=5 // pred_fallthru
        _
    $region6: #{conv_embedding_input_layer.1} parent=1 // loop_footer
      %s18 = sadd.s32 1, %s14
    $region7: #{conv_embedding_input_layer.1} parent=1 // loop_footer_branch
      %13 = sbr.rel target = $region3
    $region8: #{conv_embedding_input_layer.1} parent=1 // loop_exit
      _
    %3771 = vsyncpa [#allocation3], 1
    %s3772 = scalar_lea.sflag [#allocation3], 1
    %3773 = vsyncpa %s3772, 1

</llo_original>
